<compile_context>
chip_gen: v7x
topology: tpu7x:2x2x1
jax: 0.10.0
libtpu: 0.0.40
codegen_flags: <defaults>
</compile_context>

<pallas_src>
import functools

import jax
import jax.numpy as jnp
from jax import lax
from jax.experimental import pallas as pl
from jax.experimental.pallas import tpu as pltpu

NEG_SLOPE = 0.1


# ------------------------------ activations ---------------------------------

def _leaky(v):
    return jnp.maximum(v, NEG_SLOPE * v)


def _apply_act(v, act):
    if act == "leaky":
        return _leaky(v)
    return v


# -------------------- fused conv (+ optional 1x1 chain) kernel --------------

def _conv_kernel(*refs, has_bias, has_w2, has_res, act1, act2):
    idx = 0
    x_ref = refs[idx]; idx += 1          # [CK, L]    bf16  (L = N*Ho*Wo)
    w1_ref = refs[idx]; idx += 1         # [C1, CK]   bf16
    b1_ref = None
    if has_bias:
        b1_ref = refs[idx]; idx += 1     # [C1, 1]    f32
    w2_ref = None
    if has_w2:
        w2_ref = refs[idx]; idx += 1     # [C2, C1]   bf16
    r_ref = None
    if has_res:
        r_ref = refs[idx]; idx += 1      # [Cout, L]  f32
    o_ref = refs[idx]                    # [Cout, L]  bf16 / f32

    # bf16 MXU matmul, f32 accumulation; lane dim = N*Ho*Wo (lane dense).
    acc = jnp.dot(w1_ref[...], x_ref[...], preferred_element_type=jnp.float32)
    if has_bias:
        acc = acc + b1_ref[...]
    acc = _apply_act(acc, act1)
    if has_w2:
        acc = jnp.dot(w2_ref[...], acc.astype(jnp.bfloat16),
                      preferred_element_type=jnp.float32)
        acc = _apply_act(acc, act2)
    if has_res:
        acc = acc + r_ref[...]
    o_ref[...] = acc.astype(o_ref.dtype)


def conv_chain_pallas(x, w1, *, stride=(1, 1), padding=(0, 0),
                      dilation=(1, 1), bias1=None, act1="none",
                      w2=None, act2="none", residual=None,
                      out_dtype=jnp.bfloat16, fold_output=False):
    """act2(W2 @ act1(W1 @ im2col(x) + b1)) (+ residual).

    Input is NCHW; output is NCHW [N, Cout, Ho, Wo], or the lane-folded
    [Cout, N*Ho*Wo] layout (fold_output=True) consumed by the fused
    ECA/fuse kernel.
    """
    N = x.shape[0]
    C1, _, kh, kw = w1.shape
    patches = lax.conv_general_dilated_patches(
        x, filter_shape=(kh, kw), window_strides=stride,
        padding=[(padding[0], padding[0]), (padding[1], padding[1])],
        rhs_dilation=dilation,
        dimension_numbers=("NCHW", "OIHW", "NCHW"))      # [N, CK, Ho, Wo]
    _, CK, Ho, Wo = patches.shape
    HWo = Ho * Wo
    L = N * HWo
    # Fold batch into the lane dim: [CK, N*Ho*Wo] (one transpose outside).
    A = (patches.reshape(N, CK, HWo).transpose(1, 0, 2)
         .reshape(CK, L).astype(jnp.bfloat16))
    W1m = w1.reshape(C1, CK).astype(jnp.bfloat16)

    inputs = [A, W1m]
    in_specs = [
        pl.BlockSpec((CK, L), lambda i: (0, 0)),
        pl.BlockSpec((C1, CK), lambda i: (0, 0)),
    ]
    has_bias = bias1 is not None
    if has_bias:
        inputs.append(bias1.reshape(C1, 1).astype(jnp.float32))
        in_specs.append(pl.BlockSpec((C1, 1), lambda i: (0, 0)))
    has_w2 = w2 is not None
    Cout = C1
    if has_w2:
        assert w2.shape[2:] == (1, 1), "chained conv must be 1x1"
        Cout = w2.shape[0]
        inputs.append(w2.reshape(Cout, C1).astype(jnp.bfloat16))
        in_specs.append(pl.BlockSpec((Cout, C1), lambda i: (0, 0)))
    has_res = residual is not None
    if has_res:
        inputs.append(residual.transpose(1, 0, 2, 3)
                      .reshape(Cout, L).astype(jnp.float32))
        in_specs.append(pl.BlockSpec((Cout, L), lambda i: (0, 0)))

    out = pl.pallas_call(
        functools.partial(_conv_kernel, has_bias=has_bias, has_w2=has_w2,
                          has_res=has_res, act1=act1, act2=act2),
        out_shape=jax.ShapeDtypeStruct((Cout, L), out_dtype),
        grid=(1,),
        in_specs=in_specs,
        out_specs=pl.BlockSpec((Cout, L), lambda i: (0, 0)),
        compiler_params=pltpu.CompilerParams(
            dimension_semantics=("arbitrary",)),
    )(*inputs)
    if fold_output:
        return out                                        # [Cout, N*Ho*Wo]
    return out.reshape(Cout, N, Ho, Wo).transpose(1, 0, 2, 3)


# --------------- fused concat + ECA + fuse_w1 (1x1) + LeakyReLU --------------

def _eca_fuse_kernel(*refs, offs, hw, n_batch, inv_hw):
    nb = len(offs) - 1
    ctot = offs[-1]
    branch_refs = refs[:nb]               # each [Ci, L] bf16, L = n_batch*hw
    wf_ref = refs[nb]                     # [Cout, Ctot] bf16
    weca_ref = refs[nb + 1]               # [3] f32 (SMEM)
    o_ref = refs[nb + 2]                  # [Cout, L]   bf16
    mpad_ref = refs[nb + 3]               # [Ctot+2, N] f32 scratch

    # 1) per-branch, per-sample spatial means into a zero-padded channel vec.
    mpad_ref[...] = jnp.zeros(mpad_ref.shape, jnp.float32)
    for i, xr in enumerate(branch_refs):
        for n in range(n_batch):
            xn = xr[:, n * hw:(n + 1) * hw].astype(jnp.float32)   # [Ci, HW]
            m = jnp.sum(xn, axis=-1, keepdims=True) * inv_hw       # [Ci, 1]
            mpad_ref[1 + offs[i]:1 + offs[i + 1], n:n + 1] = m

    # 2) 3-tap channel conv (zero padded) as a shifted-add on slices, sigmoid.
    we0 = weca_ref[0]
    we1 = weca_ref[1]
    we2 = weca_ref[2]
    y = (we0 * mpad_ref[0:ctot, :]            # m[c-1]
         + we1 * mpad_ref[1:ctot + 1, :]      # m[c]
         + we2 * mpad_ref[2:ctot + 2, :])     # m[c+1]
    s = jax.nn.sigmoid(y)                     # [Ctot, N]

    # 3) channel scale + fused 1x1 conv (per-branch K-chunks) + LeakyReLU.
    wf = wf_ref[...]
    for n in range(n_batch):
        acc = None
        for i, xr in enumerate(branch_refs):
            xn = xr[:, n * hw:(n + 1) * hw].astype(jnp.float32)     # [Ci, HW]
            si = s[offs[i]:offs[i + 1], n:n + 1]                     # [Ci, 1]
            xs = (xn * si).astype(jnp.bfloat16)
            c = jnp.dot(wf[:, offs[i]:offs[i + 1]], xs,
                        preferred_element_type=jnp.float32)
            acc = c if acc is None else acc + c
        acc = _leaky(acc)
        o_ref[:, n * hw:(n + 1) * hw] = acc.astype(o_ref.dtype)


def eca_fuse_pallas(branches, w_fuse1, w_eca, *, n_batch, hw):
    """branches: lane-folded [Ci, n_batch*hw] tensors in concat order."""
    L = n_batch * hw
    cs = [int(b.shape[0]) for b in branches]
    offs = [0]
    for c in cs:
        offs.append(offs[-1] + c)
    offs = tuple(offs)
    ctot = offs[-1]
    Cout = w_fuse1.shape[0]
    assert w_fuse1.shape[1] == ctot and w_fuse1.shape[2:] == (1, 1)

    wf = w_fuse1.reshape(Cout, ctot).astype(jnp.bfloat16)
    inputs = ([b.astype(jnp.bfloat16) for b in branches]
              + [wf, w_eca.astype(jnp.float32)])
    in_specs = ([pl.BlockSpec((c, L), lambda i: (0, 0)) for c in cs]
                + [pl.BlockSpec((Cout, ctot), lambda i: (0, 0)),
                   pl.BlockSpec(memory_space=pltpu.MemorySpace.SMEM)])

    out = pl.pallas_call(
        functools.partial(_eca_fuse_kernel, offs=offs, hw=hw,
                          n_batch=n_batch, inv_hw=1.0 / hw),
        out_shape=jax.ShapeDtypeStruct((Cout, L), jnp.bfloat16),
        grid=(1,),
        in_specs=in_specs,
        out_specs=pl.BlockSpec((Cout, L), lambda i: (0, 0)),
        scratch_shapes=[pltpu.VMEM((ctot + 2, n_batch), jnp.float32)],
        compiler_params=pltpu.CompilerParams(
            dimension_semantics=("arbitrary",)),
    )(*inputs)
    return out                                            # [Cout, L] bf16


# --------------------------- pixel shuffles (glue) ---------------------------
# Pure data rearrangements -> kept as XLA reshapes/transposes.

def pixel_shuffle_2d(x, r):
    b, c, h, w = x.shape
    co = c // (r * r)
    x = x.reshape(b, co, r, r, h, w)
    x = x.transpose(0, 1, 4, 2, 5, 3)
    return x.reshape(b, co, h * r, w * r)


def pixel_shuffle_1d(x, factor):
    b, fc, h, w = x.shape
    c = fc // factor
    x = x.reshape(b, factor, c, h, w)
    x = x.transpose(0, 2, 3, 4, 1)
    return x.reshape(b, c, h, w * factor)


def _fold(t):
    """[N, C, H, W] -> lane-folded [C, N*H*W]."""
    n, c, h, w = t.shape
    return t.transpose(1, 0, 2, 3).reshape(c, n * h * w)


# ------------------------------ DisentgBlock ---------------------------------

def disentg_forward_pallas(x, p, *, angRes, channels_in, channels):
    a = angRes
    N, _, H, W = x.shape
    conv = conv_chain_pallas

    # SpaConv: two 3x3 dilated convs.  The first must come back to NCHW for
    # the second layer's im2col; the second returns lane-folded directly.
    s = conv(x, p["spa_w1"], padding=(a, a), dilation=(a, a), act1="leaky")
    feaSpa = conv(s, p["spa_w2"], padding=(a, a), dilation=(a, a),
                  act1="leaky", fold_output=True)          # [SpaC, N*H*W] bf16

    # AngConv: a*a stride-a conv fused with its 1x1 expansion.
    t = conv(x, p["ang_w1"], stride=(a, a), act1="leaky",
             w2=p["ang_w2"], act2="leaky")
    feaAng = pixel_shuffle_2d(t, a)

    def epiconv(xin):
        u = conv(xin, p["epi_w1"], stride=(1, a),
                 padding=(0, a * (a - 1) // 2), act1="leaky",
                 w2=p["epi_w2"], act2="leaky")
        return pixel_shuffle_1d(u, a)

    def epi_add(xin):
        v = conv(xin, p["epia_w1"], stride=(1, a), act1="none")
        v = conv(v, p["epia_w2"], padding=((a - 1) // 2, 0),
                 bias1=p["epia_b2"], act1="leaky",
                 w2=p["epia_w3"], act2="leaky")
        return pixel_shuffle_1d(v, a)

    if H == W:
        # Both EPI orientations batched through the same weights; their batch
        # also folds into the matmul lane dim (2N*Ho*Wo lanes per call).
        xx = jnp.concatenate([x, jnp.transpose(x, (0, 1, 3, 2))], axis=0)
        eh = epiconv(xx)
        ea = epi_add(xx)
        feaEpiH, feaEpiV = eh[:N], jnp.transpose(eh[N:], (0, 1, 3, 2))
        feaEpiH_add = ea[:N]
        feaEpiV_add = jnp.transpose(ea[N:], (0, 1, 3, 2))
    else:
        xt = jnp.transpose(x, (0, 1, 3, 2))
        feaEpiH = epiconv(x)
        feaEpiH_add = epi_add(x)
        feaEpiV = jnp.transpose(epiconv(xt), (0, 1, 3, 2))
        feaEpiV_add = jnp.transpose(epi_add(xt), (0, 1, 3, 2))

    # concat + ECA + fuse_w1 (1x1) + LeakyReLU: one fused kernel over the six
    # lane-folded bf16 branch tensors (no HBM concat buffer, no ECA round trip).
    branches = [feaSpa, _fold(feaAng), _fold(feaEpiH), _fold(feaEpiH_add),
                _fold(feaEpiV), _fold(feaEpiV_add)]
    buf = eca_fuse_pallas(branches, p["fuse_w1"], p["eca_w"],
                          n_batch=N, hw=H * W)             # [channels, N*H*W]
    buf = buf.reshape(channels, N, H, W).transpose(1, 0, 2, 3)   # NCHW

    res = x if channels_in == channels else None
    out = conv(buf, p["fuse_w2"], padding=(a, a), dilation=(a, a),
               act1="none", residual=res, out_dtype=jnp.float32)
    return out


# --------------------------- pure-JAX reference ------------------------------
# Same numerics contract as the Pallas path: bf16 conv/MXU inputs, f32
# accumulation, bf16 stored intermediates (modelled by rounding the concat
# buffer), f32 ECA mean/sigmoid and final residual add.

def conv2d_ref(x, w, stride=(1, 1), padding=(0, 0), dilation=(1, 1),
               bias=None, act="none"):
    out = lax.conv_general_dilated(
        x.astype(jnp.bfloat16), w.astype(jnp.bfloat16),
        window_strides=stride,
        padding=[(padding[0], padding[0]), (padding[1], padding[1])],
        rhs_dilation=dilation,
        dimension_numbers=("NCHW", "OIHW", "NCHW"),
        preferred_element_type=jnp.float32)
    if bias is not None:
        out = out + bias.reshape(1, -1, 1, 1).astype(jnp.float32)
    return _apply_act(out, act)


def eca_ref(x, w_eca):
    m = jnp.mean(x, axis=(2, 3))
    mp = jnp.pad(m, ((0, 0), (1, 1)))
    y = w_eca[0] * mp[:, :-2] + w_eca[1] * mp[:, 1:-1] + w_eca[2] * mp[:, 2:]
    s = jax.nn.sigmoid(y)
    return x * s[:, :, None, None]


def disentg_forward_ref(x, p, *, angRes, channels_in, channels):
    a = angRes
    conv = conv2d_ref
    s = conv(x, p["spa_w1"], dilation=(a, a), padding=(a, a), act="leaky")
    feaSpa = conv(s, p["spa_w2"], dilation=(a, a), padding=(a, a), act="leaky")
    t = conv(x, p["ang_w1"], stride=(a, a), act="leaky")
    t = conv(t, p["ang_w2"], act="leaky")
    feaAng = pixel_shuffle_2d(t, a)

    def epiconv(xin):
        u = conv(xin, p["epi_w1"], stride=(1, a),
                 padding=(0, a * (a - 1) // 2), act="leaky")
        u = conv(u, p["epi_w2"], act="leaky")
        return pixel_shuffle_1d(u, a)

    def epi_add(xin):
        v = conv(xin, p["epia_w1"], stride=(1, a))
        v = conv(v, p["epia_w2"], padding=((a - 1) // 2, 0),
                 bias=p["epia_b2"], act="leaky")
        v = conv(v, p["epia_w3"], act="leaky")
        return pixel_shuffle_1d(v, a)

    xt = jnp.transpose(x, (0, 1, 3, 2))
    feaEpiH = epiconv(x)
    feaEpiH_add = epi_add(x)
    feaEpiV = jnp.transpose(epiconv(xt), (0, 1, 3, 2))
    feaEpiV_add = jnp.transpose(epi_add(xt), (0, 1, 3, 2))
    buf = jnp.concatenate(
        [feaSpa, feaAng, feaEpiH, feaEpiH_add, feaEpiV, feaEpiV_add], axis=1)
    # Pallas path stores branch tensors in bf16 -> model that rounding here.
    buf = buf.astype(jnp.bfloat16).astype(jnp.float32)
    buf = eca_ref(buf, p["eca_w"])
    buf = conv(buf, p["fuse_w1"], act="leaky")
    buf = conv(buf, p["fuse_w2"], dilation=(a, a), padding=(a, a))
    if channels_in == channels:
        return buf + x
    return buf


# --------------------------------- params ------------------------------------

def init_params(key, angRes, channels_in, channels):
    SpaC, AngC, EpiC = channels, channels // 4, channels // 2
    a = angRes
    shapes = dict(
        spa_w1=(SpaC, channels_in, 3, 3),
        spa_w2=(SpaC, SpaC, 3, 3),
        ang_w1=(AngC, channels_in, a, a),
        ang_w2=(a * a * AngC, AngC, 1, 1),
        epia_w1=(EpiC, channels_in, 1, a),
        epia_w2=(EpiC, EpiC, a, 1),
        epia_b2=(EpiC,),
        epia_w3=(a * EpiC, EpiC, 1, 1),
        epi_w1=(EpiC, channels_in, 1, a * a),
        epi_w2=(a * EpiC, EpiC, 1, 1),
        fuse_w1=(channels, SpaC + AngC + 4 * EpiC, 1, 1),
        fuse_w2=(channels, channels, 3, 3),
        eca_w=(3,),
    )
    params = {}
    names = sorted(shapes)
    keys = jax.random.split(key, len(names))
    for k_, name in zip(keys, names):
        params[name] = 0.1 * jax.random.normal(k_, shapes[name],
                                               dtype=jnp.float32)
    return params


# ----------------------------------- main -------------------------------------

if __name__ == "__main__":
    angRes = 3          # odd angRes required for shape-consistent EPI_addConv
    channels_in = 8
    channels = 8        # channels_in == channels -> residual branch exercised
    b = 2
    H = W = angRes * 4  # 12

    key = jax.random.PRNGKey(0)
    kx, kp = jax.random.split(key)
    x = jax.random.normal(kx, (b, channels_in, H, W), dtype=jnp.float32)
    params = init_params(kp, angRes, channels_in, channels)

    fwd = jax.jit(functools.partial(
        disentg_forward_pallas, angRes=angRes,
        channels_in=channels_in, channels=channels))
    ref_fn = jax.jit(functools.partial(
        disentg_forward_ref, angRes=angRes,
        channels_in=channels_in, channels=channels))

    out = jax.block_until_ready(fwd(x, params))
    ref = jax.block_until_ready(ref_fn(x, params))

    assert out.shape == (b, channels, H, W), out.shape
    err = float(jnp.max(jnp.abs(out - ref)))
    assert err < 3e-3, f"max abs error {err}"
    print("KERNEL_OK")
</pallas_src>

<mosaic_0001>
module attributes {stable_mosaic.version = 11 : i64} {
  func.func @_conv_kernel(%arg0: i32, %arg1: memref<72x288xbf16, #tpu.memory_space<vmem>>, %arg2: memref<8x72xbf16, #tpu.memory_space<vmem>>, %arg3: memref<8x288xbf16, #tpu.memory_space<vmem>>) attributes {dimension_semantics = [#tpu.dimension_semantics<arbitrary>], iteration_bounds = array<i64: 1>, scalar_prefetch = 0 : i64, scratch_operands = 0 : i64, tpu.core_type = #tpu.core_type<tc>, window_params = [{pipeline_mode = #tpu.pipeline_mode<synchronous>, transform_indices = @transform_0, window_bounds = array<i64: 72, 288>}, {pipeline_mode = #tpu.pipeline_mode<synchronous>, transform_indices = @transform_1, window_bounds = array<i64: 8, 72>}, {pipeline_mode = #tpu.pipeline_mode<synchronous>, transform_indices = @transform_2, window_bounds = array<i64: 8, 288>}]} {
    %c0 = arith.constant 0 : index
    %c0_0 = arith.constant 0 : index
    %0 = vector.load %arg2[%c0, %c0_0] : memref<8x72xbf16, #tpu.memory_space<vmem>>, vector<8x72xbf16>
    %c0_1 = arith.constant 0 : index
    %c0_2 = arith.constant 0 : index
    %1 = vector.load %arg1[%c0_1, %c0_2] : memref<72x288xbf16, #tpu.memory_space<vmem>>, vector<72x288xbf16>
    %cst = arith.constant dense<0.000000e+00> : vector<8x288xf32>
    %2 = tpu.matmul %0, %1, %cst {dimension_numbers = #tpu.dot_dimension_numbers<[1], [0], [0], [1], [0, 0, 1, 1], [], []>} : vector<8x72xbf16>, vector<72x288xbf16>, vector<8x288xf32> -> vector<8x288xf32>
    %cst_3 = arith.constant 1.000000e-01 : f32
    %3 = vector.broadcast %cst_3 : f32 to vector<8x288xf32>
    %4 = arith.mulf %3, %2 : vector<8x288xf32>
    %5 = arith.maximumf %2, %4 : vector<8x288xf32>
    %6 = arith.truncf %5 : vector<8x288xf32> to vector<8x288xbf16>
    %c0_4 = arith.constant 0 : index
    %c0_5 = arith.constant 0 : index
    %7 = vector.load %arg3[%c0_4, %c0_5] : memref<8x288xbf16, #tpu.memory_space<vmem>>, vector<8x288xbf16>
    tpu.vector_store %arg3[%c0_4, %c0_5], %6 {strides = array<i32>} : memref<8x288xbf16, #tpu.memory_space<vmem>>, vector<8x288xbf16>,
    return
  }
  func.func @transform_0(%arg0: i32) -> (i32, i32) {
    %c0_i32 = arith.constant 0 : i32
    %c0_i32_0 = arith.constant 0 : i32
    %c0_i32_1 = arith.constant 0 : i32
    return %c0_i32, %c0_i32_0 : i32, i32
  }
  func.func @transform_1(%arg0: i32) -> (i32, i32) {
    %c0_i32 = arith.constant 0 : i32
    %c0_i32_0 = arith.constant 0 : i32
    %c0_i32_1 = arith.constant 0 : i32
    return %c0_i32, %c0_i32_0 : i32, i32
  }
  func.func @transform_2(%arg0: i32) -> (i32, i32) {
    %c0_i32 = arith.constant 0 : i32
    %c0_i32_0 = arith.constant 0 : i32
    %c0_i32_1 = arith.constant 0 : i32
    return %c0_i32, %c0_i32_0 : i32, i32
  }
}

module attributes {stable_mosaic.version = 11 : i64} {
  func.func @_conv_kernel(%arg0: i32, %arg1: memref<72x32xbf16, #tpu.memory_space<vmem>>, %arg2: memref<2x72xbf16, #tpu.memory_space<vmem>>, %arg3: memref<18x2xbf16, #tpu.memory_space<vmem>>, %arg4: memref<18x32xbf16, #tpu.memory_space<vmem>>) attributes {dimension_semantics = [#tpu.dimension_semantics<arbitrary>], iteration_bounds = array<i64: 1>, scalar_prefetch = 0 : i64, scratch_operands = 0 : i64, tpu.core_type = #tpu.core_type<tc>, window_params = [{pipeline_mode = #tpu.pipeline_mode<synchronous>, transform_indices = @transform_0, window_bounds = array<i64: 72, 32>}, {pipeline_mode = #tpu.pipeline_mode<synchronous>, transform_indices = @transform_1, window_bounds = array<i64: 2, 72>}, {pipeline_mode = #tpu.pipeline_mode<synchronous>, transform_indices = @transform_2, window_bounds = array<i64: 18, 2>}, {pipeline_mode = #tpu.pipeline_mode<synchronous>, transform_indices = @transform_3, window_bounds = array<i64: 18, 32>}]} {
    %c0 = arith.constant 0 : index
    %c0_0 = arith.constant 0 : index
    %0 = vector.load %arg2[%c0, %c0_0] : memref<2x72xbf16, #tpu.memory_space<vmem>>, vector<2x72xbf16>
    %c0_1 = arith.constant 0 : index
    %c0_2 = arith.constant 0 : index
    %1 = vector.load %arg1[%c0_1, %c0_2] : memref<72x32xbf16, #tpu.memory_space<vmem>>, vector<72x32xbf16>
    %cst = arith.constant dense<0.000000e+00> : vector<2x32xf32>
    %2 = tpu.matmul %0, %1, %cst {dimension_numbers = #tpu.dot_dimension_numbers<[1], [0], [0], [1], [0, 0, 1, 1], [], []>} : vector<2x72xbf16>, vector<72x32xbf16>, vector<2x32xf32> -> vector<2x32xf32>
    %cst_3 = arith.constant 1.000000e-01 : f32
    %3 = vector.broadcast %cst_3 : f32 to vector<2x32xf32>
    %4 = arith.mulf %3, %2 : vector<2x32xf32>
    %5 = arith.maximumf %2, %4 : vector<2x32xf32>
    %c0_4 = arith.constant 0 : index
    %c0_5 = arith.constant 0 : index
    %6 = vector.load %arg3[%c0_4, %c0_5] : memref<18x2xbf16, #tpu.memory_space<vmem>>, vector<18x2xbf16>
    %7 = arith.truncf %5 : vector<2x32xf32> to vector<2x32xbf16>
    %cst_6 = arith.constant dense<0.000000e+00> : vector<18x32xf32>
    %8 = tpu.matmul %6, %7, %cst_6 {dimension_numbers = #tpu.dot_dimension_numbers<[1], [0], [0], [1], [0, 0, 1, 1], [], []>} : vector<18x2xbf16>, vector<2x32xbf16>, vector<18x32xf32> -> vector<18x32xf32>
    %cst_7 = arith.constant 1.000000e-01 : f32
    %9 = vector.broadcast %cst_7 : f32 to vector<18x32xf32>
    %10 = arith.mulf %9, %8 : vector<18x32xf32>
    %11 = arith.maximumf %8, %10 : vector<18x32xf32>
    %12 = arith.truncf %11 : vector<18x32xf32> to vector<18x32xbf16>
    %c0_8 = arith.constant 0 : index
    %c0_9 = arith.constant 0 : index
    %13 = vector.load %arg4[%c0_8, %c0_9] : memref<18x32xbf16, #tpu.memory_space<vmem>>, vector<18x32xbf16>
    tpu.vector_store %arg4[%c0_8, %c0_9], %12 {strides = array<i32>} : memref<18x32xbf16, #tpu.memory_space<vmem>>, vector<18x32xbf16>,
    return
  }
  func.func @transform_0(%arg0: i32) -> (i32, i32) {
    %c0_i32 = arith.constant 0 : i32
    %c0_i32_0 = arith.constant 0 : i32
    %c0_i32_1 = arith.constant 0 : i32
    return %c0_i32, %c0_i32_0 : i32, i32
  }
  func.func @transform_1(%arg0: i32) -> (i32, i32) {
    %c0_i32 = arith.constant 0 : i32
    %c0_i32_0 = arith.constant 0 : i32
    %c0_i32_1 = arith.constant 0 : i32
    return %c0_i32, %c0_i32_0 : i32, i32
  }
  func.func @transform_2(%arg0: i32) -> (i32, i32) {
    %c0_i32 = arith.constant 0 : i32
    %c0_i32_0 = arith.constant 0 : i32
    %c0_i32_1 = arith.constant 0 : i32
    return %c0_i32, %c0_i32_0 : i32, i32
  }
  func.func @transform_3(%arg0: i32) -> (i32, i32) {
    %c0_i32 = arith.constant 0 : i32
    %c0_i32_0 = arith.constant 0 : i32
    %c0_i32_1 = arith.constant 0 : i32
    return %c0_i32, %c0_i32_0 : i32, i32
  }
}

module attributes {stable_mosaic.version = 11 : i64} {
  func.func @_conv_kernel(%arg0: i32, %arg1: memref<72x192xbf16, #tpu.memory_space<vmem>>, %arg2: memref<4x72xbf16, #tpu.memory_space<vmem>>, %arg3: memref<12x4xbf16, #tpu.memory_space<vmem>>, %arg4: memref<12x192xbf16, #tpu.memory_space<vmem>>) attributes {dimension_semantics = [#tpu.dimension_semantics<arbitrary>], iteration_bounds = array<i64: 1>, scalar_prefetch = 0 : i64, scratch_operands = 0 : i64, tpu.core_type = #tpu.core_type<tc>, window_params = [{pipeline_mode = #tpu.pipeline_mode<synchronous>, transform_indices = @transform_0, window_bounds = array<i64: 72, 192>}, {pipeline_mode = #tpu.pipeline_mode<synchronous>, transform_indices = @transform_1, window_bounds = array<i64: 4, 72>}, {pipeline_mode = #tpu.pipeline_mode<synchronous>, transform_indices = @transform_2, window_bounds = array<i64: 12, 4>}, {pipeline_mode = #tpu.pipeline_mode<synchronous>, transform_indices = @transform_3, window_bounds = array<i64: 12, 192>}]} {
    %c0 = arith.constant 0 : index
    %c0_0 = arith.constant 0 : index
    %0 = vector.load %arg2[%c0, %c0_0] : memref<4x72xbf16, #tpu.memory_space<vmem>>, vector<4x72xbf16>
    %c0_1 = arith.constant 0 : index
    %c0_2 = arith.constant 0 : index
    %1 = vector.load %arg1[%c0_1, %c0_2] : memref<72x192xbf16, #tpu.memory_space<vmem>>, vector<72x192xbf16>
    %cst = arith.constant dense<0.000000e+00> : vector<4x192xf32>
    %2 = tpu.matmul %0, %1, %cst {dimension_numbers = #tpu.dot_dimension_numbers<[1], [0], [0], [1], [0, 0, 1, 1], [], []>} : vector<4x72xbf16>, vector<72x192xbf16>, vector<4x192xf32> -> vector<4x192xf32>
    %cst_3 = arith.constant 1.000000e-01 : f32
    %3 = vector.broadcast %cst_3 : f32 to vector<4x192xf32>
    %4 = arith.mulf %3, %2 : vector<4x192xf32>
    %5 = arith.maximumf %2, %4 : vector<4x192xf32>
    %c0_4 = arith.constant 0 : index
    %c0_5 = arith.constant 0 : index
    %6 = vector.load %arg3[%c0_4, %c0_5] : memref<12x4xbf16, #tpu.memory_space<vmem>>, vector<12x4xbf16>
    %7 = arith.truncf %5 : vector<4x192xf32> to vector<4x192xbf16>
    %cst_6 = arith.constant dense<0.000000e+00> : vector<12x192xf32>
    %8 = tpu.matmul %6, %7, %cst_6 {dimension_numbers = #tpu.dot_dimension_numbers<[1], [0], [0], [1], [0, 0, 1, 1], [], []>} : vector<12x4xbf16>, vector<4x192xbf16>, vector<12x192xf32> -> vector<12x192xf32>
    %cst_7 = arith.constant 1.000000e-01 : f32
    %9 = vector.broadcast %cst_7 : f32 to vector<12x192xf32>
    %10 = arith.mulf %9, %8 : vector<12x192xf32>
    %11 = arith.maximumf %8, %10 : vector<12x192xf32>
    %12 = arith.truncf %11 : vector<12x192xf32> to vector<12x192xbf16>
    %c0_8 = arith.constant 0 : index
    %c0_9 = arith.constant 0 : index
    %13 = vector.load %arg4[%c0_8, %c0_9] : memref<12x192xbf16, #tpu.memory_space<vmem>>, vector<12x192xbf16>
    tpu.vector_store %arg4[%c0_8, %c0_9], %12 {strides = array<i32>} : memref<12x192xbf16, #tpu.memory_space<vmem>>, vector<12x192xbf16>,
    return
  }
  func.func @transform_0(%arg0: i32) -> (i32, i32) {
    %c0_i32 = arith.constant 0 : i32
    %c0_i32_0 = arith.constant 0 : i32
    %c0_i32_1 = arith.constant 0 : i32
    return %c0_i32, %c0_i32_0 : i32, i32
  }
  func.func @transform_1(%arg0: i32) -> (i32, i32) {
    %c0_i32 = arith.constant 0 : i32
    %c0_i32_0 = arith.constant 0 : i32
    %c0_i32_1 = arith.constant 0 : i32
    return %c0_i32, %c0_i32_0 : i32, i32
  }
  func.func @transform_2(%arg0: i32) -> (i32, i32) {
    %c0_i32 = arith.constant 0 : i32
    %c0_i32_0 = arith.constant 0 : i32
    %c0_i32_1 = arith.constant 0 : i32
    return %c0_i32, %c0_i32_0 : i32, i32
  }
  func.func @transform_3(%arg0: i32) -> (i32, i32) {
    %c0_i32 = arith.constant 0 : i32
    %c0_i32_0 = arith.constant 0 : i32
    %c0_i32_1 = arith.constant 0 : i32
    return %c0_i32, %c0_i32_0 : i32, i32
  }
}

module attributes {stable_mosaic.version = 11 : i64} {
  func.func @_conv_kernel(%arg0: i32, %arg1: memref<24x192xbf16, #tpu.memory_space<vmem>>, %arg2: memref<4x24xbf16, #tpu.memory_space<vmem>>, %arg3: memref<4x192xbf16, #tpu.memory_space<vmem>>) attributes {dimension_semantics = [#tpu.dimension_semantics<arbitrary>], iteration_bounds = array<i64: 1>, scalar_prefetch = 0 : i64, scratch_operands = 0 : i64, tpu.core_type = #tpu.core_type<tc>, window_params = [{pipeline_mode = #tpu.pipeline_mode<synchronous>, transform_indices = @transform_0, window_bounds = array<i64: 24, 192>}, {pipeline_mode = #tpu.pipeline_mode<synchronous>, transform_indices = @transform_1, window_bounds = array<i64: 4, 24>}, {pipeline_mode = #tpu.pipeline_mode<synchronous>, transform_indices = @transform_2, window_bounds = array<i64: 4, 192>}]} {
    %c0 = arith.constant 0 : index
    %c0_0 = arith.constant 0 : index
    %0 = vector.load %arg2[%c0, %c0_0] : memref<4x24xbf16, #tpu.memory_space<vmem>>, vector<4x24xbf16>
    %c0_1 = arith.constant 0 : index
    %c0_2 = arith.constant 0 : index
    %1 = vector.load %arg1[%c0_1, %c0_2] : memref<24x192xbf16, #tpu.memory_space<vmem>>, vector<24x192xbf16>
    %cst = arith.constant dense<0.000000e+00> : vector<4x192xf32>
    %2 = tpu.matmul %0, %1, %cst {dimension_numbers = #tpu.dot_dimension_numbers<[1], [0], [0], [1], [0, 0, 1, 1], [], []>} : vector<4x24xbf16>, vector<24x192xbf16>, vector<4x192xf32> -> vector<4x192xf32>
    %3 = arith.truncf %2 : vector<4x192xf32> to vector<4x192xbf16>
    %c0_3 = arith.constant 0 : index
    %c0_4 = arith.constant 0 : index
    %4 = vector.load %arg3[%c0_3, %c0_4] : memref<4x192xbf16, #tpu.memory_space<vmem>>, vector<4x192xbf16>
    tpu.vector_store %arg3[%c0_3, %c0_4], %3 {strides = array<i32>} : memref<4x192xbf16, #tpu.memory_space<vmem>>, vector<4x192xbf16>,
    return
  }
  func.func @transform_0(%arg0: i32) -> (i32, i32) {
    %c0_i32 = arith.constant 0 : i32
    %c0_i32_0 = arith.constant 0 : i32
    %c0_i32_1 = arith.constant 0 : i32
    return %c0_i32, %c0_i32_0 : i32, i32
  }
  func.func @transform_1(%arg0: i32) -> (i32, i32) {
    %c0_i32 = arith.constant 0 : i32
    %c0_i32_0 = arith.constant 0 : i32
    %c0_i32_1 = arith.constant 0 : i32
    return %c0_i32, %c0_i32_0 : i32, i32
  }
  func.func @transform_2(%arg0: i32) -> (i32, i32) {
    %c0_i32 = arith.constant 0 : i32
    %c0_i32_0 = arith.constant 0 : i32
    %c0_i32_1 = arith.constant 0 : i32
    return %c0_i32, %c0_i32_0 : i32, i32
  }
}

module attributes {stable_mosaic.version = 11 : i64} {
  func.func @_conv_kernel(%arg0: i32, %arg1: memref<12x192xbf16, #tpu.memory_space<vmem>>, %arg2: memref<4x12xbf16, #tpu.memory_space<vmem>>, %arg3: memref<4x1xf32, #tpu.memory_space<vmem>>, %arg4: memref<12x4xbf16, #tpu.memory_space<vmem>>, %arg5: memref<12x192xbf16, #tpu.memory_space<vmem>>) attributes {dimension_semantics = [#tpu.dimension_semantics<arbitrary>], iteration_bounds = array<i64: 1>, scalar_prefetch = 0 : i64, scratch_operands = 0 : i64, tpu.core_type = #tpu.core_type<tc>, window_params = [{pipeline_mode = #tpu.pipeline_mode<synchronous>, transform_indices = @transform_0, window_bounds = array<i64: 12, 192>}, {pipeline_mode = #tpu.pipeline_mode<synchronous>, transform_indices = @transform_1, window_bounds = array<i64: 4, 12>}, {pipeline_mode = #tpu.pipeline_mode<synchronous>, transform_indices = @transform_2, window_bounds = array<i64: 4, 1>}, {pipeline_mode = #tpu.pipeline_mode<synchronous>, transform_indices = @transform_3, window_bounds = array<i64: 12, 4>}, {pipeline_mode = #tpu.pipeline_mode<synchronous>, transform_indices = @transform_4, window_bounds = array<i64: 12, 192>}]} {
    %c0 = arith.constant 0 : index
    %c0_0 = arith.constant 0 : index
    %0 = vector.load %arg2[%c0, %c0_0] : memref<4x12xbf16, #tpu.memory_space<vmem>>, vector<4x12xbf16>
    %c0_1 = arith.constant 0 : index
    %c0_2 = arith.constant 0 : index
    %1 = vector.load %arg1[%c0_1, %c0_2] : memref<12x192xbf16, #tpu.memory_space<vmem>>, vector<12x192xbf16>
    %cst = arith.constant dense<0.000000e+00> : vector<4x192xf32>
    %2 = tpu.matmul %0, %1, %cst {dimension_numbers = #tpu.dot_dimension_numbers<[1], [0], [0], [1], [0, 0, 1, 1], [], []>} : vector<4x12xbf16>, vector<12x192xbf16>, vector<4x192xf32> -> vector<4x192xf32>
    %c0_3 = arith.constant 0 : index
    %c0_4 = arith.constant 0 : index
    %3 = vector.load %arg3[%c0_3, %c0_4] : memref<4x1xf32, #tpu.memory_space<vmem>>, vector<4x1xf32>
    %4 = vector.broadcast %3 : vector<4x1xf32> to vector<4x192xf32>
    %5 = arith.addf %2, %4 : vector<4x192xf32>
    %cst_5 = arith.constant 1.000000e-01 : f32
    %6 = vector.broadcast %cst_5 : f32 to vector<4x192xf32>
    %7 = arith.mulf %6, %5 : vector<4x192xf32>
    %8 = arith.maximumf %5, %7 : vector<4x192xf32>
    %c0_6 = arith.constant 0 : index
    %c0_7 = arith.constant 0 : index
    %9 = vector.load %arg4[%c0_6, %c0_7] : memref<12x4xbf16, #tpu.memory_space<vmem>>, vector<12x4xbf16>
    %10 = arith.truncf %8 : vector<4x192xf32> to vector<4x192xbf16>
    %cst_8 = arith.constant dense<0.000000e+00> : vector<12x192xf32>
    %11 = tpu.matmul %9, %10, %cst_8 {dimension_numbers = #tpu.dot_dimension_numbers<[1], [0], [0], [1], [0, 0, 1, 1], [], []>} : vector<12x4xbf16>, vector<4x192xbf16>, vector<12x192xf32> -> vector<12x192xf32>
    %cst_9 = arith.constant 1.000000e-01 : f32
    %12 = vector.broadcast %cst_9 : f32 to vector<12x192xf32>
    %13 = arith.mulf %12, %11 : vector<12x192xf32>
    %14 = arith.maximumf %11, %13 : vector<12x192xf32>
    %15 = arith.truncf %14 : vector<12x192xf32> to vector<12x192xbf16>
    %c0_10 = arith.constant 0 : index
    %c0_11 = arith.constant 0 : index
    %16 = vector.load %arg5[%c0_10, %c0_11] : memref<12x192xbf16, #tpu.memory_space<vmem>>, vector<12x192xbf16>
    tpu.vector_store %arg5[%c0_10, %c0_11], %15 {strides = array<i32>} : memref<12x192xbf16, #tpu.memory_space<vmem>>, vector<12x192xbf16>,
    return
  }
  func.func @transform_0(%arg0: i32) -> (i32, i32) {
    %c0_i32 = arith.constant 0 : i32
    %c0_i32_0 = arith.constant 0 : i32
    %c0_i32_1 = arith.constant 0 : i32
    return %c0_i32, %c0_i32_0 : i32, i32
  }
  func.func @transform_1(%arg0: i32) -> (i32, i32) {
    %c0_i32 = arith.constant 0 : i32
    %c0_i32_0 = arith.constant 0 : i32
    %c0_i32_1 = arith.constant 0 : i32
    return %c0_i32, %c0_i32_0 : i32, i32
  }
  func.func @transform_2(%arg0: i32) -> (i32, i32) {
    %c0_i32 = arith.constant 0 : i32
    %c0_i32_0 = arith.constant 0 : i32
    %c0_i32_1 = arith.constant 0 : i32
    return %c0_i32, %c0_i32_0 : i32, i32
  }
  func.func @transform_3(%arg0: i32) -> (i32, i32) {
    %c0_i32 = arith.constant 0 : i32
    %c0_i32_0 = arith.constant 0 : i32
    %c0_i32_1 = arith.constant 0 : i32
    return %c0_i32, %c0_i32_0 : i32, i32
  }
  func.func @transform_4(%arg0: i32) -> (i32, i32) {
    %c0_i32 = arith.constant 0 : i32
    %c0_i32_0 = arith.constant 0 : i32
    %c0_i32_1 = arith.constant 0 : i32
    return %c0_i32, %c0_i32_0 : i32, i32
  }
}

module attributes {stable_mosaic.version = 11 : i64} {
  func.func @_conv_kernel(%arg0: i32, %arg1: memref<72x288xbf16, #tpu.memory_space<vmem>>, %arg2: memref<8x72xbf16, #tpu.memory_space<vmem>>, %arg3: memref<8x288xf32, #tpu.memory_space<vmem>>, %arg4: memref<8x288xf32, #tpu.memory_space<vmem>>) attributes {dimension_semantics = [#tpu.dimension_semantics<arbitrary>], iteration_bounds = array<i64: 1>, scalar_prefetch = 0 : i64, scratch_operands = 0 : i64, tpu.core_type = #tpu.core_type<tc>, window_params = [{pipeline_mode = #tpu.pipeline_mode<synchronous>, transform_indices = @transform_0, window_bounds = array<i64: 72, 288>}, {pipeline_mode = #tpu.pipeline_mode<synchronous>, transform_indices = @transform_1, window_bounds = array<i64: 8, 72>}, {pipeline_mode = #tpu.pipeline_mode<synchronous>, transform_indices = @transform_2, window_bounds = array<i64: 8, 288>}, {pipeline_mode = #tpu.pipeline_mode<synchronous>, transform_indices = @transform_3, window_bounds = array<i64: 8, 288>}]} {
    %c0 = arith.constant 0 : index
    %c0_0 = arith.constant 0 : index
    %0 = vector.load %arg2[%c0, %c0_0] : memref<8x72xbf16, #tpu.memory_space<vmem>>, vector<8x72xbf16>
    %c0_1 = arith.constant 0 : index
    %c0_2 = arith.constant 0 : index
    %1 = vector.load %arg1[%c0_1, %c0_2] : memref<72x288xbf16, #tpu.memory_space<vmem>>, vector<72x288xbf16>
    %cst = arith.constant dense<0.000000e+00> : vector<8x288xf32>
    %2 = tpu.matmul %0, %1, %cst {dimension_numbers = #tpu.dot_dimension_numbers<[1], [0], [0], [1], [0, 0, 1, 1], [], []>} : vector<8x72xbf16>, vector<72x288xbf16>, vector<8x288xf32> -> vector<8x288xf32>
    %c0_3 = arith.constant 0 : index
    %c0_4 = arith.constant 0 : index
    %3 = vector.load %arg3[%c0_3, %c0_4] : memref<8x288xf32, #tpu.memory_space<vmem>>, vector<8x288xf32>
    %4 = arith.addf %2, %3 : vector<8x288xf32>
    %c0_5 = arith.constant 0 : index
    %c0_6 = arith.constant 0 : index
    %5 = vector.load %arg4[%c0_5, %c0_6] : memref<8x288xf32, #tpu.memory_space<vmem>>, vector<8x288xf32>
    tpu.vector_store %arg4[%c0_5, %c0_6], %4 {strides = array<i32>} : memref<8x288xf32, #tpu.memory_space<vmem>>, vector<8x288xf32>,
    return
  }
  func.func @transform_0(%arg0: i32) -> (i32, i32) {
    %c0_i32 = arith.constant 0 : i32
    %c0_i32_0 = arith.constant 0 : i32
    %c0_i32_1 = arith.constant 0 : i32
    return %c0_i32, %c0_i32_0 : i32, i32
  }
  func.func @transform_1(%arg0: i32) -> (i32, i32) {
    %c0_i32 = arith.constant 0 : i32
    %c0_i32_0 = arith.constant 0 : i32
    %c0_i32_1 = arith.constant 0 : i32
    return %c0_i32, %c0_i32_0 : i32, i32
  }
  func.func @transform_2(%arg0: i32) -> (i32, i32) {
    %c0_i32 = arith.constant 0 : i32
    %c0_i32_0 = arith.constant 0 : i32
    %c0_i32_1 = arith.constant 0 : i32
    return %c0_i32, %c0_i32_0 : i32, i32
  }
  func.func @transform_3(%arg0: i32) -> (i32, i32) {
    %c0_i32 = arith.constant 0 : i32
    %c0_i32_0 = arith.constant 0 : i32
    %c0_i32_1 = arith.constant 0 : i32
    return %c0_i32, %c0_i32_0 : i32, i32
  }
}

module attributes {stable_mosaic.version = 11 : i64} {
  func.func @_eca_fuse_kernel(%arg0: i32, %arg1: memref<8x288xbf16, #tpu.memory_space<vmem>>, %arg2: memref<2x288xbf16, #tpu.memory_space<vmem>>, %arg3: memref<4x288xbf16, #tpu.memory_space<vmem>>, %arg4: memref<4x288xbf16, #tpu.memory_space<vmem>>, %arg5: memref<4x288xbf16, #tpu.memory_space<vmem>>, %arg6: memref<4x288xbf16, #tpu.memory_space<vmem>>, %arg7: memref<8x26xbf16, #tpu.memory_space<vmem>>, %arg8: memref<3xf32, #tpu.memory_space<smem>>, %arg9: memref<8x288xbf16, #tpu.memory_space<vmem>>, %arg10: memref<28x2xf32, #tpu.memory_space<vmem>>) attributes {dimension_semantics = [#tpu.dimension_semantics<arbitrary>], iteration_bounds = array<i64: 1>, scalar_prefetch = 0 : i64, scratch_operands = 1 : i64, tpu.core_type = #tpu.core_type<tc>, window_params = [{pipeline_mode = #tpu.pipeline_mode<synchronous>, transform_indices = @transform_0, window_bounds = array<i64: 8, 288>}, {pipeline_mode = #tpu.pipeline_mode<synchronous>, transform_indices = @transform_1, window_bounds = array<i64: 2, 288>}, {pipeline_mode = #tpu.pipeline_mode<synchronous>, transform_indices = @transform_2, window_bounds = array<i64: 4, 288>}, {pipeline_mode = #tpu.pipeline_mode<synchronous>, transform_indices = @transform_3, window_bounds = array<i64: 4, 288>}, {pipeline_mode = #tpu.pipeline_mode<synchronous>, transform_indices = @transform_4, window_bounds = array<i64: 4, 288>}, {pipeline_mode = #tpu.pipeline_mode<synchronous>, transform_indices = @transform_5, window_bounds = array<i64: 4, 288>}, {pipeline_mode = #tpu.pipeline_mode<synchronous>, transform_indices = @transform_6, window_bounds = array<i64: 8, 26>}, {transform_indices = @transform_7, window_bounds = array<i64: 3>}, {pipeline_mode = #tpu.pipeline_mode<synchronous>, transform_indices = @transform_8, window_bounds = array<i64: 8, 288>}]} {
    %cst = arith.constant 0.000000e+00 : f32
    %0 = vector.broadcast %cst : f32 to vector<28x2xf32>
    %c0 = arith.constant 0 : index
    %c0_0 = arith.constant 0 : index
    %1 = vector.load %arg10[%c0, %c0_0] : memref<28x2xf32, #tpu.memory_space<vmem>>, vector<28x2xf32>
    tpu.vector_store %arg10[%c0, %c0_0], %0 {strides = array<i32>} : memref<28x2xf32, #tpu.memory_space<vmem>>, vector<28x2xf32>,
    %c0_1 = arith.constant 0 : index
    %c0_2 = arith.constant 0 : index
    %2 = vector.load %arg1[%c0_1, %c0_2] : memref<8x288xbf16, #tpu.memory_space<vmem>>, vector<8x144xbf16>
    %3 = arith.extf %2 : vector<8x144xbf16> to vector<8x144xf32>
    %cst_3 = arith.constant dense<0.000000e+00> : vector<8xf32>
    %4 = vector.multi_reduction <add>, %3, %cst_3 [1] : vector<8x144xf32> to vector<8xf32>
    %5 = vector.shape_cast %4 : vector<8xf32> to vector<8x1xf32>
    %cst_4 = arith.constant 0.0069444445 : f32
    %6 = vector.broadcast %cst_4 : f32 to vector<8x1xf32>
    %7 = arith.mulf %5, %6 : vector<8x1xf32>
    %c1 = arith.constant 1 : index
    %c0_5 = arith.constant 0 : index
    %8 = vector.load %arg10[%c1, %c0_5] : memref<28x2xf32, #tpu.memory_space<vmem>>, vector<8x1xf32>
    tpu.vector_store %arg10[%c1, %c0_5], %7 {strides = array<i32>} : memref<28x2xf32, #tpu.memory_space<vmem>>, vector<8x1xf32>,
    %c0_6 = arith.constant 0 : index
    %c144 = arith.constant 144 : index
    %9 = vector.load %arg1[%c0_6, %c144] : memref<8x288xbf16, #tpu.memory_space<vmem>>, vector<8x144xbf16>
    %10 = arith.extf %9 : vector<8x144xbf16> to vector<8x144xf32>
    %cst_7 = arith.constant dense<0.000000e+00> : vector<8xf32>
    %11 = vector.multi_reduction <add>, %10, %cst_7 [1] : vector<8x144xf32> to vector<8xf32>
    %12 = vector.shape_cast %11 : vector<8xf32> to vector<8x1xf32>
    %cst_8 = arith.constant 0.0069444445 : f32
    %13 = vector.broadcast %cst_8 : f32 to vector<8x1xf32>
    %14 = arith.mulf %12, %13 : vector<8x1xf32>
    %c1_9 = arith.constant 1 : index
    %c1_10 = arith.constant 1 : index
    %15 = vector.load %arg10[%c1_9, %c1_10] : memref<28x2xf32, #tpu.memory_space<vmem>>, vector<8x1xf32>
    tpu.vector_store %arg10[%c1_9, %c1_10], %14 {strides = array<i32>} : memref<28x2xf32, #tpu.memory_space<vmem>>, vector<8x1xf32>,
    %c0_11 = arith.constant 0 : index
    %c0_12 = arith.constant 0 : index
    %16 = vector.load %arg2[%c0_11, %c0_12] : memref<2x288xbf16, #tpu.memory_space<vmem>>, vector<2x144xbf16>
    %17 = arith.extf %16 : vector<2x144xbf16> to vector<2x144xf32>
    %cst_13 = arith.constant dense<0.000000e+00> : vector<2xf32>
    %18 = vector.multi_reduction <add>, %17, %cst_13 [1] : vector<2x144xf32> to vector<2xf32>
    %19 = vector.shape_cast %18 : vector<2xf32> to vector<2x1xf32>
    %cst_14 = arith.constant 0.0069444445 : f32
    %20 = vector.broadcast %cst_14 : f32 to vector<2x1xf32>
    %21 = arith.mulf %19, %20 : vector<2x1xf32>
    %c9 = arith.constant 9 : index
    %c0_15 = arith.constant 0 : index
    %22 = vector.load %arg10[%c9, %c0_15] : memref<28x2xf32, #tpu.memory_space<vmem>>, vector<2x1xf32>
    tpu.vector_store %arg10[%c9, %c0_15], %21 {strides = array<i32>} : memref<28x2xf32, #tpu.memory_space<vmem>>, vector<2x1xf32>,
    %c0_16 = arith.constant 0 : index
    %c144_17 = arith.constant 144 : index
    %23 = vector.load %arg2[%c0_16, %c144_17] : memref<2x288xbf16, #tpu.memory_space<vmem>>, vector<2x144xbf16>
    %24 = arith.extf %23 : vector<2x144xbf16> to vector<2x144xf32>
    %cst_18 = arith.constant dense<0.000000e+00> : vector<2xf32>
    %25 = vector.multi_reduction <add>, %24, %cst_18 [1] : vector<2x144xf32> to vector<2xf32>
    %26 = vector.shape_cast %25 : vector<2xf32> to vector<2x1xf32>
    %cst_19 = arith.constant 0.0069444445 : f32
    %27 = vector.broadcast %cst_19 : f32 to vector<2x1xf32>
    %28 = arith.mulf %26, %27 : vector<2x1xf32>
    %c9_20 = arith.constant 9 : index
    %c1_21 = arith.constant 1 : index
    %29 = vector.load %arg10[%c9_20, %c1_21] : memref<28x2xf32, #tpu.memory_space<vmem>>, vector<2x1xf32>
    tpu.vector_store %arg10[%c9_20, %c1_21], %28 {strides = array<i32>} : memref<28x2xf32, #tpu.memory_space<vmem>>, vector<2x1xf32>,
    %c0_22 = arith.constant 0 : index
    %c0_23 = arith.constant 0 : index
    %30 = vector.load %arg3[%c0_22, %c0_23] : memref<4x288xbf16, #tpu.memory_space<vmem>>, vector<4x144xbf16>
    %31 = arith.extf %30 : vector<4x144xbf16> to vector<4x144xf32>
    %cst_24 = arith.constant dense<0.000000e+00> : vector<4xf32>
    %32 = vector.multi_reduction <add>, %31, %cst_24 [1] : vector<4x144xf32> to vector<4xf32>
    %33 = vector.shape_cast %32 : vector<4xf32> to vector<4x1xf32>
    %cst_25 = arith.constant 0.0069444445 : f32
    %34 = vector.broadcast %cst_25 : f32 to vector<4x1xf32>
    %35 = arith.mulf %33, %34 : vector<4x1xf32>
    %c11 = arith.constant 11 : index
    %c0_26 = arith.constant 0 : index
    %36 = vector.load %arg10[%c11, %c0_26] : memref<28x2xf32, #tpu.memory_space<vmem>>, vector<4x1xf32>
    tpu.vector_store %arg10[%c11, %c0_26], %35 {strides = array<i32>} : memref<28x2xf32, #tpu.memory_space<vmem>>, vector<4x1xf32>,
    %c0_27 = arith.constant 0 : index
    %c144_28 = arith.constant 144 : index
    %37 = vector.load %arg3[%c0_27, %c144_28] : memref<4x288xbf16, #tpu.memory_space<vmem>>, vector<4x144xbf16>
    %38 = arith.extf %37 : vector<4x144xbf16> to vector<4x144xf32>
    %cst_29 = arith.constant dense<0.000000e+00> : vector<4xf32>
    %39 = vector.multi_reduction <add>, %38, %cst_29 [1] : vector<4x144xf32> to vector<4xf32>
    %40 = vector.shape_cast %39 : vector<4xf32> to vector<4x1xf32>
    %cst_30 = arith.constant 0.0069444445 : f32
    %41 = vector.broadcast %cst_30 : f32 to vector<4x1xf32>
    %42 = arith.mulf %40, %41 : vector<4x1xf32>
    %c11_31 = arith.constant 11 : index
    %c1_32 = arith.constant 1 : index
    %43 = vector.load %arg10[%c11_31, %c1_32] : memref<28x2xf32, #tpu.memory_space<vmem>>, vector<4x1xf32>
    tpu.vector_store %arg10[%c11_31, %c1_32], %42 {strides = array<i32>} : memref<28x2xf32, #tpu.memory_space<vmem>>, vector<4x1xf32>,
    %c0_33 = arith.constant 0 : index
    %c0_34 = arith.constant 0 : index
    %44 = vector.load %arg4[%c0_33, %c0_34] : memref<4x288xbf16, #tpu.memory_space<vmem>>, vector<4x144xbf16>
    %45 = arith.extf %44 : vector<4x144xbf16> to vector<4x144xf32>
    %cst_35 = arith.constant dense<0.000000e+00> : vector<4xf32>
    %46 = vector.multi_reduction <add>, %45, %cst_35 [1] : vector<4x144xf32> to vector<4xf32>
    %47 = vector.shape_cast %46 : vector<4xf32> to vector<4x1xf32>
    %cst_36 = arith.constant 0.0069444445 : f32
    %48 = vector.broadcast %cst_36 : f32 to vector<4x1xf32>
    %49 = arith.mulf %47, %48 : vector<4x1xf32>
    %c15 = arith.constant 15 : index
    %c0_37 = arith.constant 0 : index
    %50 = vector.load %arg10[%c15, %c0_37] : memref<28x2xf32, #tpu.memory_space<vmem>>, vector<4x1xf32>
    tpu.vector_store %arg10[%c15, %c0_37], %49 {strides = array<i32>} : memref<28x2xf32, #tpu.memory_space<vmem>>, vector<4x1xf32>,
    %c0_38 = arith.constant 0 : index
    %c144_39 = arith.constant 144 : index
    %51 = vector.load %arg4[%c0_38, %c144_39] : memref<4x288xbf16, #tpu.memory_space<vmem>>, vector<4x144xbf16>
    %52 = arith.extf %51 : vector<4x144xbf16> to vector<4x144xf32>
    %cst_40 = arith.constant dense<0.000000e+00> : vector<4xf32>
    %53 = vector.multi_reduction <add>, %52, %cst_40 [1] : vector<4x144xf32> to vector<4xf32>
    %54 = vector.shape_cast %53 : vector<4xf32> to vector<4x1xf32>
    %cst_41 = arith.constant 0.0069444445 : f32
    %55 = vector.broadcast %cst_41 : f32 to vector<4x1xf32>
    %56 = arith.mulf %54, %55 : vector<4x1xf32>
    %c15_42 = arith.constant 15 : index
    %c1_43 = arith.constant 1 : index
    %57 = vector.load %arg10[%c15_42, %c1_43] : memref<28x2xf32, #tpu.memory_space<vmem>>, vector<4x1xf32>
    tpu.vector_store %arg10[%c15_42, %c1_43], %56 {strides = array<i32>} : memref<28x2xf32, #tpu.memory_space<vmem>>, vector<4x1xf32>,
    %c0_44 = arith.constant 0 : index
    %c0_45 = arith.constant 0 : index
    %58 = vector.load %arg5[%c0_44, %c0_45] : memref<4x288xbf16, #tpu.memory_space<vmem>>, vector<4x144xbf16>
    %59 = arith.extf %58 : vector<4x144xbf16> to vector<4x144xf32>
    %cst_46 = arith.constant dense<0.000000e+00> : vector<4xf32>
    %60 = vector.multi_reduction <add>, %59, %cst_46 [1] : vector<4x144xf32> to vector<4xf32>
    %61 = vector.shape_cast %60 : vector<4xf32> to vector<4x1xf32>
    %cst_47 = arith.constant 0.0069444445 : f32
    %62 = vector.broadcast %cst_47 : f32 to vector<4x1xf32>
    %63 = arith.mulf %61, %62 : vector<4x1xf32>
    %c19 = arith.constant 19 : index
    %c0_48 = arith.constant 0 : index
    %64 = vector.load %arg10[%c19, %c0_48] : memref<28x2xf32, #tpu.memory_space<vmem>>, vector<4x1xf32>
    tpu.vector_store %arg10[%c19, %c0_48], %63 {strides = array<i32>} : memref<28x2xf32, #tpu.memory_space<vmem>>, vector<4x1xf32>,
    %c0_49 = arith.constant 0 : index
    %c144_50 = arith.constant 144 : index
    %65 = vector.load %arg5[%c0_49, %c144_50] : memref<4x288xbf16, #tpu.memory_space<vmem>>, vector<4x144xbf16>
    %66 = arith.extf %65 : vector<4x144xbf16> to vector<4x144xf32>
    %cst_51 = arith.constant dense<0.000000e+00> : vector<4xf32>
    %67 = vector.multi_reduction <add>, %66, %cst_51 [1] : vector<4x144xf32> to vector<4xf32>
    %68 = vector.shape_cast %67 : vector<4xf32> to vector<4x1xf32>
    %cst_52 = arith.constant 0.0069444445 : f32
    %69 = vector.broadcast %cst_52 : f32 to vector<4x1xf32>
    %70 = arith.mulf %68, %69 : vector<4x1xf32>
    %c19_53 = arith.constant 19 : index
    %c1_54 = arith.constant 1 : index
    %71 = vector.load %arg10[%c19_53, %c1_54] : memref<28x2xf32, #tpu.memory_space<vmem>>, vector<4x1xf32>
    tpu.vector_store %arg10[%c19_53, %c1_54], %70 {strides = array<i32>} : memref<28x2xf32, #tpu.memory_space<vmem>>, vector<4x1xf32>,
    %c0_55 = arith.constant 0 : index
    %c0_56 = arith.constant 0 : index
    %72 = vector.load %arg6[%c0_55, %c0_56] : memref<4x288xbf16, #tpu.memory_space<vmem>>, vector<4x144xbf16>
    %73 = arith.extf %72 : vector<4x144xbf16> to vector<4x144xf32>
    %cst_57 = arith.constant dense<0.000000e+00> : vector<4xf32>
    %74 = vector.multi_reduction <add>, %73, %cst_57 [1] : vector<4x144xf32> to vector<4xf32>
    %75 = vector.shape_cast %74 : vector<4xf32> to vector<4x1xf32>
    %cst_58 = arith.constant 0.0069444445 : f32
    %76 = vector.broadcast %cst_58 : f32 to vector<4x1xf32>
    %77 = arith.mulf %75, %76 : vector<4x1xf32>
    %c23 = arith.constant 23 : index
    %c0_59 = arith.constant 0 : index
    %78 = vector.load %arg10[%c23, %c0_59] : memref<28x2xf32, #tpu.memory_space<vmem>>, vector<4x1xf32>
    tpu.vector_store %arg10[%c23, %c0_59], %77 {strides = array<i32>} : memref<28x2xf32, #tpu.memory_space<vmem>>, vector<4x1xf32>,
    %c0_60 = arith.constant 0 : index
    %c144_61 = arith.constant 144 : index
    %79 = vector.load %arg6[%c0_60, %c144_61] : memref<4x288xbf16, #tpu.memory_space<vmem>>, vector<4x144xbf16>
    %80 = arith.extf %79 : vector<4x144xbf16> to vector<4x144xf32>
    %cst_62 = arith.constant dense<0.000000e+00> : vector<4xf32>
    %81 = vector.multi_reduction <add>, %80, %cst_62 [1] : vector<4x144xf32> to vector<4xf32>
    %82 = vector.shape_cast %81 : vector<4xf32> to vector<4x1xf32>
    %cst_63 = arith.constant 0.0069444445 : f32
    %83 = vector.broadcast %cst_63 : f32 to vector<4x1xf32>
    %84 = arith.mulf %82, %83 : vector<4x1xf32>
    %c23_64 = arith.constant 23 : index
    %c1_65 = arith.constant 1 : index
    %85 = vector.load %arg10[%c23_64, %c1_65] : memref<28x2xf32, #tpu.memory_space<vmem>>, vector<4x1xf32>
    tpu.vector_store %arg10[%c23_64, %c1_65], %84 {strides = array<i32>} : memref<28x2xf32, #tpu.memory_space<vmem>>, vector<4x1xf32>,
    %c0_66 = arith.constant 0 : index
    %86 = memref.load %arg8[%c0_66] : memref<3xf32, #tpu.memory_space<smem>>
    %c1_67 = arith.constant 1 : index
    %87 = memref.load %arg8[%c1_67] : memref<3xf32, #tpu.memory_space<smem>>
    %c2 = arith.constant 2 : index
    %88 = memref.load %arg8[%c2] : memref<3xf32, #tpu.memory_space<smem>>
    %c0_68 = arith.constant 0 : index
    %c0_69 = arith.constant 0 : index
    %89 = vector.load %arg10[%c0_68, %c0_69] : memref<28x2xf32, #tpu.memory_space<vmem>>, vector<26x2xf32>
    %90 = vector.broadcast %86 : f32 to vector<26x2xf32>
    %91 = arith.mulf %90, %89 : vector<26x2xf32>
    %c1_70 = arith.constant 1 : index
    %c0_71 = arith.constant 0 : index
    %92 = vector.load %arg10[%c1_70, %c0_71] : memref<28x2xf32, #tpu.memory_space<vmem>>, vector<26x2xf32>
    %93 = vector.broadcast %87 : f32 to vector<26x2xf32>
    %94 = arith.mulf %93, %92 : vector<26x2xf32>
    %95 = arith.addf %91, %94 : vector<26x2xf32>
    %c2_72 = arith.constant 2 : index
    %c0_73 = arith.constant 0 : index
    %96 = vector.load %arg10[%c2_72, %c0_73] : memref<28x2xf32, #tpu.memory_space<vmem>>, vector<26x2xf32>
    %97 = vector.broadcast %88 : f32 to vector<26x2xf32>
    %98 = arith.mulf %97, %96 : vector<26x2xf32>
    %99 = arith.addf %95, %98 : vector<26x2xf32>
    %100 = arith.negf %99 : vector<26x2xf32>
    %101 = math.exp %100 : vector<26x2xf32>
    %cst_74 = arith.constant 1.000000e+00 : f32
    %102 = vector.broadcast %cst_74 : f32 to vector<26x2xf32>
    %103 = arith.addf %102, %101 : vector<26x2xf32>
    %104 = arith.divf %102, %103 : vector<26x2xf32>
    %c0_75 = arith.constant 0 : index
    %c0_76 = arith.constant 0 : index
    %105 = vector.load %arg7[%c0_75, %c0_76] : memref<8x26xbf16, #tpu.memory_space<vmem>>, vector<8x26xbf16>
    %c0_77 = arith.constant 0 : index
    %c0_78 = arith.constant 0 : index
    %106 = vector.load %arg1[%c0_77, %c0_78] : memref<8x288xbf16, #tpu.memory_space<vmem>>, vector<8x144xbf16>
    %107 = arith.extf %106 : vector<8x144xbf16> to vector<8x144xf32>
    %108 = vector.extract_strided_slice %104 {offsets = [0, 0], sizes = [8, 1], strides = [1, 1]} : vector<26x2xf32> to vector<8x1xf32>
    %109 = vector.broadcast %108 : vector<8x1xf32> to vector<8x144xf32>
    %110 = arith.mulf %107, %109 : vector<8x144xf32>
    %111 = arith.truncf %110 : vector<8x144xf32> to vector<8x144xbf16>
    %112 = vector.extract_strided_slice %105 {offsets = [0, 0], sizes = [8, 8], strides = [1, 1]} : vector<8x26xbf16> to vector<8x8xbf16>
    %cst_79 = arith.constant dense<0.000000e+00> : vector<8x144xf32>
    %113 = tpu.matmul %112, %111, %cst_79 {dimension_numbers = #tpu.dot_dimension_numbers<[1], [0], [0], [1], [0, 0, 1, 1], [], []>} : vector<8x8xbf16>, vector<8x144xbf16>, vector<8x144xf32> -> vector<8x144xf32>
    %c0_80 = arith.constant 0 : index
    %c0_81 = arith.constant 0 : index
    %114 = vector.load %arg2[%c0_80, %c0_81] : memref<2x288xbf16, #tpu.memory_space<vmem>>, vector<2x144xbf16>
    %115 = arith.extf %114 : vector<2x144xbf16> to vector<2x144xf32>
    %116 = vector.extract_strided_slice %104 {offsets = [8, 0], sizes = [2, 1], strides = [1, 1]} : vector<26x2xf32> to vector<2x1xf32>
    %117 = vector.broadcast %116 : vector<2x1xf32> to vector<2x144xf32>
    %118 = arith.mulf %115, %117 : vector<2x144xf32>
    %119 = arith.truncf %118 : vector<2x144xf32> to vector<2x144xbf16>
    %120 = vector.extract_strided_slice %105 {offsets = [0, 8], sizes = [8, 2], strides = [1, 1]} : vector<8x26xbf16> to vector<8x2xbf16>
    %cst_82 = arith.constant dense<0.000000e+00> : vector<8x144xf32>
    %121 = tpu.matmul %120, %119, %cst_82 {dimension_numbers = #tpu.dot_dimension_numbers<[1], [0], [0], [1], [0, 0, 1, 1], [], []>} : vector<8x2xbf16>, vector<2x144xbf16>, vector<8x144xf32> -> vector<8x144xf32>
    %122 = arith.addf %113, %121 : vector<8x144xf32>
    %c0_83 = arith.constant 0 : index
    %c0_84 = arith.constant 0 : index
    %123 = vector.load %arg3[%c0_83, %c0_84] : memref<4x288xbf16, #tpu.memory_space<vmem>>, vector<4x144xbf16>
    %124 = arith.extf %123 : vector<4x144xbf16> to vector<4x144xf32>
    %125 = vector.extract_strided_slice %104 {offsets = [10, 0], sizes = [4, 1], strides = [1, 1]} : vector<26x2xf32> to vector<4x1xf32>
    %126 = vector.broadcast %125 : vector<4x1xf32> to vector<4x144xf32>
    %127 = arith.mulf %124, %126 : vector<4x144xf32>
    %128 = arith.truncf %127 : vector<4x144xf32> to vector<4x144xbf16>
    %129 = vector.extract_strided_slice %105 {offsets = [0, 10], sizes = [8, 4], strides = [1, 1]} : vector<8x26xbf16> to vector<8x4xbf16>
    %cst_85 = arith.constant dense<0.000000e+00> : vector<8x144xf32>
    %130 = tpu.matmul %129, %128, %cst_85 {dimension_numbers = #tpu.dot_dimension_numbers<[1], [0], [0], [1], [0, 0, 1, 1], [], []>} : vector<8x4xbf16>, vector<4x144xbf16>, vector<8x144xf32> -> vector<8x144xf32>
    %131 = arith.addf %122, %130 : vector<8x144xf32>
    %c0_86 = arith.constant 0 : index
    %c0_87 = arith.constant 0 : index
    %132 = vector.load %arg4[%c0_86, %c0_87] : memref<4x288xbf16, #tpu.memory_space<vmem>>, vector<4x144xbf16>
    %133 = arith.extf %132 : vector<4x144xbf16> to vector<4x144xf32>
    %134 = vector.extract_strided_slice %104 {offsets = [14, 0], sizes = [4, 1], strides = [1, 1]} : vector<26x2xf32> to vector<4x1xf32>
    %135 = vector.broadcast %134 : vector<4x1xf32> to vector<4x144xf32>
    %136 = arith.mulf %133, %135 : vector<4x144xf32>
    %137 = arith.truncf %136 : vector<4x144xf32> to vector<4x144xbf16>
    %138 = vector.extract_strided_slice %105 {offsets = [0, 14], sizes = [8, 4], strides = [1, 1]} : vector<8x26xbf16> to vector<8x4xbf16>
    %cst_88 = arith.constant dense<0.000000e+00> : vector<8x144xf32>
    %139 = tpu.matmul %138, %137, %cst_88 {dimension_numbers = #tpu.dot_dimension_numbers<[1], [0], [0], [1], [0, 0, 1, 1], [], []>} : vector<8x4xbf16>, vector<4x144xbf16>, vector<8x144xf32> -> vector<8x144xf32>
    %140 = arith.addf %131, %139 : vector<8x144xf32>
    %c0_89 = arith.constant 0 : index
    %c0_90 = arith.constant 0 : index
    %141 = vector.load %arg5[%c0_89, %c0_90] : memref<4x288xbf16, #tpu.memory_space<vmem>>, vector<4x144xbf16>
    %142 = arith.extf %141 : vector<4x144xbf16> to vector<4x144xf32>
    %143 = vector.extract_strided_slice %104 {offsets = [18, 0], sizes = [4, 1], strides = [1, 1]} : vector<26x2xf32> to vector<4x1xf32>
    %144 = vector.broadcast %143 : vector<4x1xf32> to vector<4x144xf32>
    %145 = arith.mulf %142, %144 : vector<4x144xf32>
    %146 = arith.truncf %145 : vector<4x144xf32> to vector<4x144xbf16>
    %147 = vector.extract_strided_slice %105 {offsets = [0, 18], sizes = [8, 4], strides = [1, 1]} : vector<8x26xbf16> to vector<8x4xbf16>
    %cst_91 = arith.constant dense<0.000000e+00> : vector<8x144xf32>
    %148 = tpu.matmul %147, %146, %cst_91 {dimension_numbers = #tpu.dot_dimension_numbers<[1], [0], [0], [1], [0, 0, 1, 1], [], []>} : vector<8x4xbf16>, vector<4x144xbf16>, vector<8x144xf32> -> vector<8x144xf32>
    %149 = arith.addf %140, %148 : vector<8x144xf32>
    %c0_92 = arith.constant 0 : index
    %c0_93 = arith.constant 0 : index
    %150 = vector.load %arg6[%c0_92, %c0_93] : memref<4x288xbf16, #tpu.memory_space<vmem>>, vector<4x144xbf16>
    %151 = arith.extf %150 : vector<4x144xbf16> to vector<4x144xf32>
    %152 = vector.extract_strided_slice %104 {offsets = [22, 0], sizes = [4, 1], strides = [1, 1]} : vector<26x2xf32> to vector<4x1xf32>
    %153 = vector.broadcast %152 : vector<4x1xf32> to vector<4x144xf32>
    %154 = arith.mulf %151, %153 : vector<4x144xf32>
    %155 = arith.truncf %154 : vector<4x144xf32> to vector<4x144xbf16>
    %156 = vector.extract_strided_slice %105 {offsets = [0, 22], sizes = [8, 4], strides = [1, 1]} : vector<8x26xbf16> to vector<8x4xbf16>
    %cst_94 = arith.constant dense<0.000000e+00> : vector<8x144xf32>
    %157 = tpu.matmul %156, %155, %cst_94 {dimension_numbers = #tpu.dot_dimension_numbers<[1], [0], [0], [1], [0, 0, 1, 1], [], []>} : vector<8x4xbf16>, vector<4x144xbf16>, vector<8x144xf32> -> vector<8x144xf32>
    %158 = arith.addf %149, %157 : vector<8x144xf32>
    %cst_95 = arith.constant 1.000000e-01 : f32
    %159 = vector.broadcast %cst_95 : f32 to vector<8x144xf32>
    %160 = arith.mulf %159, %158 : vector<8x144xf32>
    %161 = arith.maximumf %158, %160 : vector<8x144xf32>
    %162 = arith.truncf %161 : vector<8x144xf32> to vector<8x144xbf16>
    %c0_96 = arith.constant 0 : index
    %c0_97 = arith.constant 0 : index
    %163 = vector.load %arg9[%c0_96, %c0_97] : memref<8x288xbf16, #tpu.memory_space<vmem>>, vector<8x144xbf16>
    tpu.vector_store %arg9[%c0_96, %c0_97], %162 {strides = array<i32>} : memref<8x288xbf16, #tpu.memory_space<vmem>>, vector<8x144xbf16>,
    %c0_98 = arith.constant 0 : index
    %c144_99 = arith.constant 144 : index
    %164 = vector.load %arg1[%c0_98, %c144_99] : memref<8x288xbf16, #tpu.memory_space<vmem>>, vector<8x144xbf16>
    %165 = arith.extf %164 : vector<8x144xbf16> to vector<8x144xf32>
    %166 = vector.extract_strided_slice %104 {offsets = [0, 1], sizes = [8, 1], strides = [1, 1]} : vector<26x2xf32> to vector<8x1xf32>
    %167 = vector.broadcast %166 : vector<8x1xf32> to vector<8x144xf32>
    %168 = arith.mulf %165, %167 : vector<8x144xf32>
    %169 = arith.truncf %168 : vector<8x144xf32> to vector<8x144xbf16>
    %170 = vector.extract_strided_slice %105 {offsets = [0, 0], sizes = [8, 8], strides = [1, 1]} : vector<8x26xbf16> to vector<8x8xbf16>
    %cst_100 = arith.constant dense<0.000000e+00> : vector<8x144xf32>
    %171 = tpu.matmul %170, %169, %cst_100 {dimension_numbers = #tpu.dot_dimension_numbers<[1], [0], [0], [1], [0, 0, 1, 1], [], []>} : vector<8x8xbf16>, vector<8x144xbf16>, vector<8x144xf32> -> vector<8x144xf32>
    %c0_101 = arith.constant 0 : index
    %c144_102 = arith.constant 144 : index
    %172 = vector.load %arg2[%c0_101, %c144_102] : memref<2x288xbf16, #tpu.memory_space<vmem>>, vector<2x144xbf16>
    %173 = arith.extf %172 : vector<2x144xbf16> to vector<2x144xf32>
    %174 = vector.extract_strided_slice %104 {offsets = [8, 1], sizes = [2, 1], strides = [1, 1]} : vector<26x2xf32> to vector<2x1xf32>
    %175 = vector.broadcast %174 : vector<2x1xf32> to vector<2x144xf32>
    %176 = arith.mulf %173, %175 : vector<2x144xf32>
    %177 = arith.truncf %176 : vector<2x144xf32> to vector<2x144xbf16>
    %178 = vector.extract_strided_slice %105 {offsets = [0, 8], sizes = [8, 2], strides = [1, 1]} : vector<8x26xbf16> to vector<8x2xbf16>
    %cst_103 = arith.constant dense<0.000000e+00> : vector<8x144xf32>
    %179 = tpu.matmul %178, %177, %cst_103 {dimension_numbers = #tpu.dot_dimension_numbers<[1], [0], [0], [1], [0, 0, 1, 1], [], []>} : vector<8x2xbf16>, vector<2x144xbf16>, vector<8x144xf32> -> vector<8x144xf32>
    %180 = arith.addf %171, %179 : vector<8x144xf32>
    %c0_104 = arith.constant 0 : index
    %c144_105 = arith.constant 144 : index
    %181 = vector.load %arg3[%c0_104, %c144_105] : memref<4x288xbf16, #tpu.memory_space<vmem>>, vector<4x144xbf16>
    %182 = arith.extf %181 : vector<4x144xbf16> to vector<4x144xf32>
    %183 = vector.extract_strided_slice %104 {offsets = [10, 1], sizes = [4, 1], strides = [1, 1]} : vector<26x2xf32> to vector<4x1xf32>
    %184 = vector.broadcast %183 : vector<4x1xf32> to vector<4x144xf32>
    %185 = arith.mulf %182, %184 : vector<4x144xf32>
    %186 = arith.truncf %185 : vector<4x144xf32> to vector<4x144xbf16>
    %187 = vector.extract_strided_slice %105 {offsets = [0, 10], sizes = [8, 4], strides = [1, 1]} : vector<8x26xbf16> to vector<8x4xbf16>
    %cst_106 = arith.constant dense<0.000000e+00> : vector<8x144xf32>
    %188 = tpu.matmul %187, %186, %cst_106 {dimension_numbers = #tpu.dot_dimension_numbers<[1], [0], [0], [1], [0, 0, 1, 1], [], []>} : vector<8x4xbf16>, vector<4x144xbf16>, vector<8x144xf32> -> vector<8x144xf32>
    %189 = arith.addf %180, %188 : vector<8x144xf32>
    %c0_107 = arith.constant 0 : index
    %c144_108 = arith.constant 144 : index
    %190 = vector.load %arg4[%c0_107, %c144_108] : memref<4x288xbf16, #tpu.memory_space<vmem>>, vector<4x144xbf16>
    %191 = arith.extf %190 : vector<4x144xbf16> to vector<4x144xf32>
    %192 = vector.extract_strided_slice %104 {offsets = [14, 1], sizes = [4, 1], strides = [1, 1]} : vector<26x2xf32> to vector<4x1xf32>
    %193 = vector.broadcast %192 : vector<4x1xf32> to vector<4x144xf32>
    %194 = arith.mulf %191, %193 : vector<4x144xf32>
    %195 = arith.truncf %194 : vector<4x144xf32> to vector<4x144xbf16>
    %196 = vector.extract_strided_slice %105 {offsets = [0, 14], sizes = [8, 4], strides = [1, 1]} : vector<8x26xbf16> to vector<8x4xbf16>
    %cst_109 = arith.constant dense<0.000000e+00> : vector<8x144xf32>
    %197 = tpu.matmul %196, %195, %cst_109 {dimension_numbers = #tpu.dot_dimension_numbers<[1], [0], [0], [1], [0, 0, 1, 1], [], []>} : vector<8x4xbf16>, vector<4x144xbf16>, vector<8x144xf32> -> vector<8x144xf32>
    %198 = arith.addf %189, %197 : vector<8x144xf32>
    %c0_110 = arith.constant 0 : index
    %c144_111 = arith.constant 144 : index
    %199 = vector.load %arg5[%c0_110, %c144_111] : memref<4x288xbf16, #tpu.memory_space<vmem>>, vector<4x144xbf16>
    %200 = arith.extf %199 : vector<4x144xbf16> to vector<4x144xf32>
    %201 = vector.extract_strided_slice %104 {offsets = [18, 1], sizes = [4, 1], strides = [1, 1]} : vector<26x2xf32> to vector<4x1xf32>
    %202 = vector.broadcast %201 : vector<4x1xf32> to vector<4x144xf32>
    %203 = arith.mulf %200, %202 : vector<4x144xf32>
    %204 = arith.truncf %203 : vector<4x144xf32> to vector<4x144xbf16>
    %205 = vector.extract_strided_slice %105 {offsets = [0, 18], sizes = [8, 4], strides = [1, 1]} : vector<8x26xbf16> to vector<8x4xbf16>
    %cst_112 = arith.constant dense<0.000000e+00> : vector<8x144xf32>
    %206 = tpu.matmul %205, %204, %cst_112 {dimension_numbers = #tpu.dot_dimension_numbers<[1], [0], [0], [1], [0, 0, 1, 1], [], []>} : vector<8x4xbf16>, vector<4x144xbf16>, vector<8x144xf32> -> vector<8x144xf32>
    %207 = arith.addf %198, %206 : vector<8x144xf32>
    %c0_113 = arith.constant 0 : index
    %c144_114 = arith.constant 144 : index
    %208 = vector.load %arg6[%c0_113, %c144_114] : memref<4x288xbf16, #tpu.memory_space<vmem>>, vector<4x144xbf16>
    %209 = arith.extf %208 : vector<4x144xbf16> to vector<4x144xf32>
    %210 = vector.extract_strided_slice %104 {offsets = [22, 1], sizes = [4, 1], strides = [1, 1]} : vector<26x2xf32> to vector<4x1xf32>
    %211 = vector.broadcast %210 : vector<4x1xf32> to vector<4x144xf32>
    %212 = arith.mulf %209, %211 : vector<4x144xf32>
    %213 = arith.truncf %212 : vector<4x144xf32> to vector<4x144xbf16>
    %214 = vector.extract_strided_slice %105 {offsets = [0, 22], sizes = [8, 4], strides = [1, 1]} : vector<8x26xbf16> to vector<8x4xbf16>
    %cst_115 = arith.constant dense<0.000000e+00> : vector<8x144xf32>
    %215 = tpu.matmul %214, %213, %cst_115 {dimension_numbers = #tpu.dot_dimension_numbers<[1], [0], [0], [1], [0, 0, 1, 1], [], []>} : vector<8x4xbf16>, vector<4x144xbf16>, vector<8x144xf32> -> vector<8x144xf32>
    %216 = arith.addf %207, %215 : vector<8x144xf32>
    %cst_116 = arith.constant 1.000000e-01 : f32
    %217 = vector.broadcast %cst_116 : f32 to vector<8x144xf32>
    %218 = arith.mulf %217, %216 : vector<8x144xf32>
    %219 = arith.maximumf %216, %218 : vector<8x144xf32>
    %220 = arith.truncf %219 : vector<8x144xf32> to vector<8x144xbf16>
    %c0_117 = arith.constant 0 : index
    %c144_118 = arith.constant 144 : index
    %221 = vector.load %arg9[%c0_117, %c144_118] : memref<8x288xbf16, #tpu.memory_space<vmem>>, vector<8x144xbf16>
    tpu.vector_store %arg9[%c0_117, %c144_118], %220 {strides = array<i32>} : memref<8x288xbf16, #tpu.memory_space<vmem>>, vector<8x144xbf16>,
    return
  }
  func.func @transform_0(%arg0: i32) -> (i32, i32) {
    %c0_i32 = arith.constant 0 : i32
    %c0_i32_0 = arith.constant 0 : i32
    %c0_i32_1 = arith.constant 0 : i32
    return %c0_i32, %c0_i32_0 : i32, i32
  }
  func.func @transform_1(%arg0: i32) -> (i32, i32) {
    %c0_i32 = arith.constant 0 : i32
    %c0_i32_0 = arith.constant 0 : i32
    %c0_i32_1 = arith.constant 0 : i32
    return %c0_i32, %c0_i32_0 : i32, i32
  }
  func.func @transform_2(%arg0: i32) -> (i32, i32) {
    %c0_i32 = arith.constant 0 : i32
    %c0_i32_0 = arith.constant 0 : i32
    %c0_i32_1 = arith.constant 0 : i32
    return %c0_i32, %c0_i32_0 : i32, i32
  }
  func.func @transform_3(%arg0: i32) -> (i32, i32) {
    %c0_i32 = arith.constant 0 : i32
    %c0_i32_0 = arith.constant 0 : i32
    %c0_i32_1 = arith.constant 0 : i32
    return %c0_i32, %c0_i32_0 : i32, i32
  }
  func.func @transform_4(%arg0: i32) -> (i32, i32) {
    %c0_i32 = arith.constant 0 : i32
    %c0_i32_0 = arith.constant 0 : i32
    %c0_i32_1 = arith.constant 0 : i32
    return %c0_i32, %c0_i32_0 : i32, i32
  }
  func.func @transform_5(%arg0: i32) -> (i32, i32) {
    %c0_i32 = arith.constant 0 : i32
    %c0_i32_0 = arith.constant 0 : i32
    %c0_i32_1 = arith.constant 0 : i32
    return %c0_i32, %c0_i32_0 : i32, i32
  }
  func.func @transform_6(%arg0: i32) -> (i32, i32) {
    %c0_i32 = arith.constant 0 : i32
    %c0_i32_0 = arith.constant 0 : i32
    %c0_i32_1 = arith.constant 0 : i32
    return %c0_i32, %c0_i32_0 : i32, i32
  }
  func.func @transform_7(%arg0: i32) -> i32 {
    %c0_i32 = arith.constant 0 : i32
    %c0_i32_0 = arith.constant 0 : i32
    return %c0_i32 : i32
  }
  func.func @transform_8(%arg0: i32) -> (i32, i32) {
    %c0_i32 = arith.constant 0 : i32
    %c0_i32_0 = arith.constant 0 : i32
    %c0_i32_1 = arith.constant 0 : i32
    return %c0_i32, %c0_i32_0 : i32, i32
  }
}

</mosaic_0001>

<llo_original>
// kernel: disentg_forward_pallas.8
$region0: #{disentg_forward_pallas.8}
  #allocation0 [shape = 'u32[]', space=smem, size = 0x4, offset = 0x4, fixed_abs, tag = 'smem constant byte address 0x4 - core index']
  #allocation1 [shape = 'u32[144,128]{1,0:T(1,128)}', space=vmem, size = 0x12000, scoped, tag = 'internal scratch']
  %s0 = inlined_call_operand.vmem [shape: bf16[72,288], index: 0, kind: input, shape index: {}]
  %s1 = inlined_call_operand.vmem [shape: bf16[8,72], index: 1, kind: input, shape index: {}]
  %s2 = inlined_call_operand.vmem [shape: bf16[8,288], index: 2, kind: output, shape index: {}]
  %s3 = sld [smem:[#allocation0]]
  $region18: #{disentg_forward_pallas.8} parent=0
    _
  %s5 = ssub.s32 1, %s3
  %s6 = scalar_select 0, %s5, %s3
  // Predicated region
  $region2: #{disentg_forward_pallas.8} parent=0 // pred_check
    _
  $region3: #{disentg_forward_pallas.8} parent=0 // pred_check_branch
    %8 = sbr.rel (0) target = $region5
  $region4: #{disentg_forward_pallas.8} parent=0 // pred_region
    _
  $region5: #{disentg_forward_pallas.8} parent=0 // pred_fallthru
    _
  // Predicated region
  $region6: #{disentg_forward_pallas.8} parent=0 // pred_check
    _
  $region7: #{disentg_forward_pallas.8} parent=0 // pred_check_branch
    %10 = sbr.rel (0) target = $region9
  $region8: #{disentg_forward_pallas.8} parent=0 // pred_region
    _
  $region9: #{disentg_forward_pallas.8} parent=0 // pred_fallthru
    _
  %v12 = vld [vmem:[%s1] sm:$0xf]
  %v13 = vld [vmem:[%s0] sm:$0xff]
  %v14 = vld [vmem:[%s0 + $0x8] sm:$0xf]
  %v15 = vld [vmem:[%s0 + $0xc] sm:$0xff]
  %v16 = vld [vmem:[%s0 + $0x14] sm:$0xf]
  %v17 = vld [vmem:[%s0 + $0x18] sm:$0xff]
  %v18 = vld [vmem:[%s0 + $0x20] sm:$0xf]
  %v19 = vld [vmem:[%s0 + $0x24] sm:$0xff]
  %v20 = vld [vmem:[%s0 + $0x2c] sm:$0xf]
  %v21 = vld [vmem:[%s0 + $0x30] sm:$0xff]
  %v22 = vld [vmem:[%s0 + $0x38] sm:$0xf]
  %v23 = vld [vmem:[%s0 + $0x3c] sm:$0xff]
  %v24 = vld [vmem:[%s0 + $0x44] sm:$0xf]
  %v25 = vld [vmem:[%s0 + $0x48] sm:$0xff]
  %v26 = vld [vmem:[%s0 + $0x50] sm:$0xf]
  %v27 = vld [vmem:[%s0 + $0x54] sm:$0xff]
  %v28 = vld [vmem:[%s0 + $0x5c] sm:$0xf]
  %v29 = vld [vmem:[%s0 + $0x60] sm:$0xff]
  %v30 = vld [vmem:[%s0 + $0x68] sm:$0xf]
  %v49 = vunpack.c.l.b16 %v13
  %v50 = vunpack.c.h.b16 %v13
  %v51 = vunpack.c.l.b16 %v14
  %v52 = vunpack.c.l.b16 %v15
  %v53 = vunpack.c.h.b16 %v15
  %v54 = vunpack.c.l.b16 %v16
  %v55 = vunpack.c.l.b16 %v17
  %v56 = vunpack.c.h.b16 %v17
  %v57 = vunpack.c.l.b16 %v18
  %v58 = vunpack.c.l.b16 %v19
  %v59 = vunpack.c.h.b16 %v19
  %v60 = vunpack.c.l.b16 %v20
  %v61 = vunpack.c.l.b16 %v21
  %v62 = vunpack.c.h.b16 %v21
  %v63 = vunpack.c.l.b16 %v22
  %v64 = vunpack.c.l.b16 %v23
  %v65 = vunpack.c.h.b16 %v23
  %v66 = vunpack.c.l.b16 %v24
  %v67 = vunpack.c.l.b16 %v25
  %v68 = vunpack.c.h.b16 %v25
  %v69 = vunpack.c.l.b16 %v26
  %v70 = vunpack.c.l.b16 %v27
  %v71 = vunpack.c.h.b16 %v27
  %v72 = vunpack.c.l.b16 %v28
  %v73 = vunpack.c.l.b16 %v29
  %v74 = vunpack.c.h.b16 %v29
  %v75 = vunpack.c.l.b16 %v30
  %v76 = vpack.c.b16 %v52, %v49
  %v77 = vpack.c.b16 %v53, %v50
  %v78 = vpack.c.b16 %v54, %v51
  %v79 = vpack.c.b16 %v58, %v55
  %v80 = vpack.c.b16 %v59, %v56
  %v81 = vpack.c.b16 %v60, %v57
  %v82 = vpack.c.b16 %v64, %v61
  %v83 = vpack.c.b16 %v65, %v62
  %v84 = vpack.c.b16 %v66, %v63
  %v85 = vpack.c.b16 %v70, %v67
  %v86 = vpack.c.b16 %v71, %v68
  %v87 = vpack.c.b16 %v72, %v69
  %v88 = vpack.c.b16 %v73, %v73
  %v89 = vpack.c.b16 %v74, %v74
  %v90 = vpack.c.b16 %v75, %v75
  %vm103 = vcmask 588800
  %v105 = vsel %vm103, %v12, 0
  %vm107 = vcmask 1043456
  %v109 = vsel %vm107, %v88, 0
  %v112 = vsel %vm107, %v89, 0
  %v115 = vsel %vm107, %v90, 0
  %117 = vmatprep.subr.bf16.mxu0 %v77
  %118 = vmatpush1.bf16.msra.mxu0 %v76
  %119 = vmatprep.subr.bf16.mxu0 %v80
  %120 = vmatpush1.bf16.msra.mxu0 %v79
  %121 = vmatprep.subr.bf16.mxu0 %v83
  %122 = vmatpush1.bf16.msra.mxu0 %v82
  %123 = vmatprep.subr.bf16.mxu0 %v86
  %124 = vmatpush1.bf16.msra.mxu0 %v85
  %125 = vmatprep.subr.bf16.mxu0 %v112
  %126 = vmatpush1.bf16.msra.mxu0 %v109
  %127 = vmatprep.subr.bf16.mxu0 0
  %128 = vmatpush1.bf16.msra.mxu0 0
  %129 = vmatprep.subr.bf16.mxu0 0
  %130 = vmatpush1.bf16.msra.mxu0 0
  %131 = vmatprep.subr.bf16.mxu0 0
  %132 = vmatpush1.bf16.msra.mxu0 0
  %133 = vmatprep.subr.bf16.mxu0 0
  %134 = vmatpush1.bf16.msra.mxu0 0
  %135 = vmatprep.subr.bf16.mxu0 0
  %136 = vmatpush1.bf16.msra.mxu0 0
  %137 = vmatprep.subr.bf16.mxu0 0
  %138 = vmatpush1.bf16.msra.mxu0 0
  %139 = vmatprep.subr.bf16.mxu0 0
  %140 = vmatpush1.bf16.msra.mxu0 0
  %141 = vmatprep.subr.bf16.mxu0 0
  %142 = vmatpush1.bf16.msra.mxu0 0
  %143 = vmatprep.subr.bf16.mxu0 0
  %144 = vmatpush1.bf16.msra.mxu0 0
  %145 = vmatprep.subr.bf16.mxu0 0
  %146 = vmatpush1.bf16.msra.mxu0 0
  %147 = vmatprep.subr.bf16.mxu0 0
  %148 = vmatpush1.bf16.msra.mxu0 0
  %149 = vmatprep.mubr.bf16.mxu0 0
  %150 = vmatmul.mubr.bf16.gmra.mrb[0].mxu0 %v105
  %v151 = vpop.f32.mrb[0].mxu0
  %v152 = vadd.f32 0.0, %v151
  %v153 = vpop.f32.mrb[0].mxu0
  %v154 = vadd.f32 0.0, %v153
  %v155 = vpop.f32.mrb[0].mxu0
  %v156 = vpop.f32.mrb[0].mxu0
  %157 = vdwg.mxu0
  %158 = vmatprep.subr.bf16.mxu0 0
  %159 = vmatpush1.bf16.msra.mxu0 %v78
  %160 = vmatprep.subr.bf16.mxu0 0
  %161 = vmatpush1.bf16.msra.mxu0 %v81
  %162 = vmatprep.subr.bf16.mxu0 0
  %163 = vmatpush1.bf16.msra.mxu0 %v84
  %164 = vmatprep.subr.bf16.mxu0 0
  %165 = vmatpush1.bf16.msra.mxu0 %v87
  %166 = vmatprep.subr.bf16.mxu0 0
  %167 = vmatpush1.bf16.msra.mxu0 %v115
  %168 = vmatprep.subr.bf16.mxu0 0
  %169 = vmatpush1.bf16.msra.mxu0 0
  %170 = vmatprep.subr.bf16.mxu0 0
  %171 = vmatpush1.bf16.msra.mxu0 0
  %172 = vmatprep.subr.bf16.mxu0 0
  %173 = vmatpush1.bf16.msra.mxu0 0
  %174 = vmatprep.subr.bf16.mxu0 0
  %175 = vmatpush1.bf16.msra.mxu0 0
  %176 = vmatprep.subr.bf16.mxu0 0
  %177 = vmatpush1.bf16.msra.mxu0 0
  %178 = vmatprep.subr.bf16.mxu0 0
  %179 = vmatpush1.bf16.msra.mxu0 0
  %180 = vmatprep.subr.bf16.mxu0 0
  %181 = vmatpush1.bf16.msra.mxu0 0
  %182 = vmatprep.subr.bf16.mxu0 0
  %183 = vmatpush1.bf16.msra.mxu0 0
  %184 = vmatprep.subr.bf16.mxu0 0
  %185 = vmatpush1.bf16.msra.mxu0 0
  %186 = vmatprep.subr.bf16.mxu0 0
  %187 = vmatpush1.bf16.msra.mxu0 0
  %188 = vmatprep.subr.bf16.mxu0 0
  %189 = vmatpush1.bf16.msra.mxu0 0
  %190 = vmatprep.mubr.bf16.mxu0 0
  %191 = vmatmul.mubr.bf16.gmra.mrb[0].mxu0 %v105
  %v192 = vpop.f32.mrb[0].mxu0
  %v193 = vadd.f32 0.0, %v192
  %v194 = vpop.f32.mrb[0].mxu0
  %v195 = vpop.f32.mrb[0].mxu0
  %v196 = vpop.f32.mrb[0].mxu0
  %197 = vdwg.mxu0
  %v198 = vmul.f32 %v152, 0.1
  %v199 = vmul.f32 %v154, 0.1
  %v200 = vmul.f32 %v193, 0.1
  %v201 = vmax.f32 %v152, %v198
  %v202 = vmax.f32 %v154, %v199
  %v203 = vmax.f32 %v193, %v200
  %v204 = vpack.c.bf16 %v201, %v201
  %v205 = vpack.c.bf16 %v202, %v202
  %v206 = vpack.c.bf16 %v203, %v203
  %v210 = vunpack.c.l.b16 %v204
  %v211 = vunpack.c.l.b16 %v205
  %v212 = vunpack.c.l.b16 %v206
  %v213 = vpack.c.b16 %v211, %v210
  %v214 = vpack.c.b16 %v212, %v212
  %217 = vst [vmem:[%s2] sm:$0xff] %v213
  %vm218 = vcmask 257024
  %219 = vst.msk [vmem:[%s2 + $0x8] sm:$0xf] %vm218, %v214
  // Predicated region
  $region10: #{disentg_forward_pallas.8} parent=0 // pred_check
    _
  $region11: #{disentg_forward_pallas.8} parent=0 // pred_check_branch
    %221 = sbr.rel (0) target = $region13
  $region12: #{disentg_forward_pallas.8} parent=0 // pred_region
    _
  $region13: #{disentg_forward_pallas.8} parent=0 // pred_fallthru
    _
  // Predicated region
  $region14: #{disentg_forward_pallas.8} parent=0 // pred_check
    _
  $region15: #{disentg_forward_pallas.8} parent=0 // pred_check_branch
    %223 = sbr.rel (0) target = $region17
  $region16: #{disentg_forward_pallas.8} parent=0 // pred_region
    _
  $region17: #{disentg_forward_pallas.8} parent=0 // pred_fallthru
    _

// kernel: disentg_forward_pallas.10
$region0: #{disentg_forward_pallas.10}
  #allocation0 [shape = 'u32[]', space=smem, size = 0x4, offset = 0x4, fixed_abs, tag = 'smem constant byte address 0x4 - core index']
  #allocation1 [shape = 'u32[144,128]{1,0:T(1,128)}', space=vmem, size = 0x12000, scoped, tag = 'internal scratch']
  %s0 = inlined_call_operand.vmem [shape: bf16[72,32], index: 0, kind: input, shape index: {}]
  %s1 = inlined_call_operand.vmem [shape: bf16[2,72], index: 1, kind: input, shape index: {}]
  %s2 = inlined_call_operand.vmem [shape: bf16[18,2], index: 2, kind: input, shape index: {}]
  %s3 = inlined_call_operand.vmem [shape: bf16[18,32], index: 3, kind: output, shape index: {}]
  %s4 = sld [smem:[#allocation0]]
  $region22: #{disentg_forward_pallas.10} parent=0
    _
  %s6 = ssub.s32 1, %s4
  %s7 = scalar_select 0, %s6, %s4
  // Predicated region
  $region2: #{disentg_forward_pallas.10} parent=0 // pred_check
    _
  $region3: #{disentg_forward_pallas.10} parent=0 // pred_check_branch
    %9 = sbr.rel (0) target = $region5
  $region4: #{disentg_forward_pallas.10} parent=0 // pred_region
    _
  $region5: #{disentg_forward_pallas.10} parent=0 // pred_fallthru
    _
  // Predicated region
  $region6: #{disentg_forward_pallas.10} parent=0 // pred_check
    _
  $region7: #{disentg_forward_pallas.10} parent=0 // pred_check_branch
    %11 = sbr.rel (0) target = $region9
  $region8: #{disentg_forward_pallas.10} parent=0 // pred_region
    _
  $region9: #{disentg_forward_pallas.10} parent=0 // pred_fallthru
    _
  // Predicated region
  $region10: #{disentg_forward_pallas.10} parent=0 // pred_check
    _
  $region11: #{disentg_forward_pallas.10} parent=0 // pred_check_branch
    %13 = sbr.rel (0) target = $region13
  $region12: #{disentg_forward_pallas.10} parent=0 // pred_region
    _
  $region13: #{disentg_forward_pallas.10} parent=0 // pred_fallthru
    _
  %v15 = vld [vmem:[%s1] sm:$0x1]
  %v16 = vld [vmem:[%s0] sm:$0xf]
  %v17 = vld [vmem:[%s0 + $0x4] sm:$0xf]
  %v18 = vld [vmem:[%s0 + $0x8] sm:$0xf]
  %v19 = vld [vmem:[%s0 + $0xc] sm:$0xf]
  %v20 = vld [vmem:[%s0 + $0x10] sm:$0xf]
  %v21 = vld [vmem:[%s0 + $0x14] sm:$0xf]
  %v22 = vld [vmem:[%s0 + $0x18] sm:$0xf]
  %v23 = vld [vmem:[%s0 + $0x1c] sm:$0xf]
  %v24 = vld [vmem:[%s0 + $0x20] sm:$0xf]
  %v34 = vunpack.c.l.b16 %v16
  %v35 = vunpack.c.l.b16 %v17
  %v36 = vunpack.c.l.b16 %v18
  %v37 = vunpack.c.l.b16 %v19
  %v38 = vunpack.c.l.b16 %v20
  %v39 = vunpack.c.l.b16 %v21
  %v40 = vunpack.c.l.b16 %v22
  %v41 = vunpack.c.l.b16 %v23
  %v42 = vunpack.c.l.b16 %v24
  %v43 = vpack.c.b16 %v35, %v34
  %v44 = vpack.c.b16 %v37, %v36
  %v45 = vpack.c.b16 %v39, %v38
  %v46 = vpack.c.b16 %v41, %v40
  %v47 = vpack.c.b16 %v42, %v42
  %vm52 = vcmask 588800
  %v54 = vsel %vm52, %v15, 0
  %vm56 = vcmask 1043456
  %v58 = vsel %vm56, %v47, 0
  %60 = vmatprep.subr.bf16.mxu0 0
  %61 = vmatpush1.bf16.msra.mxu0 %v43
  %62 = vmatprep.subr.bf16.mxu0 0
  %63 = vmatpush1.bf16.msra.mxu0 %v44
  %64 = vmatprep.subr.bf16.mxu0 0
  %65 = vmatpush1.bf16.msra.mxu0 %v45
  %66 = vmatprep.subr.bf16.mxu0 0
  %67 = vmatpush1.bf16.msra.mxu0 %v46
  %68 = vmatprep.subr.bf16.mxu0 0
  %69 = vmatpush1.bf16.msra.mxu0 %v58
  %70 = vmatprep.subr.bf16.mxu0 0
  %71 = vmatpush1.bf16.msra.mxu0 0
  %72 = vmatprep.subr.bf16.mxu0 0
  %73 = vmatpush1.bf16.msra.mxu0 0
  %74 = vmatprep.subr.bf16.mxu0 0
  %75 = vmatpush1.bf16.msra.mxu0 0
  %76 = vmatprep.subr.bf16.mxu0 0
  %77 = vmatpush1.bf16.msra.mxu0 0
  %78 = vmatprep.subr.bf16.mxu0 0
  %79 = vmatpush1.bf16.msra.mxu0 0
  %80 = vmatprep.subr.bf16.mxu0 0
  %81 = vmatpush1.bf16.msra.mxu0 0
  %82 = vmatprep.subr.bf16.mxu0 0
  %83 = vmatpush1.bf16.msra.mxu0 0
  %84 = vmatprep.subr.bf16.mxu0 0
  %85 = vmatpush1.bf16.msra.mxu0 0
  %86 = vmatprep.subr.bf16.mxu0 0
  %87 = vmatpush1.bf16.msra.mxu0 0
  %88 = vmatprep.subr.bf16.mxu0 0
  %89 = vmatpush1.bf16.msra.mxu0 0
  %90 = vmatprep.subr.bf16.mxu0 0
  %91 = vmatpush1.bf16.msra.mxu0 0
  %92 = vmatprep.mubr.bf16.mxu0 0
  %93 = vmatmul.mubr.bf16.gmra.mrb[0].mxu0 %v54
  %v94 = vpop.f32.mrb[0].mxu0
  %v95 = vadd.f32 0.0, %v94
  %v96 = vpop.f32.mrb[0].mxu0
  %v97 = vpop.f32.mrb[0].mxu0
  %v98 = vpop.f32.mrb[0].mxu0
  %99 = vdwg.mxu0
  %v100 = vmul.f32 %v95, 0.1
  %v101 = vmax.f32 %v95, %v100
  %v102 = vld [vmem:[%s2] sm:$0xf]
  %v103 = vld [vmem:[%s2 + $0x4] sm:$0xf]
  %v104 = vld [vmem:[%s2 + $0x8] sm:$0x1]
  %v105 = vpack.c.bf16 %v101, %v101
  %v109 = vunpack.c.l.b16 %v102
  %v110 = vunpack.c.l.b16 %v103
  %v111 = vunpack.c.l.b16 %v104
  %v112 = vpack.c.b16 %v110, %v109
  %v113 = vpack.c.b16 %v111, %v111
  %vm114 = vcmask 15360
  %v116 = vsel %vm114, %v112, 0
  %v119 = vsel %vm114, %v113, 0
  %vm121 = vcmask 1040384
  %v123 = vsel %vm121, %v105, 0
  %125 = vmatprep.subr.bf16.mxu0 0
  %126 = vmatpush1.bf16.msra.mxu0 %v123
  %127 = vmatprep.subr.bf16.mxu0 0
  %128 = vmatpush1.bf16.msra.mxu0 0
  %129 = vmatprep.subr.bf16.mxu0 0
  %130 = vmatpush1.bf16.msra.mxu0 0
  %131 = vmatprep.subr.bf16.mxu0 0
  %132 = vmatpush1.bf16.msra.mxu0 0
  %133 = vmatprep.subr.bf16.mxu0 0
  %134 = vmatpush1.bf16.msra.mxu0 0
  %135 = vmatprep.subr.bf16.mxu0 0
  %136 = vmatpush1.bf16.msra.mxu0 0
  %137 = vmatprep.subr.bf16.mxu0 0
  %138 = vmatpush1.bf16.msra.mxu0 0
  %139 = vmatprep.subr.bf16.mxu0 0
  %140 = vmatpush1.bf16.msra.mxu0 0
  %141 = vmatprep.subr.bf16.mxu0 0
  %142 = vmatpush1.bf16.msra.mxu0 0
  %143 = vmatprep.subr.bf16.mxu0 0
  %144 = vmatpush1.bf16.msra.mxu0 0
  %145 = vmatprep.subr.bf16.mxu0 0
  %146 = vmatpush1.bf16.msra.mxu0 0
  %147 = vmatprep.subr.bf16.mxu0 0
  %148 = vmatpush1.bf16.msra.mxu0 0
  %149 = vmatprep.subr.bf16.mxu0 0
  %150 = vmatpush1.bf16.msra.mxu0 0
  %151 = vmatprep.subr.bf16.mxu0 0
  %152 = vmatpush1.bf16.msra.mxu0 0
  %153 = vmatprep.subr.bf16.mxu0 0
  %154 = vmatpush1.bf16.msra.mxu0 0
  %155 = vmatprep.subr.bf16.mxu0 0
  %156 = vmatpush1.bf16.msra.mxu0 0
  %157 = vmatprep.mubr.bf16.mxu0 0
  %158 = vmatmul.mubr.bf16.gmra.mrb[0].mxu0 %v116
  %v159 = vpop.f32.mrb[0].mxu0
  %v160 = vadd.f32 0.0, %v159
  %v161 = vpop.f32.mrb[0].mxu0
  %v162 = vpop.f32.mrb[0].mxu0
  %v163 = vadd.f32 0.0, %v162
  %v164 = vpop.f32.mrb[0].mxu0
  %165 = vmatprep.mubr.bf16.mxu0 0
  %166 = vmatmul.mubr.bf16.gmra.mrb[0].mxu0 %v119
  %v167 = vpop.f32.mrb[0].mxu0
  %v168 = vadd.f32 0.0, %v167
  %v169 = vpop.f32.mrb[0].mxu0
  %v170 = vpop.f32.mrb[0].mxu0
  %v171 = vpop.f32.mrb[0].mxu0
  %172 = vdwg.mxu0
  %v173 = vmul.f32 %v160, 0.1
  %v174 = vmul.f32 %v163, 0.1
  %v175 = vmul.f32 %v168, 0.1
  %v176 = vmax.f32 %v160, %v173
  %v177 = vmax.f32 %v163, %v174
  %v178 = vmax.f32 %v168, %v175
  %v179 = vpack.c.bf16 %v177, %v176
  %v180 = vpack.c.bf16 %v178, %v178
  %v183 = vunpack.c.l.b16 %v179
  %v184 = vunpack.c.h.b16 %v179
  %v185 = vunpack.c.l.b16 %v180
  %v186 = vpack.c.b16 %v183, %v183
  %v187 = vpack.c.b16 %v184, %v184
  %v188 = vpack.c.b16 %v185, %v185
  %vm192 = vcmask 257024
  %193 = vst.msk [vmem:[%s3] sm:$0xf] %vm192, %v186
  %194 = vst.msk [vmem:[%s3 + $0x4] sm:$0xf] %vm192, %v187
  %vm195 = vcmask 253952
  %196 = vst.msk [vmem:[%s3 + $0x8] sm:$0x1] %vm195, %v188
  // Predicated region
  $region14: #{disentg_forward_pallas.10} parent=0 // pred_check
    _
  $region15: #{disentg_forward_pallas.10} parent=0 // pred_check_branch
    %198 = sbr.rel (0) target = $region17
  $region16: #{disentg_forward_pallas.10} parent=0 // pred_region
    _
  $region17: #{disentg_forward_pallas.10} parent=0 // pred_fallthru
    _
  // Predicated region
  $region18: #{disentg_forward_pallas.10} parent=0 // pred_check
    _
  $region19: #{disentg_forward_pallas.10} parent=0 // pred_check_branch
    %200 = sbr.rel (0) target = $region21
  $region20: #{disentg_forward_pallas.10} parent=0 // pred_region
    _
  $region21: #{disentg_forward_pallas.10} parent=0 // pred_fallthru
    _

// kernel: disentg_forward_pallas.11
$region0: #{disentg_forward_pallas.11}
  #allocation0 [shape = 'u32[]', space=smem, size = 0x4, offset = 0x4, fixed_abs, tag = 'smem constant byte address 0x4 - core index']
  #allocation1 [shape = 'u32[144,128]{1,0:T(1,128)}', space=vmem, size = 0x12000, scoped, tag = 'internal scratch']
  %s0 = inlined_call_operand.vmem [shape: bf16[72,192], index: 0, kind: input, shape index: {}]
  %s1 = inlined_call_operand.vmem [shape: bf16[4,72], index: 1, kind: input, shape index: {}]
  %s2 = inlined_call_operand.vmem [shape: bf16[12,4], index: 2, kind: input, shape index: {}]
  %s3 = inlined_call_operand.vmem [shape: bf16[12,192], index: 3, kind: output, shape index: {}]
  %s4 = sld [smem:[#allocation0]]
  $region22: #{disentg_forward_pallas.11} parent=0
    _
  %s6 = ssub.s32 1, %s4
  %s7 = scalar_select 0, %s6, %s4
  // Predicated region
  $region2: #{disentg_forward_pallas.11} parent=0 // pred_check
    _
  $region3: #{disentg_forward_pallas.11} parent=0 // pred_check_branch
    %9 = sbr.rel (0) target = $region5
  $region4: #{disentg_forward_pallas.11} parent=0 // pred_region
    _
  $region5: #{disentg_forward_pallas.11} parent=0 // pred_fallthru
    _
  // Predicated region
  $region6: #{disentg_forward_pallas.11} parent=0 // pred_check
    _
  $region7: #{disentg_forward_pallas.11} parent=0 // pred_check_branch
    %11 = sbr.rel (0) target = $region9
  $region8: #{disentg_forward_pallas.11} parent=0 // pred_region
    _
  $region9: #{disentg_forward_pallas.11} parent=0 // pred_fallthru
    _
  // Predicated region
  $region10: #{disentg_forward_pallas.11} parent=0 // pred_check
    _
  $region11: #{disentg_forward_pallas.11} parent=0 // pred_check_branch
    %13 = sbr.rel (0) target = $region13
  $region12: #{disentg_forward_pallas.11} parent=0 // pred_region
    _
  $region13: #{disentg_forward_pallas.11} parent=0 // pred_fallthru
    _
  %v15 = vld [vmem:[%s1] sm:$0x3]
  %v16 = vld [vmem:[%s0] sm:$0xff]
  %v17 = vld [vmem:[%s0 + $0x8] sm:$0xff]
  %v18 = vld [vmem:[%s0 + $0x10] sm:$0xff]
  %v19 = vld [vmem:[%s0 + $0x18] sm:$0xff]
  %v20 = vld [vmem:[%s0 + $0x20] sm:$0xff]
  %v21 = vld [vmem:[%s0 + $0x28] sm:$0xff]
  %v22 = vld [vmem:[%s0 + $0x30] sm:$0xff]
  %v23 = vld [vmem:[%s0 + $0x38] sm:$0xff]
  %v24 = vld [vmem:[%s0 + $0x40] sm:$0xff]
  %v34 = vunpack.c.l.b16 %v16
  %v35 = vunpack.c.h.b16 %v16
  %v36 = vunpack.c.l.b16 %v17
  %v37 = vunpack.c.h.b16 %v17
  %v38 = vunpack.c.l.b16 %v18
  %v39 = vunpack.c.h.b16 %v18
  %v40 = vunpack.c.l.b16 %v19
  %v41 = vunpack.c.h.b16 %v19
  %v42 = vunpack.c.l.b16 %v20
  %v43 = vunpack.c.h.b16 %v20
  %v44 = vunpack.c.l.b16 %v21
  %v45 = vunpack.c.h.b16 %v21
  %v46 = vunpack.c.l.b16 %v22
  %v47 = vunpack.c.h.b16 %v22
  %v48 = vunpack.c.l.b16 %v23
  %v49 = vunpack.c.h.b16 %v23
  %v50 = vunpack.c.l.b16 %v24
  %v51 = vunpack.c.h.b16 %v24
  %v52 = vpack.c.b16 %v36, %v34
  %v53 = vpack.c.b16 %v37, %v35
  %v54 = vpack.c.b16 %v40, %v38
  %v55 = vpack.c.b16 %v41, %v39
  %v56 = vpack.c.b16 %v44, %v42
  %v57 = vpack.c.b16 %v45, %v43
  %v58 = vpack.c.b16 %v48, %v46
  %v59 = vpack.c.b16 %v49, %v47
  %v60 = vpack.c.b16 %v50, %v50
  %v61 = vpack.c.b16 %v51, %v51
  %vm70 = vcmask 588800
  %v72 = vsel %vm70, %v15, 0
  %vm74 = vcmask 1043456
  %v76 = vsel %vm74, %v60, 0
  %v79 = vsel %vm74, %v61, 0
  %81 = vmatprep.subr.bf16.mxu0 %v53
  %82 = vmatpush1.bf16.msra.mxu0 %v52
  %83 = vmatprep.subr.bf16.mxu0 %v55
  %84 = vmatpush1.bf16.msra.mxu0 %v54
  %85 = vmatprep.subr.bf16.mxu0 %v57
  %86 = vmatpush1.bf16.msra.mxu0 %v56
  %87 = vmatprep.subr.bf16.mxu0 %v59
  %88 = vmatpush1.bf16.msra.mxu0 %v58
  %89 = vmatprep.subr.bf16.mxu0 %v79
  %90 = vmatpush1.bf16.msra.mxu0 %v76
  %91 = vmatprep.subr.bf16.mxu0 0
  %92 = vmatpush1.bf16.msra.mxu0 0
  %93 = vmatprep.subr.bf16.mxu0 0
  %94 = vmatpush1.bf16.msra.mxu0 0
  %95 = vmatprep.subr.bf16.mxu0 0
  %96 = vmatpush1.bf16.msra.mxu0 0
  %97 = vmatprep.subr.bf16.mxu0 0
  %98 = vmatpush1.bf16.msra.mxu0 0
  %99 = vmatprep.subr.bf16.mxu0 0
  %100 = vmatpush1.bf16.msra.mxu0 0
  %101 = vmatprep.subr.bf16.mxu0 0
  %102 = vmatpush1.bf16.msra.mxu0 0
  %103 = vmatprep.subr.bf16.mxu0 0
  %104 = vmatpush1.bf16.msra.mxu0 0
  %105 = vmatprep.subr.bf16.mxu0 0
  %106 = vmatpush1.bf16.msra.mxu0 0
  %107 = vmatprep.subr.bf16.mxu0 0
  %108 = vmatpush1.bf16.msra.mxu0 0
  %109 = vmatprep.subr.bf16.mxu0 0
  %110 = vmatpush1.bf16.msra.mxu0 0
  %111 = vmatprep.subr.bf16.mxu0 0
  %112 = vmatpush1.bf16.msra.mxu0 0
  %113 = vmatprep.mubr.bf16.mxu0 0
  %114 = vmatmul.mubr.bf16.gmra.mrb[0].mxu0 %v72
  %v115 = vpop.f32.mrb[0].mxu0
  %v116 = vadd.f32 0.0, %v115
  %v117 = vpop.f32.mrb[0].mxu0
  %v118 = vadd.f32 0.0, %v117
  %v119 = vpop.f32.mrb[0].mxu0
  %v120 = vpop.f32.mrb[0].mxu0
  %121 = vdwg.mxu0
  %v122 = vmul.f32 %v116, 0.1
  %v123 = vmul.f32 %v118, 0.1
  %v124 = vmax.f32 %v116, %v122
  %v125 = vmax.f32 %v118, %v123
  %v126 = vld [vmem:[%s2] sm:$0xf]
  %v127 = vld [vmem:[%s2 + $0x4] sm:$0x3]
  %v128 = vpack.c.bf16 %v124, %v124
  %v129 = vpack.c.bf16 %v125, %v125
  %v132 = vunpack.c.l.b16 %v126
  %v133 = vunpack.c.l.b16 %v127
  %v134 = vpack.c.b16 %v133, %v132
  %vm135 = vcmask 31744
  %v137 = vsel %vm135, %v134, 0
  %vm139 = vcmask 1041408
  %v141 = vsel %vm139, %v128, 0
  %v144 = vsel %vm139, %v129, 0
  %146 = vmatprep.subr.bf16.mxu0 %v144
  %147 = vmatpush1.bf16.msra.mxu0 %v141
  %148 = vmatprep.subr.bf16.mxu0 0
  %149 = vmatpush1.bf16.msra.mxu0 0
  %150 = vmatprep.subr.bf16.mxu0 0
  %151 = vmatpush1.bf16.msra.mxu0 0
  %152 = vmatprep.subr.bf16.mxu0 0
  %153 = vmatpush1.bf16.msra.mxu0 0
  %154 = vmatprep.subr.bf16.mxu0 0
  %155 = vmatpush1.bf16.msra.mxu0 0
  %156 = vmatprep.subr.bf16.mxu0 0
  %157 = vmatpush1.bf16.msra.mxu0 0
  %158 = vmatprep.subr.bf16.mxu0 0
  %159 = vmatpush1.bf16.msra.mxu0 0
  %160 = vmatprep.subr.bf16.mxu0 0
  %161 = vmatpush1.bf16.msra.mxu0 0
  %162 = vmatprep.subr.bf16.mxu0 0
  %163 = vmatpush1.bf16.msra.mxu0 0
  %164 = vmatprep.subr.bf16.mxu0 0
  %165 = vmatpush1.bf16.msra.mxu0 0
  %166 = vmatprep.subr.bf16.mxu0 0
  %167 = vmatpush1.bf16.msra.mxu0 0
  %168 = vmatprep.subr.bf16.mxu0 0
  %169 = vmatpush1.bf16.msra.mxu0 0
  %170 = vmatprep.subr.bf16.mxu0 0
  %171 = vmatpush1.bf16.msra.mxu0 0
  %172 = vmatprep.subr.bf16.mxu0 0
  %173 = vmatpush1.bf16.msra.mxu0 0
  %174 = vmatprep.subr.bf16.mxu0 0
  %175 = vmatpush1.bf16.msra.mxu0 0
  %176 = vmatprep.subr.bf16.mxu0 0
  %177 = vmatpush1.bf16.msra.mxu0 0
  %178 = vmatprep.mubr.bf16.mxu0 0
  %179 = vmatmul.mubr.bf16.gmra.mrb[0].mxu0 %v137
  %v180 = vpop.f32.mrb[0].mxu0
  %v181 = vadd.f32 0.0, %v180
  %v182 = vpop.f32.mrb[0].mxu0
  %v183 = vadd.f32 0.0, %v182
  %v184 = vpop.f32.mrb[0].mxu0
  %v185 = vadd.f32 0.0, %v184
  %v186 = vpop.f32.mrb[0].mxu0
  %v187 = vadd.f32 0.0, %v186
  %188 = vdwg.mxu0
  %v189 = vmul.f32 %v181, 0.1
  %v190 = vmul.f32 %v183, 0.1
  %v191 = vmul.f32 %v185, 0.1
  %v192 = vmul.f32 %v187, 0.1
  %v193 = vmax.f32 %v181, %v189
  %v194 = vmax.f32 %v183, %v190
  %v195 = vmax.f32 %v185, %v191
  %v196 = vmax.f32 %v187, %v192
  %v197 = vpack.c.bf16 %v195, %v193
  %v198 = vpack.c.bf16 %v196, %v194
  %v201 = vunpack.c.l.b16 %v197
  %v202 = vunpack.c.l.b16 %v198
  %v203 = vunpack.c.h.b16 %v197
  %v204 = vunpack.c.h.b16 %v198
  %v205 = vpack.c.b16 %v202, %v201
  %v206 = vpack.c.b16 %v204, %v203
  %vm209 = vcmask 523268
  %vm210 = vmor %vm209, %vm74
  %211 = vst.msk [vmem:[%s3] sm:$0xff] %vm210, %v205
  %vm212 = vcmask 521220
  %vm213 = vmor %vm212, %vm139
  %214 = vst.msk [vmem:[%s3 + $0x8] sm:$0x33] %vm213, %v206
  // Predicated region
  $region14: #{disentg_forward_pallas.11} parent=0 // pred_check
    _
  $region15: #{disentg_forward_pallas.11} parent=0 // pred_check_branch
    %216 = sbr.rel (0) target = $region17
  $region16: #{disentg_forward_pallas.11} parent=0 // pred_region
    _
  $region17: #{disentg_forward_pallas.11} parent=0 // pred_fallthru
    _
  // Predicated region
  $region18: #{disentg_forward_pallas.11} parent=0 // pred_check
    _
  $region19: #{disentg_forward_pallas.11} parent=0 // pred_check_branch
    %218 = sbr.rel (0) target = $region21
  $region20: #{disentg_forward_pallas.11} parent=0 // pred_region
    _
  $region21: #{disentg_forward_pallas.11} parent=0 // pred_fallthru
    _

// kernel: disentg_forward_pallas.12
$region0: #{disentg_forward_pallas.12}
  #allocation0 [shape = 'u32[]', space=smem, size = 0x4, offset = 0x4, fixed_abs, tag = 'smem constant byte address 0x4 - core index']
  #allocation1 [shape = 'u32[144,128]{1,0:T(1,128)}', space=vmem, size = 0x12000, scoped, tag = 'internal scratch']
  %s0 = inlined_call_operand.vmem [shape: bf16[24,192], index: 0, kind: input, shape index: {}]
  %s1 = inlined_call_operand.vmem [shape: bf16[4,24], index: 1, kind: input, shape index: {}]
  %s2 = inlined_call_operand.vmem [shape: bf16[4,192], index: 2, kind: output, shape index: {}]
  %s3 = sld [smem:[#allocation0]]
  $region18: #{disentg_forward_pallas.12} parent=0
    _
  %s5 = ssub.s32 1, %s3
  %s6 = scalar_select 0, %s5, %s3
  // Predicated region
  $region2: #{disentg_forward_pallas.12} parent=0 // pred_check
    _
  $region3: #{disentg_forward_pallas.12} parent=0 // pred_check_branch
    %8 = sbr.rel (0) target = $region5
  $region4: #{disentg_forward_pallas.12} parent=0 // pred_region
    _
  $region5: #{disentg_forward_pallas.12} parent=0 // pred_fallthru
    _
  // Predicated region
  $region6: #{disentg_forward_pallas.12} parent=0 // pred_check
    _
  $region7: #{disentg_forward_pallas.12} parent=0 // pred_check_branch
    %10 = sbr.rel (0) target = $region9
  $region8: #{disentg_forward_pallas.12} parent=0 // pred_region
    _
  $region9: #{disentg_forward_pallas.12} parent=0 // pred_fallthru
    _
  %v12 = vld [vmem:[%s1] sm:$0x3]
  %v13 = vld [vmem:[%s0] sm:$0xff]
  %v14 = vld [vmem:[%s0 + $0x8] sm:$0xff]
  %v15 = vld [vmem:[%s0 + $0x10] sm:$0xff]
  %v19 = vunpack.c.l.b16 %v13
  %v20 = vunpack.c.h.b16 %v13
  %v21 = vunpack.c.l.b16 %v14
  %v22 = vunpack.c.h.b16 %v14
  %v23 = vunpack.c.l.b16 %v15
  %v24 = vunpack.c.h.b16 %v15
  %v25 = vpack.c.b16 %v21, %v19
  %v26 = vpack.c.b16 %v22, %v20
  %v27 = vpack.c.b16 %v23, %v23
  %v28 = vpack.c.b16 %v24, %v24
  %vm31 = vcmask 195584
  %v33 = vsel %vm31, %v12, 0
  %vm35 = vcmask 1043456
  %v37 = vsel %vm35, %v27, 0
  %v40 = vsel %vm35, %v28, 0
  %42 = vmatprep.subr.bf16.mxu0 %v26
  %43 = vmatpush1.bf16.msra.mxu0 %v25
  %44 = vmatprep.subr.bf16.mxu0 %v40
  %45 = vmatpush1.bf16.msra.mxu0 %v37
  %46 = vmatprep.subr.bf16.mxu0 0
  %47 = vmatpush1.bf16.msra.mxu0 0
  %48 = vmatprep.subr.bf16.mxu0 0
  %49 = vmatpush1.bf16.msra.mxu0 0
  %50 = vmatprep.subr.bf16.mxu0 0
  %51 = vmatpush1.bf16.msra.mxu0 0
  %52 = vmatprep.subr.bf16.mxu0 0
  %53 = vmatpush1.bf16.msra.mxu0 0
  %54 = vmatprep.subr.bf16.mxu0 0
  %55 = vmatpush1.bf16.msra.mxu0 0
  %56 = vmatprep.subr.bf16.mxu0 0
  %57 = vmatpush1.bf16.msra.mxu0 0
  %58 = vmatprep.subr.bf16.mxu0 0
  %59 = vmatpush1.bf16.msra.mxu0 0
  %60 = vmatprep.subr.bf16.mxu0 0
  %61 = vmatpush1.bf16.msra.mxu0 0
  %62 = vmatprep.subr.bf16.mxu0 0
  %63 = vmatpush1.bf16.msra.mxu0 0
  %64 = vmatprep.subr.bf16.mxu0 0
  %65 = vmatpush1.bf16.msra.mxu0 0
  %66 = vmatprep.subr.bf16.mxu0 0
  %67 = vmatpush1.bf16.msra.mxu0 0
  %68 = vmatprep.subr.bf16.mxu0 0
  %69 = vmatpush1.bf16.msra.mxu0 0
  %70 = vmatprep.subr.bf16.mxu0 0
  %71 = vmatpush1.bf16.msra.mxu0 0
  %72 = vmatprep.subr.bf16.mxu0 0
  %73 = vmatpush1.bf16.msra.mxu0 0
  %74 = vmatprep.mubr.bf16.mxu0 0
  %75 = vmatmul.mubr.bf16.gmra.mrb[0].mxu0 %v33
  %v76 = vpop.f32.mrb[0].mxu0
  %v77 = vadd.f32 0.0, %v76
  %v78 = vpop.f32.mrb[0].mxu0
  %v79 = vadd.f32 0.0, %v78
  %v80 = vpop.f32.mrb[0].mxu0
  %v81 = vpop.f32.mrb[0].mxu0
  %82 = vdwg.mxu0
  %v83 = vpack.c.bf16 %v77, %v77
  %v84 = vpack.c.bf16 %v79, %v79
  %v87 = vcombine.low %v83, %v84
  %v89 = vunpack.c.l.s4 1983009808
  %v90 = vunpack.c.0.s8 %v89
  %v91 = vlaneseq
  %v92 = vshrl.u32 %v91, 7
  %v93 = vsub.s32 %v90, %v92
  %v94 = vrot.slane %v87, %v93
  %vm96 = vcmask 1041408
  %vm97 = vcmask 519170
  %vm98 = vmor %vm97, %vm96
  %99 = vst.msk [vmem:[%s2] sm:$0xf] %vm98, %v94
  // Predicated region
  $region10: #{disentg_forward_pallas.12} parent=0 // pred_check
    _
  $region11: #{disentg_forward_pallas.12} parent=0 // pred_check_branch
    %101 = sbr.rel (0) target = $region13
  $region12: #{disentg_forward_pallas.12} parent=0 // pred_region
    _
  $region13: #{disentg_forward_pallas.12} parent=0 // pred_fallthru
    _
  // Predicated region
  $region14: #{disentg_forward_pallas.12} parent=0 // pred_check
    _
  $region15: #{disentg_forward_pallas.12} parent=0 // pred_check_branch
    %103 = sbr.rel (0) target = $region17
  $region16: #{disentg_forward_pallas.12} parent=0 // pred_region
    _
  $region17: #{disentg_forward_pallas.12} parent=0 // pred_fallthru
    _

// kernel: disentg_forward_pallas.13
$region0: #{disentg_forward_pallas.13}
  #allocation0 [shape = 'u32[]', space=smem, size = 0x4, offset = 0x4, fixed_abs, tag = 'smem constant byte address 0x4 - core index']
  #allocation1 [shape = 'u32[144,128]{1,0:T(1,128)}', space=vmem, size = 0x12000, scoped, tag = 'internal scratch']
  %s0 = inlined_call_operand.vmem [shape: bf16[12,192], index: 0, kind: input, shape index: {}]
  %s1 = inlined_call_operand.vmem [shape: bf16[4,12], index: 1, kind: input, shape index: {}]
  %s2 = inlined_call_operand.vmem [shape: f32[4,1], index: 2, kind: input, shape index: {}]
  %s3 = inlined_call_operand.vmem [shape: bf16[12,4], index: 3, kind: input, shape index: {}]
  %s4 = inlined_call_operand.vmem [shape: bf16[12,192], index: 4, kind: output, shape index: {}]
  %s5 = sld [smem:[#allocation0]]
  $region26: #{disentg_forward_pallas.13} parent=0
    _
  %s7 = ssub.s32 1, %s5
  %s8 = scalar_select 0, %s7, %s5
  // Predicated region
  $region2: #{disentg_forward_pallas.13} parent=0 // pred_check
    _
  $region3: #{disentg_forward_pallas.13} parent=0 // pred_check_branch
    %10 = sbr.rel (0) target = $region5
  $region4: #{disentg_forward_pallas.13} parent=0 // pred_region
    _
  $region5: #{disentg_forward_pallas.13} parent=0 // pred_fallthru
    _
  // Predicated region
  $region6: #{disentg_forward_pallas.13} parent=0 // pred_check
    _
  $region7: #{disentg_forward_pallas.13} parent=0 // pred_check_branch
    %12 = sbr.rel (0) target = $region9
  $region8: #{disentg_forward_pallas.13} parent=0 // pred_region
    _
  $region9: #{disentg_forward_pallas.13} parent=0 // pred_fallthru
    _
  // Predicated region
  $region10: #{disentg_forward_pallas.13} parent=0 // pred_check
    _
  $region11: #{disentg_forward_pallas.13} parent=0 // pred_check_branch
    %14 = sbr.rel (0) target = $region13
  $region12: #{disentg_forward_pallas.13} parent=0 // pred_region
    _
  $region13: #{disentg_forward_pallas.13} parent=0 // pred_fallthru
    _
  // Predicated region
  $region14: #{disentg_forward_pallas.13} parent=0 // pred_check
    _
  $region15: #{disentg_forward_pallas.13} parent=0 // pred_check_branch
    %16 = sbr.rel (0) target = $region17
  $region16: #{disentg_forward_pallas.13} parent=0 // pred_region
    _
  $region17: #{disentg_forward_pallas.13} parent=0 // pred_fallthru
    _
  %v18 = vld [vmem:[%s1] sm:$0x3]
  %v19 = vld [vmem:[%s0] sm:$0xff]
  %v20 = vld [vmem:[%s0 + $0x8] sm:$0x33]
  %v21 = vld [vmem:[%s2] sm:$0xf]
  %23 = vset.pattern.permute.xlu0 0
  %24 = vperm.xlu0 %23, %v21
  %v25 = vpop.permute.xlu0 %24
  %v29 = vunpack.c.l.b16 %v19
  %v30 = vunpack.c.h.b16 %v19
  %v31 = vunpack.c.l.b16 %v20
  %v32 = vunpack.c.h.b16 %v20
  %v33 = vpack.c.b16 %v31, %v29
  %v34 = vpack.c.b16 %v32, %v30
  %vm35 = vcmask 97280
  %v37 = vsel %vm35, %v18, 0
  %vm39 = vcmask 1045504
  %v41 = vsel %vm39, %v33, 0
  %v44 = vsel %vm39, %v34, 0
  %46 = vmatprep.subr.bf16.mxu0 %v44
  %47 = vmatpush1.bf16.msra.mxu0 %v41
  %48 = vmatprep.subr.bf16.mxu0 0
  %49 = vmatpush1.bf16.msra.mxu0 0
  %50 = vmatprep.subr.bf16.mxu0 0
  %51 = vmatpush1.bf16.msra.mxu0 0
  %52 = vmatprep.subr.bf16.mxu0 0
  %53 = vmatpush1.bf16.msra.mxu0 0
  %54 = vmatprep.subr.bf16.mxu0 0
  %55 = vmatpush1.bf16.msra.mxu0 0
  %56 = vmatprep.subr.bf16.mxu0 0
  %57 = vmatpush1.bf16.msra.mxu0 0
  %58 = vmatprep.subr.bf16.mxu0 0
  %59 = vmatpush1.bf16.msra.mxu0 0
  %60 = vmatprep.subr.bf16.mxu0 0
  %61 = vmatpush1.bf16.msra.mxu0 0
  %62 = vmatprep.subr.bf16.mxu0 0
  %63 = vmatpush1.bf16.msra.mxu0 0
  %64 = vmatprep.subr.bf16.mxu0 0
  %65 = vmatpush1.bf16.msra.mxu0 0
  %66 = vmatprep.subr.bf16.mxu0 0
  %67 = vmatpush1.bf16.msra.mxu0 0
  %68 = vmatprep.subr.bf16.mxu0 0
  %69 = vmatpush1.bf16.msra.mxu0 0
  %70 = vmatprep.subr.bf16.mxu0 0
  %71 = vmatpush1.bf16.msra.mxu0 0
  %72 = vmatprep.subr.bf16.mxu0 0
  %73 = vmatpush1.bf16.msra.mxu0 0
  %74 = vmatprep.subr.bf16.mxu0 0
  %75 = vmatpush1.bf16.msra.mxu0 0
  %76 = vmatprep.subr.bf16.mxu0 0
  %77 = vmatpush1.bf16.msra.mxu0 0
  %78 = vmatprep.mubr.bf16.mxu0 0
  %79 = vmatmul.mubr.bf16.gmra.mrb[0].mxu0 %v37
  %v80 = vpop.f32.mrb[0].mxu0
  %v81 = vadd.f32 %v25, %v80
  %v82 = vpop.f32.mrb[0].mxu0
  %v83 = vadd.f32 %v25, %v82
  %v84 = vpop.f32.mrb[0].mxu0
  %v85 = vpop.f32.mrb[0].mxu0
  %86 = vdwg.mxu0
  %v87 = vmul.f32 %v81, 0.1
  %v88 = vmul.f32 %v83, 0.1
  %v89 = vmax.f32 %v81, %v87
  %v90 = vmax.f32 %v83, %v88
  %v91 = vld [vmem:[%s3] sm:$0xf]
  %v92 = vld [vmem:[%s3 + $0x4] sm:$0x3]
  %v93 = vpack.c.bf16 %v89, %v89
  %v94 = vpack.c.bf16 %v90, %v90
  %v97 = vunpack.c.l.b16 %v91
  %v98 = vunpack.c.l.b16 %v92
  %v99 = vpack.c.b16 %v98, %v97
  %vm100 = vcmask 31744
  %v102 = vsel %vm100, %v99, 0
  %vm104 = vcmask 1041408
  %v106 = vsel %vm104, %v93, 0
  %v109 = vsel %vm104, %v94, 0
  %111 = vmatprep.subr.bf16.mxu0 %v109
  %112 = vmatpush1.bf16.msra.mxu0 %v106
  %113 = vmatprep.subr.bf16.mxu0 0
  %114 = vmatpush1.bf16.msra.mxu0 0
  %115 = vmatprep.subr.bf16.mxu0 0
  %116 = vmatpush1.bf16.msra.mxu0 0
  %117 = vmatprep.subr.bf16.mxu0 0
  %118 = vmatpush1.bf16.msra.mxu0 0
  %119 = vmatprep.subr.bf16.mxu0 0
  %120 = vmatpush1.bf16.msra.mxu0 0
  %121 = vmatprep.subr.bf16.mxu0 0
  %122 = vmatpush1.bf16.msra.mxu0 0
  %123 = vmatprep.subr.bf16.mxu0 0
  %124 = vmatpush1.bf16.msra.mxu0 0
  %125 = vmatprep.subr.bf16.mxu0 0
  %126 = vmatpush1.bf16.msra.mxu0 0
  %127 = vmatprep.subr.bf16.mxu0 0
  %128 = vmatpush1.bf16.msra.mxu0 0
  %129 = vmatprep.subr.bf16.mxu0 0
  %130 = vmatpush1.bf16.msra.mxu0 0
  %131 = vmatprep.subr.bf16.mxu0 0
  %132 = vmatpush1.bf16.msra.mxu0 0
  %133 = vmatprep.subr.bf16.mxu0 0
  %134 = vmatpush1.bf16.msra.mxu0 0
  %135 = vmatprep.subr.bf16.mxu0 0
  %136 = vmatpush1.bf16.msra.mxu0 0
  %137 = vmatprep.subr.bf16.mxu0 0
  %138 = vmatpush1.bf16.msra.mxu0 0
  %139 = vmatprep.subr.bf16.mxu0 0
  %140 = vmatpush1.bf16.msra.mxu0 0
  %141 = vmatprep.subr.bf16.mxu0 0
  %142 = vmatpush1.bf16.msra.mxu0 0
  %143 = vmatprep.mubr.bf16.mxu0 0
  %144 = vmatmul.mubr.bf16.gmra.mrb[0].mxu0 %v102
  %v145 = vpop.f32.mrb[0].mxu0
  %v146 = vadd.f32 0.0, %v145
  %v147 = vpop.f32.mrb[0].mxu0
  %v148 = vadd.f32 0.0, %v147
  %v149 = vpop.f32.mrb[0].mxu0
  %v150 = vadd.f32 0.0, %v149
  %v151 = vpop.f32.mrb[0].mxu0
  %v152 = vadd.f32 0.0, %v151
  %153 = vdwg.mxu0
  %v154 = vmul.f32 %v146, 0.1
  %v155 = vmul.f32 %v148, 0.1
  %v156 = vmul.f32 %v150, 0.1
  %v157 = vmul.f32 %v152, 0.1
  %v158 = vmax.f32 %v146, %v154
  %v159 = vmax.f32 %v148, %v155
  %v160 = vmax.f32 %v150, %v156
  %v161 = vmax.f32 %v152, %v157
  %v162 = vpack.c.bf16 %v160, %v158
  %v163 = vpack.c.bf16 %v161, %v159
  %v166 = vunpack.c.l.b16 %v162
  %v167 = vunpack.c.l.b16 %v163
  %v168 = vunpack.c.h.b16 %v162
  %v169 = vunpack.c.h.b16 %v163
  %v170 = vpack.c.b16 %v167, %v166
  %v171 = vpack.c.b16 %v169, %v168
  %vm174 = vcmask 1043456
  %vm175 = vcmask 523268
  %vm176 = vmor %vm175, %vm174
  %177 = vst.msk [vmem:[%s4] sm:$0xff] %vm176, %v170
  %vm178 = vcmask 521220
  %vm179 = vmor %vm178, %vm104
  %180 = vst.msk [vmem:[%s4 + $0x8] sm:$0x33] %vm179, %v171
  // Predicated region
  $region18: #{disentg_forward_pallas.13} parent=0 // pred_check
    _
  $region19: #{disentg_forward_pallas.13} parent=0 // pred_check_branch
    %182 = sbr.rel (0) target = $region21
  $region20: #{disentg_forward_pallas.13} parent=0 // pred_region
    _
  $region21: #{disentg_forward_pallas.13} parent=0 // pred_fallthru
    _
  // Predicated region
  $region22: #{disentg_forward_pallas.13} parent=0 // pred_check
    _
  $region23: #{disentg_forward_pallas.13} parent=0 // pred_check_branch
    %184 = sbr.rel (0) target = $region25
  $region24: #{disentg_forward_pallas.13} parent=0 // pred_region
    _
  $region25: #{disentg_forward_pallas.13} parent=0 // pred_fallthru
    _

// kernel: disentg_forward_pallas.15
$region0: #{disentg_forward_pallas.15}
  #allocation0 [shape = 'u32[]', space=smem, size = 0x4, offset = 0x4, fixed_abs, tag = 'smem constant byte address 0x4 - core index']
  #allocation1 [shape = 'u32[144,128]{1,0:T(1,128)}', space=vmem, size = 0x12000, scoped, tag = 'internal scratch']
  %s0 = inlined_call_operand.vmem [shape: bf16[72,288], index: 0, kind: input, shape index: {}]
  %s1 = inlined_call_operand.vmem [shape: bf16[8,72], index: 1, kind: input, shape index: {}]
  %s2 = inlined_call_operand.vmem [shape: f32[8,288], index: 2, kind: input, shape index: {}]
  %s3 = inlined_call_operand.vmem [shape: f32[8,288], index: 3, kind: output, shape index: {}]
  %s4 = sld [smem:[#allocation0]]
  $region22: #{disentg_forward_pallas.15} parent=0
    _
  %s6 = ssub.s32 1, %s4
  %s7 = scalar_select 0, %s6, %s4
  // Predicated region
  $region2: #{disentg_forward_pallas.15} parent=0 // pred_check
    _
  $region3: #{disentg_forward_pallas.15} parent=0 // pred_check_branch
    %9 = sbr.rel (0) target = $region5
  $region4: #{disentg_forward_pallas.15} parent=0 // pred_region
    _
  $region5: #{disentg_forward_pallas.15} parent=0 // pred_fallthru
    _
  // Predicated region
  $region6: #{disentg_forward_pallas.15} parent=0 // pred_check
    _
  $region7: #{disentg_forward_pallas.15} parent=0 // pred_check_branch
    %11 = sbr.rel (0) target = $region9
  $region8: #{disentg_forward_pallas.15} parent=0 // pred_region
    _
  $region9: #{disentg_forward_pallas.15} parent=0 // pred_fallthru
    _
  // Predicated region
  $region10: #{disentg_forward_pallas.15} parent=0 // pred_check
    _
  $region11: #{disentg_forward_pallas.15} parent=0 // pred_check_branch
    %13 = sbr.rel (0) target = $region13
  $region12: #{disentg_forward_pallas.15} parent=0 // pred_region
    _
  $region13: #{disentg_forward_pallas.15} parent=0 // pred_fallthru
    _
  %v15 = vld [vmem:[%s1] sm:$0xf]
  %v16 = vld [vmem:[%s0] sm:$0xff]
  %v17 = vld [vmem:[%s0 + $0x8] sm:$0xf]
  %v18 = vld [vmem:[%s0 + $0xc] sm:$0xff]
  %v19 = vld [vmem:[%s0 + $0x14] sm:$0xf]
  %v20 = vld [vmem:[%s0 + $0x18] sm:$0xff]
  %v21 = vld [vmem:[%s0 + $0x20] sm:$0xf]
  %v22 = vld [vmem:[%s0 + $0x24] sm:$0xff]
  %v23 = vld [vmem:[%s0 + $0x2c] sm:$0xf]
  %v24 = vld [vmem:[%s0 + $0x30] sm:$0xff]
  %v25 = vld [vmem:[%s0 + $0x38] sm:$0xf]
  %v26 = vld [vmem:[%s0 + $0x3c] sm:$0xff]
  %v27 = vld [vmem:[%s0 + $0x44] sm:$0xf]
  %v28 = vld [vmem:[%s0 + $0x48] sm:$0xff]
  %v29 = vld [vmem:[%s0 + $0x50] sm:$0xf]
  %v30 = vld [vmem:[%s0 + $0x54] sm:$0xff]
  %v31 = vld [vmem:[%s0 + $0x5c] sm:$0xf]
  %v32 = vld [vmem:[%s0 + $0x60] sm:$0xff]
  %v33 = vld [vmem:[%s0 + $0x68] sm:$0xf]
  %v34 = vld [vmem:[%s2] sm:$0xff]
  %v35 = vld [vmem:[%s2 + $0x8] sm:$0xff]
  %v36 = vld [vmem:[%s2 + $0x10] sm:$0xff]
  %v55 = vunpack.c.l.b16 %v16
  %v56 = vunpack.c.h.b16 %v16
  %v57 = vunpack.c.l.b16 %v17
  %v58 = vunpack.c.l.b16 %v18
  %v59 = vunpack.c.h.b16 %v18
  %v60 = vunpack.c.l.b16 %v19
  %v61 = vunpack.c.l.b16 %v20
  %v62 = vunpack.c.h.b16 %v20
  %v63 = vunpack.c.l.b16 %v21
  %v64 = vunpack.c.l.b16 %v22
  %v65 = vunpack.c.h.b16 %v22
  %v66 = vunpack.c.l.b16 %v23
  %v67 = vunpack.c.l.b16 %v24
  %v68 = vunpack.c.h.b16 %v24
  %v69 = vunpack.c.l.b16 %v25
  %v70 = vunpack.c.l.b16 %v26
  %v71 = vunpack.c.h.b16 %v26
  %v72 = vunpack.c.l.b16 %v27
  %v73 = vunpack.c.l.b16 %v28
  %v74 = vunpack.c.h.b16 %v28
  %v75 = vunpack.c.l.b16 %v29
  %v76 = vunpack.c.l.b16 %v30
  %v77 = vunpack.c.h.b16 %v30
  %v78 = vunpack.c.l.b16 %v31
  %v79 = vunpack.c.l.b16 %v32
  %v80 = vunpack.c.h.b16 %v32
  %v81 = vunpack.c.l.b16 %v33
  %v82 = vpack.c.b16 %v58, %v55
  %v83 = vpack.c.b16 %v59, %v56
  %v84 = vpack.c.b16 %v60, %v57
  %v85 = vpack.c.b16 %v64, %v61
  %v86 = vpack.c.b16 %v65, %v62
  %v87 = vpack.c.b16 %v66, %v63
  %v88 = vpack.c.b16 %v70, %v67
  %v89 = vpack.c.b16 %v71, %v68
  %v90 = vpack.c.b16 %v72, %v69
  %v91 = vpack.c.b16 %v76, %v73
  %v92 = vpack.c.b16 %v77, %v74
  %v93 = vpack.c.b16 %v78, %v75
  %v94 = vpack.c.b16 %v79, %v79
  %v95 = vpack.c.b16 %v80, %v80
  %v96 = vpack.c.b16 %v81, %v81
  %vm109 = vcmask 588800
  %v111 = vsel %vm109, %v15, 0
  %vm113 = vcmask 1043456
  %v115 = vsel %vm113, %v94, 0
  %v118 = vsel %vm113, %v95, 0
  %v121 = vsel %vm113, %v96, 0
  %123 = vmatprep.subr.bf16.mxu0 %v83
  %124 = vmatpush1.bf16.msra.mxu0 %v82
  %125 = vmatprep.subr.bf16.mxu0 %v86
  %126 = vmatpush1.bf16.msra.mxu0 %v85
  %127 = vmatprep.subr.bf16.mxu0 %v89
  %128 = vmatpush1.bf16.msra.mxu0 %v88
  %129 = vmatprep.subr.bf16.mxu0 %v92
  %130 = vmatpush1.bf16.msra.mxu0 %v91
  %131 = vmatprep.subr.bf16.mxu0 %v118
  %132 = vmatpush1.bf16.msra.mxu0 %v115
  %133 = vmatprep.subr.bf16.mxu0 0
  %134 = vmatpush1.bf16.msra.mxu0 0
  %135 = vmatprep.subr.bf16.mxu0 0
  %136 = vmatpush1.bf16.msra.mxu0 0
  %137 = vmatprep.subr.bf16.mxu0 0
  %138 = vmatpush1.bf16.msra.mxu0 0
  %139 = vmatprep.subr.bf16.mxu0 0
  %140 = vmatpush1.bf16.msra.mxu0 0
  %141 = vmatprep.subr.bf16.mxu0 0
  %142 = vmatpush1.bf16.msra.mxu0 0
  %143 = vmatprep.subr.bf16.mxu0 0
  %144 = vmatpush1.bf16.msra.mxu0 0
  %145 = vmatprep.subr.bf16.mxu0 0
  %146 = vmatpush1.bf16.msra.mxu0 0
  %147 = vmatprep.subr.bf16.mxu0 0
  %148 = vmatpush1.bf16.msra.mxu0 0
  %149 = vmatprep.subr.bf16.mxu0 0
  %150 = vmatpush1.bf16.msra.mxu0 0
  %151 = vmatprep.subr.bf16.mxu0 0
  %152 = vmatpush1.bf16.msra.mxu0 0
  %153 = vmatprep.subr.bf16.mxu0 0
  %154 = vmatpush1.bf16.msra.mxu0 0
  %155 = vmatprep.mubr.bf16.mxu0 0
  %156 = vmatmul.mubr.bf16.gmra.mrb[0].mxu0 %v111
  %v157 = vpop.f32.mrb[0].mxu0
  %v158 = vadd.f32 %v34, %v157
  %v159 = vpop.f32.mrb[0].mxu0
  %v160 = vadd.f32 %v35, %v159
  %v161 = vpop.f32.mrb[0].mxu0
  %v162 = vpop.f32.mrb[0].mxu0
  %163 = vdwg.mxu0
  %164 = vmatprep.subr.bf16.mxu0 0
  %165 = vmatpush1.bf16.msra.mxu0 %v84
  %166 = vmatprep.subr.bf16.mxu0 0
  %167 = vmatpush1.bf16.msra.mxu0 %v87
  %168 = vmatprep.subr.bf16.mxu0 0
  %169 = vmatpush1.bf16.msra.mxu0 %v90
  %170 = vmatprep.subr.bf16.mxu0 0
  %171 = vmatpush1.bf16.msra.mxu0 %v93
  %172 = vmatprep.subr.bf16.mxu0 0
  %173 = vmatpush1.bf16.msra.mxu0 %v121
  %174 = vmatprep.subr.bf16.mxu0 0
  %175 = vmatpush1.bf16.msra.mxu0 0
  %176 = vmatprep.subr.bf16.mxu0 0
  %177 = vmatpush1.bf16.msra.mxu0 0
  %178 = vmatprep.subr.bf16.mxu0 0
  %179 = vmatpush1.bf16.msra.mxu0 0
  %180 = vmatprep.subr.bf16.mxu0 0
  %181 = vmatpush1.bf16.msra.mxu0 0
  %182 = vmatprep.subr.bf16.mxu0 0
  %183 = vmatpush1.bf16.msra.mxu0 0
  %184 = vmatprep.subr.bf16.mxu0 0
  %185 = vmatpush1.bf16.msra.mxu0 0
  %186 = vmatprep.subr.bf16.mxu0 0
  %187 = vmatpush1.bf16.msra.mxu0 0
  %188 = vmatprep.subr.bf16.mxu0 0
  %189 = vmatpush1.bf16.msra.mxu0 0
  %190 = vmatprep.subr.bf16.mxu0 0
  %191 = vmatpush1.bf16.msra.mxu0 0
  %192 = vmatprep.subr.bf16.mxu0 0
  %193 = vmatpush1.bf16.msra.mxu0 0
  %194 = vmatprep.subr.bf16.mxu0 0
  %195 = vmatpush1.bf16.msra.mxu0 0
  %196 = vmatprep.mubr.bf16.mxu0 0
  %197 = vmatmul.mubr.bf16.gmra.mrb[0].mxu0 %v111
  %v198 = vpop.f32.mrb[0].mxu0
  %v199 = vadd.f32 %v36, %v198
  %v200 = vpop.f32.mrb[0].mxu0
  %v201 = vpop.f32.mrb[0].mxu0
  %v202 = vpop.f32.mrb[0].mxu0
  %203 = vdwg.mxu0
  %204 = vst [vmem:[%s3] sm:$0xff] %v158
  %205 = vst [vmem:[%s3 + $0x8] sm:$0xff] %v160
  %vm206 = vcmask 261120
  %207 = vst.msk [vmem:[%s3 + $0x10] sm:$0xff] %vm206, %v199
  // Predicated region
  $region14: #{disentg_forward_pallas.15} parent=0 // pred_check
    _
  $region15: #{disentg_forward_pallas.15} parent=0 // pred_check_branch
    %209 = sbr.rel (0) target = $region17
  $region16: #{disentg_forward_pallas.15} parent=0 // pred_region
    _
  $region17: #{disentg_forward_pallas.15} parent=0 // pred_fallthru
    _
  // Predicated region
  $region18: #{disentg_forward_pallas.15} parent=0 // pred_check
    _
  $region19: #{disentg_forward_pallas.15} parent=0 // pred_check_branch
    %211 = sbr.rel (0) target = $region21
  $region20: #{disentg_forward_pallas.15} parent=0 // pred_region
    _
  $region21: #{disentg_forward_pallas.15} parent=0 // pred_fallthru
    _

// kernel: disentg_forward_pallas.14
$region0: #{disentg_forward_pallas.14}
  #allocation0 [shape = 'u32[]', space=smem, size = 0x4, offset = 0x4, fixed_abs, tag = 'smem constant byte address 0x4 - core index']
  #allocation1 [shape = 'u32[144,128]{1,0:T(1,128)}', space=vmem, size = 0x12000, scoped, tag = 'internal scratch']
  #allocation2 [shape = 'f32[28,2]{1,0:T(8,128)}', space=vmem, size = 0x4000, scoped, tag = 'scratch operand']
  %s0 = inlined_call_operand.vmem [shape: bf16[8,288], index: 0, kind: input, shape index: {}]
  %s1 = inlined_call_operand.vmem [shape: bf16[2,288], index: 1, kind: input, shape index: {}]
  %s2 = inlined_call_operand.vmem [shape: bf16[4,288], index: 2, kind: input, shape index: {}]
  %s3 = inlined_call_operand.vmem [shape: bf16[4,288], index: 3, kind: input, shape index: {}]
  %s4 = inlined_call_operand.vmem [shape: bf16[4,288], index: 4, kind: input, shape index: {}]
  %s5 = inlined_call_operand.vmem [shape: bf16[4,288], index: 5, kind: input, shape index: {}]
  %s6 = inlined_call_operand.vmem [shape: bf16[8,26], index: 6, kind: input, shape index: {}]
  %s7 = inlined_call_operand.vmem [shape: f32[3], index: 7, kind: input, shape index: {}]
  %s8 = inlined_call_operand.vmem [shape: bf16[8,288], index: 8, kind: output, shape index: {}]
  %s9 = sld [smem:[#allocation0]]
  $region46: #{disentg_forward_pallas.14} parent=0
    _
  %s11 = ssub.s32 1, %s9
  %s12 = scalar_select 0, %s11, %s9
  $region1: #{disentg_forward_pallas.14} parent=0
    #allocation3 [shape = 'u8[512]{0}', space=smem, size = 0x200, scoped, tag = 'input window, operand 7, single buffered']
    #allocation4 [shape = 's32[1]{0}', space=sflag, size = 0x4, scoped, tag = 'scoped memory for disentg_forward_pallas.14']
    %13 = vsyncpa [#allocation4], 0
    // Predicated region
    $region2: #{disentg_forward_pallas.14} parent=1 // pred_check
      _
    $region3: #{disentg_forward_pallas.14} parent=1 // pred_check_branch
      %15 = sbr.rel (0) target = $region5
    $region4: #{disentg_forward_pallas.14} parent=1 // pred_region
      _
    $region5: #{disentg_forward_pallas.14} parent=1 // pred_fallthru
      _
    // Predicated region
    $region6: #{disentg_forward_pallas.14} parent=1 // pred_check
      _
    $region7: #{disentg_forward_pallas.14} parent=1 // pred_check_branch
      %17 = sbr.rel (0) target = $region9
    $region8: #{disentg_forward_pallas.14} parent=1 // pred_region
      _
    $region9: #{disentg_forward_pallas.14} parent=1 // pred_fallthru
      _
    // Predicated region
    $region10: #{disentg_forward_pallas.14} parent=1 // pred_check
      _
    $region11: #{disentg_forward_pallas.14} parent=1 // pred_check_branch
      %19 = sbr.rel (0) target = $region13
    $region12: #{disentg_forward_pallas.14} parent=1 // pred_region
      _
    $region13: #{disentg_forward_pallas.14} parent=1 // pred_fallthru
      _
    // Predicated region
    $region14: #{disentg_forward_pallas.14} parent=1 // pred_check
      _
    $region15: #{disentg_forward_pallas.14} parent=1 // pred_check_branch
      %21 = sbr.rel (0) target = $region17
    $region16: #{disentg_forward_pallas.14} parent=1 // pred_region
      _
    $region17: #{disentg_forward_pallas.14} parent=1 // pred_fallthru
      _
    // Predicated region
    $region18: #{disentg_forward_pallas.14} parent=1 // pred_check
      _
    $region19: #{disentg_forward_pallas.14} parent=1 // pred_check_branch
      %23 = sbr.rel (0) target = $region21
    $region20: #{disentg_forward_pallas.14} parent=1 // pred_region
      _
    $region21: #{disentg_forward_pallas.14} parent=1 // pred_fallthru
      _
    // Predicated region
    $region22: #{disentg_forward_pallas.14} parent=1 // pred_check
      _
    $region23: #{disentg_forward_pallas.14} parent=1 // pred_check_branch
      %25 = sbr.rel (0) target = $region25
    $region24: #{disentg_forward_pallas.14} parent=1 // pred_region
      _
    $region25: #{disentg_forward_pallas.14} parent=1 // pred_fallthru
      _
    // Predicated region
    $region26: #{disentg_forward_pallas.14} parent=1 // pred_check
      _
    $region27: #{disentg_forward_pallas.14} parent=1 // pred_check_branch
      %27 = sbr.rel (0) target = $region29
    $region28: #{disentg_forward_pallas.14} parent=1 // pred_region
      _
    $region29: #{disentg_forward_pallas.14} parent=1 // pred_fallthru
      _
    // Predicated region
    $region30: #{disentg_forward_pallas.14} parent=1 // pred_check
      _
    $region31: #{disentg_forward_pallas.14} parent=1 // pred_check_branch
      %29 = sbr.rel (0) target = $region33
    $region32: #{disentg_forward_pallas.14} parent=1 // pred_region
      %s31 = ssub.s32 16, 16
      %32 = vsyncadd [#allocation4], %s31
      %s34 = sshll.u32 %s7, 4
      %s35 = int_to_ptr.vmem [resolvable:$true] %s34
      %37 = dma.vmem_to_smem %s35, 16, [#allocation3], [#allocation4]
    $region33: #{disentg_forward_pallas.14} parent=1 // pred_fallthru
      _
    // Predicated region
    $region34: #{disentg_forward_pallas.14} parent=1 // pred_check
      _
    $region35: #{disentg_forward_pallas.14} parent=1 // pred_check_branch
      %39 = sbr.rel (0) target = $region37
    $region36: #{disentg_forward_pallas.14} parent=1 // pred_region
      %40 = dma.done [#allocation4], 16
    $region37: #{disentg_forward_pallas.14} parent=1 // pred_fallthru
      _
    %41 = sfence
    %vm43 = vcmask 15360
    %44 = vst.msk [vmem:[#allocation2] sm:$0xff] %vm43, 0.0
    %45 = vst.msk [vmem:[#allocation2 + $0x8] sm:$0xff] %vm43, 0.0
    %46 = vst.msk [vmem:[#allocation2 + $0x10] sm:$0xff] %vm43, 0.0
    %vm47 = vcmask 11264
    %48 = vst.msk [vmem:[#allocation2 + $0x18] sm:$0xf] %vm47, 0.0
    %v49 = vld [vmem:[%s0] sm:$0xff]
    %v50 = vunpack.c.l.bf16 %v49
    %v51 = vunpack.c.h.bf16 %v49
    %vm52 = vcmask 130048
    %v53 = vsel %vm52, %v51, 0.0
    %v54 = vadd.f32 %v50, %v53
    %55 = vadd.xlane.f32.xlu0 %v54
    %v56 = vpop.xlane.xlu0 %55
    %v57 = vmul.f32 %v56, 0.0069444445
    %vm58 = vcmask 7168
    %59 = vst.msk [vmem:[#allocation2 + $0x1] sm:$0xff] %vm58, %v57
    %v60 = vld [vmem:[%s0 + $0x4] sm:$0xff]
    %v61 = vunpack.c.l.bf16 %v60
    %v62 = vunpack.c.h.bf16 %v60
    %65 = vrot.lane.b32.xlu0 %v61, 112
    %v66 = vpop.permute.xlu0 %65
    %67 = vrot.lane.b32.xlu0 %v62, 112
    %v68 = vpop.permute.xlu0 %67
    %vm69 = vcmask 916480
    %v70 = vsel %vm69, %v66, %v68
    %v73 = vsel %vm52, %v68, 0.0
    %v74 = vadd.f32 %v70, %v73
    %75 = vadd.xlane.f32.xlu0 %v74
    %v76 = vpop.xlane.xlu0 %75
    %v77 = vmul.f32 %v76, 0.0069444445
    %vm78 = vcmask 15368
    %79 = vst.msk [vmem:[#allocation2 + $0x1] sm:$0xff] %vm78, %v77
    %v80 = vld [vmem:[%s1] sm:$0x3]
    %v81 = vunpack.c.l.bf16 %v80
    %v84 = vunpack.c.l.s4 1983009808
    %v85 = vunpack.c.0.s8 %v84
    %v86 = vlaneseq
    %v87 = vshrl.u32 %v86, 7
    %v88 = vsub.s32 %v85, %v87
    %v89 = vrot.slane %v81, %v88
    %v90 = vcombine.high %v89, %v89
    %vm93 = vcmask 1041408
    %v94 = vsel %vm93, %v89, 0.0
    %vm95 = vcmask 123904
    %v96 = vsel %vm95, %v90, 0.0
    %v97 = vadd.f32 %v94, %v96
    %98 = vadd.xlane.f32.xlu0 %v97
    %v99 = vpop.xlane.xlu0 %98
    %v100 = vmul.f32 %v99, 0.0069444445
    %vm101 = vcmask 1024
    %102 = vst.msk [vmem:[#allocation2 + $0x9] sm:$0x3] %vm101, %v100
    %v103 = vld [vmem:[%s1 + $0x1] sm:$0x3]
    %v104 = vunpack.c.l.bf16 %v103
    %v107 = vunpack.c.l.s4 1983009808
    %v108 = vunpack.c.0.s8 %v107
    %v109 = vlaneseq
    %v110 = vshrl.u32 %v109, 7
    %v111 = vsub.s32 %v108, %v110
    %v112 = vrot.slane %v104, %v111
    %v113 = vcombine.high %v112, %v112
    %114 = vrot.lane.b32.xlu0 %v112, 112
    %v115 = vpop.permute.xlu0 %114
    %116 = vrot.lane.b32.xlu0 %v113, 112
    %v117 = vpop.permute.xlu0 %116
    %v118 = vsel %vm69, %v115, %v117
    %v121 = vsel %vm93, %v118, 0.0
    %v122 = vsel %vm95, %v117, 0.0
    %v123 = vadd.f32 %v121, %v122
    %124 = vadd.xlane.f32.xlu0 %v123
    %v125 = vpop.xlane.xlu0 %124
    %v126 = vmul.f32 %v125, 0.0069444445
    %vm127 = vcmask 9224
    %128 = vst.msk [vmem:[#allocation2 + $0x9] sm:$0x3] %vm127, %v126
    %v129 = vld [vmem:[%s2] sm:$0xf]
    %v130 = vunpack.c.l.bf16 %v129
    %v132 = vcombine.high %v130, %v130
    %vm134 = vcmask 1043456
    %v135 = vsel %vm134, %v130, 0.0
    %vm136 = vcmask 125952
    %v137 = vsel %vm136, %v132, 0.0
    %v138 = vadd.f32 %v135, %v137
    %139 = vadd.xlane.f32.xlu0 %v138
    %v140 = vpop.xlane.xlu0 %139
    %v141 = vmul.f32 %v140, 0.0069444445
    %vm142 = vcmask 3072
    %143 = vst.msk [vmem:[#allocation2 + $0xb] sm:$0xf] %vm142, %v141
    %v144 = vld [vmem:[%s2 + $0x2] sm:$0xf]
    %v145 = vunpack.c.l.bf16 %v144
    %v147 = vcombine.high %v145, %v145
    %148 = vrot.lane.b32.xlu0 %v145, 112
    %v149 = vpop.permute.xlu0 %148
    %150 = vrot.lane.b32.xlu0 %v147, 112
    %v151 = vpop.permute.xlu0 %150
    %v152 = vsel %vm69, %v149, %v151
    %v155 = vsel %vm134, %v152, 0.0
    %v156 = vsel %vm136, %v151, 0.0
    %v157 = vadd.f32 %v155, %v156
    %158 = vadd.xlane.f32.xlu0 %v157
    %v159 = vpop.xlane.xlu0 %158
    %v160 = vmul.f32 %v159, 0.0069444445
    %vm161 = vcmask 11272
    %162 = vst.msk [vmem:[#allocation2 + $0xb] sm:$0xf] %vm161, %v160
    %v163 = vld [vmem:[%s3] sm:$0xf]
    %v164 = vunpack.c.l.bf16 %v163
    %v166 = vcombine.high %v164, %v164
    %v168 = vsel %vm134, %v164, 0.0
    %v169 = vsel %vm136, %v166, 0.0
    %v170 = vadd.f32 %v168, %v169
    %171 = vadd.xlane.f32.xlu0 %v170
    %v172 = vpop.xlane.xlu0 %171
    %v173 = vmul.f32 %v172, 0.0069444445
    %174 = vst.msk [vmem:[#allocation2 + $0xf] sm:$0xf] %vm142, %v173
    %v175 = vld [vmem:[%s3 + $0x2] sm:$0xf]
    %v176 = vunpack.c.l.bf16 %v175
    %v178 = vcombine.high %v176, %v176
    %179 = vrot.lane.b32.xlu0 %v176, 112
    %v180 = vpop.permute.xlu0 %179
    %181 = vrot.lane.b32.xlu0 %v178, 112
    %v182 = vpop.permute.xlu0 %181
    %v183 = vsel %vm69, %v180, %v182
    %v186 = vsel %vm134, %v183, 0.0
    %v187 = vsel %vm136, %v182, 0.0
    %v188 = vadd.f32 %v186, %v187
    %189 = vadd.xlane.f32.xlu0 %v188
    %v190 = vpop.xlane.xlu0 %189
    %v191 = vmul.f32 %v190, 0.0069444445
    %192 = vst.msk [vmem:[#allocation2 + $0xf] sm:$0xf] %vm161, %v191
    %v193 = vld [vmem:[%s4] sm:$0xf]
    %v194 = vunpack.c.l.bf16 %v193
    %v196 = vcombine.high %v194, %v194
    %v198 = vsel %vm134, %v194, 0.0
    %v199 = vsel %vm136, %v196, 0.0
    %v200 = vadd.f32 %v198, %v199
    %201 = vadd.xlane.f32.xlu0 %v200
    %v202 = vpop.xlane.xlu0 %201
    %v203 = vmul.f32 %v202, 0.0069444445
    %204 = vst.msk [vmem:[#allocation2 + $0x13] sm:$0xf] %vm142, %v203
    %v205 = vld [vmem:[%s4 + $0x2] sm:$0xf]
    %v206 = vunpack.c.l.bf16 %v205
    %v208 = vcombine.high %v206, %v206
    %209 = vrot.lane.b32.xlu0 %v206, 112
    %v210 = vpop.permute.xlu0 %209
    %211 = vrot.lane.b32.xlu0 %v208, 112
    %v212 = vpop.permute.xlu0 %211
    %v213 = vsel %vm69, %v210, %v212
    %v216 = vsel %vm134, %v213, 0.0
    %v217 = vsel %vm136, %v212, 0.0
    %v218 = vadd.f32 %v216, %v217
    %219 = vadd.xlane.f32.xlu0 %v218
    %v220 = vpop.xlane.xlu0 %219
    %v221 = vmul.f32 %v220, 0.0069444445
    %222 = vst.msk [vmem:[#allocation2 + $0x13] sm:$0xf] %vm161, %v221
    %v223 = vld [vmem:[%s5] sm:$0xf]
    %v224 = vunpack.c.l.bf16 %v223
    %v226 = vcombine.high %v224, %v224
    %v228 = vsel %vm134, %v224, 0.0
    %v229 = vsel %vm136, %v226, 0.0
    %v230 = vadd.f32 %v228, %v229
    %231 = vadd.xlane.f32.xlu0 %v230
    %v232 = vpop.xlane.xlu0 %231
    %v233 = vmul.f32 %v232, 0.0069444445
    %234 = vst.msk [vmem:[#allocation2 + $0x17] sm:$0xf] %vm142, %v233
    %v235 = vld [vmem:[%s5 + $0x2] sm:$0xf]
    %v236 = vunpack.c.l.bf16 %v235
    %v238 = vcombine.high %v236, %v236
    %239 = vrot.lane.b32.xlu0 %v236, 112
    %v240 = vpop.permute.xlu0 %239
    %241 = vrot.lane.b32.xlu0 %v238, 112
    %v242 = vpop.permute.xlu0 %241
    %v243 = vsel %vm69, %v240, %v242
    %v246 = vsel %vm134, %v243, 0.0
    %v247 = vsel %vm136, %v242, 0.0
    %v248 = vadd.f32 %v246, %v247
    %249 = vadd.xlane.f32.xlu0 %v248
    %v250 = vpop.xlane.xlu0 %249
    %v251 = vmul.f32 %v250, 0.0069444445
    %252 = vst.msk [vmem:[#allocation2 + $0x17] sm:$0xf] %vm161, %v251
    %s253 = sld [smem:[#allocation3]]
    %s254 = sld [smem:[#allocation3 + $0x1]]
    %s255 = sld [smem:[#allocation3 + $0x2]]
    %v256 = vld [vmem:[#allocation2] sm:$0xff]
    %v257 = vld [vmem:[#allocation2 + $0x8] sm:$0xff]
    %v258 = vld [vmem:[#allocation2 + $0x10] sm:$0xff]
    %v259 = vld [vmem:[#allocation2 + $0x18] sm:$0x3]
    %v260 = vstv %s253
    %v261 = vmul.f32 %v260, %v256
    %v262 = vmul.f32 %v260, %v257
    %v263 = vmul.f32 %v260, %v258
    %v264 = vmul.f32 %v260, %v259
    %v265 = vld [vmem:[#allocation2 + $0x1] sm:$0xff]
    %v266 = vld [vmem:[#allocation2 + $0x9] sm:$0xff]
    %v267 = vld [vmem:[#allocation2 + $0x11] sm:$0xff]
    %v268 = vld [vmem:[#allocation2 + $0x19] sm:$0x3]
    %v269 = vstv %s254
    %v270 = vmul.f32 %v269, %v265
    %v271 = vmul.f32 %v269, %v266
    %v272 = vmul.f32 %v269, %v267
    %v273 = vmul.f32 %v269, %v268
    %v274 = vadd.f32 %v261, %v270
    %v275 = vadd.f32 %v262, %v271
    %v276 = vadd.f32 %v263, %v272
    %v277 = vadd.f32 %v264, %v273
    %v278 = vld [vmem:[#allocation2 + $0x2] sm:$0xff]
    %v279 = vld [vmem:[#allocation2 + $0xa] sm:$0xff]
    %v280 = vld [vmem:[#allocation2 + $0x12] sm:$0xff]
    %v281 = vld [vmem:[#allocation2 + $0x1a] sm:$0x3]
    %v282 = vstv %s255
    %v283 = vmul.f32 %v282, %v278
    %v284 = vmul.f32 %v282, %v279
    %v285 = vmul.f32 %v282, %v280
    %v286 = vmul.f32 %v282, %v281
    %v287 = vadd.f32 %v274, %v283
    %v288 = vadd.f32 %v275, %v284
    %v289 = vadd.f32 %v276, %v285
    %v290 = vadd.f32 %v277, %v286
    %v291 = vxor.u32 %v287, 2147483648
    %v292 = vxor.u32 %v288, 2147483648
    %v293 = vxor.u32 %v289, 2147483648
    %v294 = vxor.u32 %v290, 2147483648
    %v295 = vmul.f32 %v291, 1.442695
    %v296 = vpow.pop %v295
    %v297 = vmul.f32 %v292, 1.442695
    %v298 = vpow.pop %v297
    %v299 = vmul.f32 %v293, 1.442695
    %v300 = vpow.pop %v299
    %v301 = vmul.f32 %v294, 1.442695
    %v302 = vpow.pop %v301
    %v303 = vadd.f32 %v296, 1.0
    %v304 = vadd.f32 %v298, 1.0
    %v305 = vadd.f32 %v300, 1.0
    %v306 = vadd.f32 %v302, 1.0
    %v307 = vrcp.pop %v303
    %v308 = vmul.f32 1.0, %v307
    %v309 = vrcp.pop %v304
    %v310 = vmul.f32 1.0, %v309
    %v311 = vrcp.pop %v305
    %v312 = vmul.f32 1.0, %v311
    %v313 = vrcp.pop %v306
    %v314 = vmul.f32 1.0, %v313
    %v315 = vld [vmem:[%s6] sm:$0xf]
    %v316 = vld [vmem:[%s0] sm:$0xff]
    %v317 = vunpack.c.l.bf16 %v316
    %v318 = vunpack.c.h.bf16 %v316
    %320 = vset.pattern.permute.xlu0 0
    %321 = vperm.xlu0 %320, %v308
    %v322 = vpop.permute.xlu0 %321
    %v324 = vmul.f32 %v317, %v322
    %v325 = vmul.f32 %v318, %v322
    %v326 = vpack.c.bf16 %v324, %v324
    %v327 = vpack.c.bf16 %v325, %v325
    %v328 = vld [vmem:[%s1] sm:$0x3]
    %v329 = vunpack.c.l.bf16 %v328
    %331 = vset.pattern.permute.xlu0 0
    %332 = vperm.xlu0 %331, %v310
    %v333 = vpop.permute.xlu0 %332
    %v335 = vunpack.c.l.s4 269488144
    %v336 = vunpack.c.0.s8 %v335
    %v337 = vlaneseq
    %v338 = vshrl.u32 %v337, 7
    %v339 = vsub.s32 %v336, %v338
    %v340 = vrot.slane %v333, %v339
    %v342 = vmul.f32 %v329, %v340
    %v345 = vunpack.c.l.s4 1983009808
    %v346 = vunpack.c.0.s8 %v345
    %v347 = vlaneseq
    %v348 = vshrl.u32 %v347, 7
    %v349 = vsub.s32 %v346, %v348
    %v350 = vrot.slane %v342, %v349
    %v351 = vcombine.high %v350, %v350
    %v354 = vpack.c.bf16 %v350, %v350
    %v355 = vpack.c.bf16 %v351, %v351
    %v357 = vunpack.c.l.b16 %v315
    %v358 = vpack.c.b16 %v357, %v357
    %359 = vrot.lane.b32.xlu0 %v358, 120
    %v360 = vpop.permute.xlu0 %359
    %v362 = vsel %vm43, %v360, 0
    %vm364 = vcmask 1040384
    %v366 = vsel %vm364, %v354, 0
    %v369 = vsel %vm364, %v355, 0
    %371 = vmatprep.subr.bf16.mxu0 %v369
    %372 = vmatpush1.bf16.msra.mxu0 %v366
    %373 = vmatprep.subr.bf16.mxu0 0
    %374 = vmatpush1.bf16.msra.mxu0 0
    %375 = vmatprep.subr.bf16.mxu0 0
    %376 = vmatpush1.bf16.msra.mxu0 0
    %377 = vmatprep.subr.bf16.mxu0 0
    %378 = vmatpush1.bf16.msra.mxu0 0
    %379 = vmatprep.subr.bf16.mxu0 0
    %380 = vmatpush1.bf16.msra.mxu0 0
    %381 = vmatprep.subr.bf16.mxu0 0
    %382 = vmatpush1.bf16.msra.mxu0 0
    %383 = vmatprep.subr.bf16.mxu0 0
    %384 = vmatpush1.bf16.msra.mxu0 0
    %385 = vmatprep.subr.bf16.mxu0 0
    %386 = vmatpush1.bf16.msra.mxu0 0
    %387 = vmatprep.subr.bf16.mxu0 0
    %388 = vmatpush1.bf16.msra.mxu0 0
    %389 = vmatprep.subr.bf16.mxu0 0
    %390 = vmatpush1.bf16.msra.mxu0 0
    %391 = vmatprep.subr.bf16.mxu0 0
    %392 = vmatpush1.bf16.msra.mxu0 0
    %393 = vmatprep.subr.bf16.mxu0 0
    %394 = vmatpush1.bf16.msra.mxu0 0
    %395 = vmatprep.subr.bf16.mxu0 0
    %396 = vmatpush1.bf16.msra.mxu0 0
    %397 = vmatprep.subr.bf16.mxu0 0
    %398 = vmatpush1.bf16.msra.mxu0 0
    %399 = vmatprep.subr.bf16.mxu0 0
    %400 = vmatpush1.bf16.msra.mxu0 0
    %401 = vmatprep.subr.bf16.mxu0 0
    %402 = vmatpush1.bf16.msra.mxu0 0
    %403 = vmatprep.mubr.bf16.mxu0 0
    %404 = vmatmul.mubr.bf16.gmra.mrb[0].mxu0 %v362
    %v405 = vpop.f32.mrb[0].mxu0
    %v406 = vadd.f32 0.0, %v405
    %v407 = vpop.f32.mrb[0].mxu0
    %v408 = vadd.f32 0.0, %v407
    %v409 = vpop.f32.mrb[0].mxu0
    %v410 = vpop.f32.mrb[0].mxu0
    %411 = vdwg.mxu0
    %vm412 = vcmask 64512
    %v414 = vsel %vm412, %v315, 0
    %v417 = vsel %vm134, %v326, 0
    %v420 = vsel %vm134, %v327, 0
    %422 = vmatprep.subr.bf16.mxu0 %v420
    %423 = vmatpush1.bf16.msra.mxu0 %v417
    %424 = vmatprep.subr.bf16.mxu0 0
    %425 = vmatpush1.bf16.msra.mxu0 0
    %426 = vmatprep.subr.bf16.mxu0 0
    %427 = vmatpush1.bf16.msra.mxu0 0
    %428 = vmatprep.subr.bf16.mxu0 0
    %429 = vmatpush1.bf16.msra.mxu0 0
    %430 = vmatprep.subr.bf16.mxu0 0
    %431 = vmatpush1.bf16.msra.mxu0 0
    %432 = vmatprep.subr.bf16.mxu0 0
    %433 = vmatpush1.bf16.msra.mxu0 0
    %434 = vmatprep.subr.bf16.mxu0 0
    %435 = vmatpush1.bf16.msra.mxu0 0
    %436 = vmatprep.subr.bf16.mxu0 0
    %437 = vmatpush1.bf16.msra.mxu0 0
    %438 = vmatprep.subr.bf16.mxu0 0
    %439 = vmatpush1.bf16.msra.mxu0 0
    %440 = vmatprep.subr.bf16.mxu0 0
    %441 = vmatpush1.bf16.msra.mxu0 0
    %442 = vmatprep.subr.bf16.mxu0 0
    %443 = vmatpush1.bf16.msra.mxu0 0
    %444 = vmatprep.subr.bf16.mxu0 0
    %445 = vmatpush1.bf16.msra.mxu0 0
    %446 = vmatprep.subr.bf16.mxu0 0
    %447 = vmatpush1.bf16.msra.mxu0 0
    %448 = vmatprep.subr.bf16.mxu0 0
    %449 = vmatpush1.bf16.msra.mxu0 0
    %450 = vmatprep.subr.bf16.mxu0 0
    %451 = vmatpush1.bf16.msra.mxu0 0
    %452 = vmatprep.subr.bf16.mxu0 0
    %453 = vmatpush1.bf16.msra.mxu0 0
    %454 = vmatprep.mubr.bf16.mxu0 0
    %455 = vmatmul.mubr.bf16.gmra.mrb[0].mxu0 %v414
    %v456 = vpop.f32.mrb[0].mxu0
    %v457 = vadd.f32 %v406, %v456
    %v458 = vpop.f32.mrb[0].mxu0
    %v459 = vadd.f32 %v408, %v458
    %v460 = vpop.f32.mrb[0].mxu0
    %v461 = vpop.f32.mrb[0].mxu0
    %462 = vdwg.mxu0
    %v463 = vld [vmem:[%s2] sm:$0xf]
    %v464 = vunpack.c.l.bf16 %v463
    %v466 = vunpack.c.l.s4 839922192
    %v467 = vunpack.c.0.s8 %v466
    %v468 = vlaneseq
    %v469 = vshrl.u32 %v468, 7
    %v470 = vsub.s32 %v467, %v469
    %v471 = vrot.slane %v333, %v470
    %v473 = vunpack.c.l.s4 1985246804
    %v474 = vunpack.c.0.s8 %v473
    %v475 = vlaneseq
    %v476 = vshrl.u32 %v475, 7
    %v477 = vsub.s32 %v474, %v476
    %v478 = vrot.slane %v333, %v477
    %vm479 = vcmask 1045508
    %vm480 = vmor %vm93, %vm479
    %v481 = vrot.slane %v471, 6
    %v482 = vrot.slane %v481, 4
    %v483 = vrot.slane %v478, 6
    %v484 = vsel %vm480, %v482, %v483
    %v486 = vmul.f32 %v464, %v484
    %v488 = vcombine.high %v486, %v486
    %v490 = vpack.c.bf16 %v486, %v486
    %v491 = vpack.c.bf16 %v488, %v488
    %492 = vrot.lane.b32.xlu0 %v358, 118
    %v493 = vpop.permute.xlu0 %492
    %vm494 = vcmask 31744
    %v496 = vsel %vm494, %v493, 0
    %v499 = vsel %vm93, %v490, 0
    %v502 = vsel %vm93, %v491, 0
    %504 = vmatprep.subr.bf16.mxu0 %v502
    %505 = vmatpush1.bf16.msra.mxu0 %v499
    %506 = vmatprep.subr.bf16.mxu0 0
    %507 = vmatpush1.bf16.msra.mxu0 0
    %508 = vmatprep.subr.bf16.mxu0 0
    %509 = vmatpush1.bf16.msra.mxu0 0
    %510 = vmatprep.subr.bf16.mxu0 0
    %511 = vmatpush1.bf16.msra.mxu0 0
    %512 = vmatprep.subr.bf16.mxu0 0
    %513 = vmatpush1.bf16.msra.mxu0 0
    %514 = vmatprep.subr.bf16.mxu0 0
    %515 = vmatpush1.bf16.msra.mxu0 0
    %516 = vmatprep.subr.bf16.mxu0 0
    %517 = vmatpush1.bf16.msra.mxu0 0
    %518 = vmatprep.subr.bf16.mxu0 0
    %519 = vmatpush1.bf16.msra.mxu0 0
    %520 = vmatprep.subr.bf16.mxu0 0
    %521 = vmatpush1.bf16.msra.mxu0 0
    %522 = vmatprep.subr.bf16.mxu0 0
    %523 = vmatpush1.bf16.msra.mxu0 0
    %524 = vmatprep.subr.bf16.mxu0 0
    %525 = vmatpush1.bf16.msra.mxu0 0
    %526 = vmatprep.subr.bf16.mxu0 0
    %527 = vmatpush1.bf16.msra.mxu0 0
    %528 = vmatprep.subr.bf16.mxu0 0
    %529 = vmatpush1.bf16.msra.mxu0 0
    %530 = vmatprep.subr.bf16.mxu0 0
    %531 = vmatpush1.bf16.msra.mxu0 0
    %532 = vmatprep.subr.bf16.mxu0 0
    %533 = vmatpush1.bf16.msra.mxu0 0
    %534 = vmatprep.subr.bf16.mxu0 0
    %535 = vmatpush1.bf16.msra.mxu0 0
    %536 = vmatprep.mubr.bf16.mxu0 0
    %537 = vmatmul.mubr.bf16.gmra.mrb[0].mxu0 %v496
    %v538 = vpop.f32.mrb[0].mxu0
    %v539 = vadd.f32 0.0, %v538
    %v540 = vpop.f32.mrb[0].mxu0
    %v541 = vadd.f32 0.0, %v540
    %v542 = vpop.f32.mrb[0].mxu0
    %v543 = vpop.f32.mrb[0].mxu0
    %544 = vdwg.mxu0
    %v545 = vadd.f32 %v457, %v539
    %v546 = vadd.f32 %v459, %v541
    %v547 = vld [vmem:[%s3] sm:$0xf]
    %v548 = vunpack.c.l.bf16 %v547
    %550 = vset.pattern.permute.xlu0 0
    %551 = vperm.xlu0 %550, %v312
    %v552 = vpop.permute.xlu0 %551
    %v554 = vunpack.c.l.s4 839922192
    %v555 = vunpack.c.0.s8 %v554
    %v556 = vlaneseq
    %v557 = vshrl.u32 %v556, 7
    %v558 = vsub.s32 %v555, %v557
    %v559 = vrot.slane %v552, %v558
    %v560 = vrot.slane %v483, 4
    %v561 = vrot.slane %v559, 6
    %v562 = vsel %vm480, %v560, %v561
    %v564 = vmul.f32 %v548, %v562
    %v566 = vcombine.high %v564, %v564
    %v568 = vpack.c.bf16 %v564, %v564
    %v569 = vpack.c.bf16 %v566, %v566
    %570 = vrot.lane.b32.xlu0 %v358, 114
    %v571 = vpop.permute.xlu0 %570
    %v573 = vsel %vm494, %v571, 0
    %v576 = vsel %vm93, %v568, 0
    %v579 = vsel %vm93, %v569, 0
    %581 = vmatprep.subr.bf16.mxu0 %v579
    %582 = vmatpush1.bf16.msra.mxu0 %v576
    %583 = vmatprep.subr.bf16.mxu0 0
    %584 = vmatpush1.bf16.msra.mxu0 0
    %585 = vmatprep.subr.bf16.mxu0 0
    %586 = vmatpush1.bf16.msra.mxu0 0
    %587 = vmatprep.subr.bf16.mxu0 0
    %588 = vmatpush1.bf16.msra.mxu0 0
    %589 = vmatprep.subr.bf16.mxu0 0
    %590 = vmatpush1.bf16.msra.mxu0 0
    %591 = vmatprep.subr.bf16.mxu0 0
    %592 = vmatpush1.bf16.msra.mxu0 0
    %593 = vmatprep.subr.bf16.mxu0 0
    %594 = vmatpush1.bf16.msra.mxu0 0
    %595 = vmatprep.subr.bf16.mxu0 0
    %596 = vmatpush1.bf16.msra.mxu0 0
    %597 = vmatprep.subr.bf16.mxu0 0
    %598 = vmatpush1.bf16.msra.mxu0 0
    %599 = vmatprep.subr.bf16.mxu0 0
    %600 = vmatpush1.bf16.msra.mxu0 0
    %601 = vmatprep.subr.bf16.mxu0 0
    %602 = vmatpush1.bf16.msra.mxu0 0
    %603 = vmatprep.subr.bf16.mxu0 0
    %604 = vmatpush1.bf16.msra.mxu0 0
    %605 = vmatprep.subr.bf16.mxu0 0
    %606 = vmatpush1.bf16.msra.mxu0 0
    %607 = vmatprep.subr.bf16.mxu0 0
    %608 = vmatpush1.bf16.msra.mxu0 0
    %609 = vmatprep.subr.bf16.mxu0 0
    %610 = vmatpush1.bf16.msra.mxu0 0
    %611 = vmatprep.subr.bf16.mxu0 0
    %612 = vmatpush1.bf16.msra.mxu0 0
    %613 = vmatprep.mubr.bf16.mxu0 0
    %614 = vmatmul.mubr.bf16.gmra.mrb[0].mxu0 %v573
    %v615 = vpop.f32.mrb[0].mxu0
    %v616 = vadd.f32 0.0, %v615
    %v617 = vpop.f32.mrb[0].mxu0
    %v618 = vadd.f32 0.0, %v617
    %v619 = vpop.f32.mrb[0].mxu0
    %v620 = vpop.f32.mrb[0].mxu0
    %621 = vdwg.mxu0
    %v622 = vadd.f32 %v545, %v616
    %v623 = vadd.f32 %v546, %v618
    %v624 = vld [vmem:[%s4] sm:$0xf]
    %v625 = vunpack.c.l.bf16 %v624
    %v627 = vunpack.c.l.s4 1985246804
    %v628 = vunpack.c.0.s8 %v627
    %v629 = vlaneseq
    %v630 = vshrl.u32 %v629, 7
    %v631 = vsub.s32 %v628, %v630
    %v632 = vrot.slane %v552, %v631
    %v633 = vrot.slane %v561, 4
    %v634 = vrot.slane %v632, 6
    %v635 = vsel %vm480, %v633, %v634
    %v637 = vmul.f32 %v625, %v635
    %v639 = vcombine.high %v637, %v637
    %v641 = vpack.c.bf16 %v637, %v637
    %v642 = vpack.c.bf16 %v639, %v639
    %643 = vrot.lane.b32.xlu0 %v358, 110
    %v644 = vpop.permute.xlu0 %643
    %v646 = vsel %vm494, %v644, 0
    %v649 = vsel %vm93, %v641, 0
    %v652 = vsel %vm93, %v642, 0
    %654 = vmatprep.subr.bf16.mxu0 %v652
    %655 = vmatpush1.bf16.msra.mxu0 %v649
    %656 = vmatprep.subr.bf16.mxu0 0
    %657 = vmatpush1.bf16.msra.mxu0 0
    %658 = vmatprep.subr.bf16.mxu0 0
    %659 = vmatpush1.bf16.msra.mxu0 0
    %660 = vmatprep.subr.bf16.mxu0 0
    %661 = vmatpush1.bf16.msra.mxu0 0
    %662 = vmatprep.subr.bf16.mxu0 0
    %663 = vmatpush1.bf16.msra.mxu0 0
    %664 = vmatprep.subr.bf16.mxu0 0
    %665 = vmatpush1.bf16.msra.mxu0 0
    %666 = vmatprep.subr.bf16.mxu0 0
    %667 = vmatpush1.bf16.msra.mxu0 0
    %668 = vmatprep.subr.bf16.mxu0 0
    %669 = vmatpush1.bf16.msra.mxu0 0
    %670 = vmatprep.subr.bf16.mxu0 0
    %671 = vmatpush1.bf16.msra.mxu0 0
    %672 = vmatprep.subr.bf16.mxu0 0
    %673 = vmatpush1.bf16.msra.mxu0 0
    %674 = vmatprep.subr.bf16.mxu0 0
    %675 = vmatpush1.bf16.msra.mxu0 0
    %676 = vmatprep.subr.bf16.mxu0 0
    %677 = vmatpush1.bf16.msra.mxu0 0
    %678 = vmatprep.subr.bf16.mxu0 0
    %679 = vmatpush1.bf16.msra.mxu0 0
    %680 = vmatprep.subr.bf16.mxu0 0
    %681 = vmatpush1.bf16.msra.mxu0 0
    %682 = vmatprep.subr.bf16.mxu0 0
    %683 = vmatpush1.bf16.msra.mxu0 0
    %684 = vmatprep.subr.bf16.mxu0 0
    %685 = vmatpush1.bf16.msra.mxu0 0
    %686 = vmatprep.mubr.bf16.mxu0 0
    %687 = vmatmul.mubr.bf16.gmra.mrb[0].mxu0 %v646
    %v688 = vpop.f32.mrb[0].mxu0
    %v689 = vadd.f32 0.0, %v688
    %v690 = vpop.f32.mrb[0].mxu0
    %v691 = vadd.f32 0.0, %v690
    %v692 = vpop.f32.mrb[0].mxu0
    %v693 = vpop.f32.mrb[0].mxu0
    %694 = vdwg.mxu0
    %v695 = vadd.f32 %v622, %v689
    %v696 = vadd.f32 %v623, %v691
    %v697 = vld [vmem:[%s5] sm:$0xf]
    %v698 = vunpack.c.l.bf16 %v697
    %700 = vset.pattern.permute.xlu0 0
    %701 = vperm.xlu0 %700, %v314
    %v702 = vpop.permute.xlu0 %701
    %v704 = vunpack.c.l.s4 839922192
    %v705 = vunpack.c.0.s8 %v704
    %v706 = vlaneseq
    %v707 = vshrl.u32 %v706, 7
    %v708 = vsub.s32 %v705, %v707
    %v709 = vrot.slane %v702, %v708
    %v710 = vrot.slane %v634, 4
    %v711 = vrot.slane %v709, 6
    %v712 = vsel %vm480, %v710, %v711
    %v714 = vmul.f32 %v698, %v712
    %v716 = vcombine.high %v714, %v714
    %v718 = vpack.c.bf16 %v714, %v714
    %v719 = vpack.c.bf16 %v716, %v716
    %720 = vrot.lane.b32.xlu0 %v358, 106
    %v721 = vpop.permute.xlu0 %720
    %v723 = vsel %vm494, %v721, 0
    %v726 = vsel %vm93, %v718, 0
    %v729 = vsel %vm93, %v719, 0
    %731 = vmatprep.subr.bf16.mxu0 %v729
    %732 = vmatpush1.bf16.msra.mxu0 %v726
    %733 = vmatprep.subr.bf16.mxu0 0
    %734 = vmatpush1.bf16.msra.mxu0 0
    %735 = vmatprep.subr.bf16.mxu0 0
    %736 = vmatpush1.bf16.msra.mxu0 0
    %737 = vmatprep.subr.bf16.mxu0 0
    %738 = vmatpush1.bf16.msra.mxu0 0
    %739 = vmatprep.subr.bf16.mxu0 0
    %740 = vmatpush1.bf16.msra.mxu0 0
    %741 = vmatprep.subr.bf16.mxu0 0
    %742 = vmatpush1.bf16.msra.mxu0 0
    %743 = vmatprep.subr.bf16.mxu0 0
    %744 = vmatpush1.bf16.msra.mxu0 0
    %745 = vmatprep.subr.bf16.mxu0 0
    %746 = vmatpush1.bf16.msra.mxu0 0
    %747 = vmatprep.subr.bf16.mxu0 0
    %748 = vmatpush1.bf16.msra.mxu0 0
    %749 = vmatprep.subr.bf16.mxu0 0
    %750 = vmatpush1.bf16.msra.mxu0 0
    %751 = vmatprep.subr.bf16.mxu0 0
    %752 = vmatpush1.bf16.msra.mxu0 0
    %753 = vmatprep.subr.bf16.mxu0 0
    %754 = vmatpush1.bf16.msra.mxu0 0
    %755 = vmatprep.subr.bf16.mxu0 0
    %756 = vmatpush1.bf16.msra.mxu0 0
    %757 = vmatprep.subr.bf16.mxu0 0
    %758 = vmatpush1.bf16.msra.mxu0 0
    %759 = vmatprep.subr.bf16.mxu0 0
    %760 = vmatpush1.bf16.msra.mxu0 0
    %761 = vmatprep.subr.bf16.mxu0 0
    %762 = vmatpush1.bf16.msra.mxu0 0
    %763 = vmatprep.mubr.bf16.mxu0 0
    %764 = vmatmul.mubr.bf16.gmra.mrb[0].mxu0 %v723
    %v765 = vpop.f32.mrb[0].mxu0
    %v766 = vadd.f32 0.0, %v765
    %v767 = vpop.f32.mrb[0].mxu0
    %v768 = vadd.f32 0.0, %v767
    %v769 = vpop.f32.mrb[0].mxu0
    %v770 = vpop.f32.mrb[0].mxu0
    %771 = vdwg.mxu0
    %v772 = vadd.f32 %v695, %v766
    %v773 = vadd.f32 %v696, %v768
    %v774 = vmul.f32 %v772, 0.1
    %v775 = vmul.f32 %v773, 0.1
    %v776 = vmax.f32 %v772, %v774
    %v777 = vmax.f32 %v773, %v775
    %v778 = vpack.c.bf16 %v776, %v776
    %v779 = vpack.c.bf16 %v777, %v777
    %v782 = vunpack.c.l.b16 %v778
    %v783 = vunpack.c.l.b16 %v779
    %v784 = vpack.c.b16 %v783, %v782
    %vm786 = vcmask 130052
    %vm787 = vmor %vm786, %vm134
    %788 = vst.msk [vmem:[%s8] sm:$0xff] %vm787, %v784
    %v789 = vld [vmem:[%s0 + $0x4] sm:$0xff]
    %v790 = vunpack.c.l.bf16 %v789
    %v791 = vunpack.c.h.bf16 %v789
    %792 = vset.pattern.permute.xlu0 1
    %793 = vperm.xlu0 %792, %v308
    %v794 = vpop.permute.xlu0 %793
    %v796 = vmul.f32 %v790, %v794
    %v797 = vmul.f32 %v791, %v794
    %v798 = vpack.c.bf16 %v796, %v796
    %v799 = vpack.c.bf16 %v797, %v797
    %v800 = vld [vmem:[%s1 + $0x1] sm:$0x3]
    %v801 = vunpack.c.l.bf16 %v800
    %802 = vset.pattern.permute.xlu0 1
    %803 = vperm.xlu0 %802, %v310
    %v804 = vpop.permute.xlu0 %803
    %v806 = vunpack.c.l.s4 269488144
    %v807 = vunpack.c.0.s8 %v806
    %v808 = vlaneseq
    %v809 = vshrl.u32 %v808, 7
    %v810 = vsub.s32 %v807, %v809
    %v811 = vrot.slane %v804, %v810
    %v813 = vmul.f32 %v801, %v811
    %v816 = vunpack.c.l.s4 1983009808
    %v817 = vunpack.c.0.s8 %v816
    %v818 = vlaneseq
    %v819 = vshrl.u32 %v818, 7
    %v820 = vsub.s32 %v817, %v819
    %v821 = vrot.slane %v813, %v820
    %v822 = vcombine.high %v821, %v821
    %v825 = vpack.c.bf16 %v821, %v821
    %v826 = vpack.c.bf16 %v822, %v822
    %829 = vrot.lane.b32.xlu0 %v825, 112
    %v830 = vpop.permute.xlu0 %829
    %831 = vrot.lane.b32.xlu0 %v826, 112
    %v832 = vpop.permute.xlu0 %831
    %vm833 = vcmask 916480
    %v834 = vsel %vm833, %v830, %v832
    %v836 = vsel %vm364, %v834, 0
    %v839 = vsel %vm364, %v832, 0
    %841 = vmatprep.subr.bf16.mxu0 %v839
    %842 = vmatpush1.bf16.msra.mxu0 %v836
    %843 = vmatprep.subr.bf16.mxu0 0
    %844 = vmatpush1.bf16.msra.mxu0 0
    %845 = vmatprep.subr.bf16.mxu0 0
    %846 = vmatpush1.bf16.msra.mxu0 0
    %847 = vmatprep.subr.bf16.mxu0 0
    %848 = vmatpush1.bf16.msra.mxu0 0
    %849 = vmatprep.subr.bf16.mxu0 0
    %850 = vmatpush1.bf16.msra.mxu0 0
    %851 = vmatprep.subr.bf16.mxu0 0
    %852 = vmatpush1.bf16.msra.mxu0 0
    %853 = vmatprep.subr.bf16.mxu0 0
    %854 = vmatpush1.bf16.msra.mxu0 0
    %855 = vmatprep.subr.bf16.mxu0 0
    %856 = vmatpush1.bf16.msra.mxu0 0
    %857 = vmatprep.subr.bf16.mxu0 0
    %858 = vmatpush1.bf16.msra.mxu0 0
    %859 = vmatprep.subr.bf16.mxu0 0
    %860 = vmatpush1.bf16.msra.mxu0 0
    %861 = vmatprep.subr.bf16.mxu0 0
    %862 = vmatpush1.bf16.msra.mxu0 0
    %863 = vmatprep.subr.bf16.mxu0 0
    %864 = vmatpush1.bf16.msra.mxu0 0
    %865 = vmatprep.subr.bf16.mxu0 0
    %866 = vmatpush1.bf16.msra.mxu0 0
    %867 = vmatprep.subr.bf16.mxu0 0
    %868 = vmatpush1.bf16.msra.mxu0 0
    %869 = vmatprep.subr.bf16.mxu0 0
    %870 = vmatpush1.bf16.msra.mxu0 0
    %871 = vmatprep.subr.bf16.mxu0 0
    %872 = vmatpush1.bf16.msra.mxu0 0
    %873 = vmatprep.mubr.bf16.mxu0 0
    %874 = vmatmul.mubr.bf16.gmra.mrb[0].mxu0 %v362
    %v875 = vpop.f32.mrb[0].mxu0
    %v876 = vadd.f32 0.0, %v875
    %v877 = vpop.f32.mrb[0].mxu0
    %v878 = vadd.f32 0.0, %v877
    %v879 = vpop.f32.mrb[0].mxu0
    %v880 = vpop.f32.mrb[0].mxu0
    %881 = vdwg.mxu0
    %884 = vrot.lane.b32.xlu0 %v798, 112
    %v885 = vpop.permute.xlu0 %884
    %886 = vrot.lane.b32.xlu0 %v799, 112
    %v887 = vpop.permute.xlu0 %886
    %v888 = vsel %vm833, %v885, %v887
    %v890 = vsel %vm134, %v888, 0
    %v893 = vsel %vm134, %v887, 0
    %895 = vmatprep.subr.bf16.mxu0 %v893
    %896 = vmatpush1.bf16.msra.mxu0 %v890
    %897 = vmatprep.subr.bf16.mxu0 0
    %898 = vmatpush1.bf16.msra.mxu0 0
    %899 = vmatprep.subr.bf16.mxu0 0
    %900 = vmatpush1.bf16.msra.mxu0 0
    %901 = vmatprep.subr.bf16.mxu0 0
    %902 = vmatpush1.bf16.msra.mxu0 0
    %903 = vmatprep.subr.bf16.mxu0 0
    %904 = vmatpush1.bf16.msra.mxu0 0
    %905 = vmatprep.subr.bf16.mxu0 0
    %906 = vmatpush1.bf16.msra.mxu0 0
    %907 = vmatprep.subr.bf16.mxu0 0
    %908 = vmatpush1.bf16.msra.mxu0 0
    %909 = vmatprep.subr.bf16.mxu0 0
    %910 = vmatpush1.bf16.msra.mxu0 0
    %911 = vmatprep.subr.bf16.mxu0 0
    %912 = vmatpush1.bf16.msra.mxu0 0
    %913 = vmatprep.subr.bf16.mxu0 0
    %914 = vmatpush1.bf16.msra.mxu0 0
    %915 = vmatprep.subr.bf16.mxu0 0
    %916 = vmatpush1.bf16.msra.mxu0 0
    %917 = vmatprep.subr.bf16.mxu0 0
    %918 = vmatpush1.bf16.msra.mxu0 0
    %919 = vmatprep.subr.bf16.mxu0 0
    %920 = vmatpush1.bf16.msra.mxu0 0
    %921 = vmatprep.subr.bf16.mxu0 0
    %922 = vmatpush1.bf16.msra.mxu0 0
    %923 = vmatprep.subr.bf16.mxu0 0
    %924 = vmatpush1.bf16.msra.mxu0 0
    %925 = vmatprep.subr.bf16.mxu0 0
    %926 = vmatpush1.bf16.msra.mxu0 0
    %927 = vmatprep.mubr.bf16.mxu0 0
    %928 = vmatmul.mubr.bf16.gmra.mrb[0].mxu0 %v414
    %v929 = vpop.f32.mrb[0].mxu0
    %v930 = vadd.f32 %v876, %v929
    %v931 = vpop.f32.mrb[0].mxu0
    %v932 = vadd.f32 %v878, %v931
    %v933 = vpop.f32.mrb[0].mxu0
    %v934 = vpop.f32.mrb[0].mxu0
    %935 = vdwg.mxu0
    %v936 = vld [vmem:[%s2 + $0x2] sm:$0xf]
    %v937 = vunpack.c.l.bf16 %v936
    %v939 = vunpack.c.l.s4 839922192
    %v940 = vunpack.c.0.s8 %v939
    %v941 = vlaneseq
    %v942 = vshrl.u32 %v941, 7
    %v943 = vsub.s32 %v940, %v942
    %v944 = vrot.slane %v804, %v943
    %v946 = vunpack.c.l.s4 1985246804
    %v947 = vunpack.c.0.s8 %v946
    %v948 = vlaneseq
    %v949 = vshrl.u32 %v948, 7
    %v950 = vsub.s32 %v947, %v949
    %v951 = vrot.slane %v804, %v950
    %v952 = vrot.slane %v944, 6
    %v953 = vrot.slane %v952, 4
    %v954 = vrot.slane %v951, 6
    %v955 = vsel %vm480, %v953, %v954
    %v957 = vmul.f32 %v937, %v955
    %v959 = vcombine.high %v957, %v957
    %v961 = vpack.c.bf16 %v957, %v957
    %v962 = vpack.c.bf16 %v959, %v959
    %965 = vrot.lane.b32.xlu0 %v961, 112
    %v966 = vpop.permute.xlu0 %965
    %967 = vrot.lane.b32.xlu0 %v962, 112
    %v968 = vpop.permute.xlu0 %967
    %v969 = vsel %vm833, %v966, %v968
    %v971 = vsel %vm93, %v969, 0
    %v974 = vsel %vm93, %v968, 0
    %976 = vmatprep.subr.bf16.mxu0 %v974
    %977 = vmatpush1.bf16.msra.mxu0 %v971
    %978 = vmatprep.subr.bf16.mxu0 0
    %979 = vmatpush1.bf16.msra.mxu0 0
    %980 = vmatprep.subr.bf16.mxu0 0
    %981 = vmatpush1.bf16.msra.mxu0 0
    %982 = vmatprep.subr.bf16.mxu0 0
    %983 = vmatpush1.bf16.msra.mxu0 0
    %984 = vmatprep.subr.bf16.mxu0 0
    %985 = vmatpush1.bf16.msra.mxu0 0
    %986 = vmatprep.subr.bf16.mxu0 0
    %987 = vmatpush1.bf16.msra.mxu0 0
    %988 = vmatprep.subr.bf16.mxu0 0
    %989 = vmatpush1.bf16.msra.mxu0 0
    %990 = vmatprep.subr.bf16.mxu0 0
    %991 = vmatpush1.bf16.msra.mxu0 0
    %992 = vmatprep.subr.bf16.mxu0 0
    %993 = vmatpush1.bf16.msra.mxu0 0
    %994 = vmatprep.subr.bf16.mxu0 0
    %995 = vmatpush1.bf16.msra.mxu0 0
    %996 = vmatprep.subr.bf16.mxu0 0
    %997 = vmatpush1.bf16.msra.mxu0 0
    %998 = vmatprep.subr.bf16.mxu0 0
    %999 = vmatpush1.bf16.msra.mxu0 0
    %1000 = vmatprep.subr.bf16.mxu0 0
    %1001 = vmatpush1.bf16.msra.mxu0 0
    %1002 = vmatprep.subr.bf16.mxu0 0
    %1003 = vmatpush1.bf16.msra.mxu0 0
    %1004 = vmatprep.subr.bf16.mxu0 0
    %1005 = vmatpush1.bf16.msra.mxu0 0
    %1006 = vmatprep.subr.bf16.mxu0 0
    %1007 = vmatpush1.bf16.msra.mxu0 0
    %1008 = vmatprep.mubr.bf16.mxu0 0
    %1009 = vmatmul.mubr.bf16.gmra.mrb[0].mxu0 %v496
    %v1010 = vpop.f32.mrb[0].mxu0
    %v1011 = vadd.f32 0.0, %v1010
    %v1012 = vpop.f32.mrb[0].mxu0
    %v1013 = vadd.f32 0.0, %v1012
    %v1014 = vpop.f32.mrb[0].mxu0
    %v1015 = vpop.f32.mrb[0].mxu0
    %1016 = vdwg.mxu0
    %v1017 = vadd.f32 %v930, %v1011
    %v1018 = vadd.f32 %v932, %v1013
    %v1019 = vld [vmem:[%s3 + $0x2] sm:$0xf]
    %v1020 = vunpack.c.l.bf16 %v1019
    %1021 = vset.pattern.permute.xlu0 1
    %1022 = vperm.xlu0 %1021, %v312
    %v1023 = vpop.permute.xlu0 %1022
    %v1025 = vunpack.c.l.s4 839922192
    %v1026 = vunpack.c.0.s8 %v1025
    %v1027 = vlaneseq
    %v1028 = vshrl.u32 %v1027, 7
    %v1029 = vsub.s32 %v1026, %v1028
    %v1030 = vrot.slane %v1023, %v1029
    %v1031 = vrot.slane %v954, 4
    %v1032 = vrot.slane %v1030, 6
    %v1033 = vsel %vm480, %v1031, %v1032
    %v1035 = vmul.f32 %v1020, %v1033
    %v1037 = vcombine.high %v1035, %v1035
    %v1039 = vpack.c.bf16 %v1035, %v1035
    %v1040 = vpack.c.bf16 %v1037, %v1037
    %1043 = vrot.lane.b32.xlu0 %v1039, 112
    %v1044 = vpop.permute.xlu0 %1043
    %1045 = vrot.lane.b32.xlu0 %v1040, 112
    %v1046 = vpop.permute.xlu0 %1045
    %v1047 = vsel %vm833, %v1044, %v1046
    %v1049 = vsel %vm93, %v1047, 0
    %v1052 = vsel %vm93, %v1046, 0
    %1054 = vmatprep.subr.bf16.mxu0 %v1052
    %1055 = vmatpush1.bf16.msra.mxu0 %v1049
    %1056 = vmatprep.subr.bf16.mxu0 0
    %1057 = vmatpush1.bf16.msra.mxu0 0
    %1058 = vmatprep.subr.bf16.mxu0 0
    %1059 = vmatpush1.bf16.msra.mxu0 0
    %1060 = vmatprep.subr.bf16.mxu0 0
    %1061 = vmatpush1.bf16.msra.mxu0 0
    %1062 = vmatprep.subr.bf16.mxu0 0
    %1063 = vmatpush1.bf16.msra.mxu0 0
    %1064 = vmatprep.subr.bf16.mxu0 0
    %1065 = vmatpush1.bf16.msra.mxu0 0
    %1066 = vmatprep.subr.bf16.mxu0 0
    %1067 = vmatpush1.bf16.msra.mxu0 0
    %1068 = vmatprep.subr.bf16.mxu0 0
    %1069 = vmatpush1.bf16.msra.mxu0 0
    %1070 = vmatprep.subr.bf16.mxu0 0
    %1071 = vmatpush1.bf16.msra.mxu0 0
    %1072 = vmatprep.subr.bf16.mxu0 0
    %1073 = vmatpush1.bf16.msra.mxu0 0
    %1074 = vmatprep.subr.bf16.mxu0 0
    %1075 = vmatpush1.bf16.msra.mxu0 0
    %1076 = vmatprep.subr.bf16.mxu0 0
    %1077 = vmatpush1.bf16.msra.mxu0 0
    %1078 = vmatprep.subr.bf16.mxu0 0
    %1079 = vmatpush1.bf16.msra.mxu0 0
    %1080 = vmatprep.subr.bf16.mxu0 0
    %1081 = vmatpush1.bf16.msra.mxu0 0
    %1082 = vmatprep.subr.bf16.mxu0 0
    %1083 = vmatpush1.bf16.msra.mxu0 0
    %1084 = vmatprep.subr.bf16.mxu0 0
    %1085 = vmatpush1.bf16.msra.mxu0 0
    %1086 = vmatprep.mubr.bf16.mxu0 0
    %1087 = vmatmul.mubr.bf16.gmra.mrb[0].mxu0 %v573
    %v1088 = vpop.f32.mrb[0].mxu0
    %v1089 = vadd.f32 0.0, %v1088
    %v1090 = vpop.f32.mrb[0].mxu0
    %v1091 = vadd.f32 0.0, %v1090
    %v1092 = vpop.f32.mrb[0].mxu0
    %v1093 = vpop.f32.mrb[0].mxu0
    %1094 = vdwg.mxu0
    %v1095 = vadd.f32 %v1017, %v1089
    %v1096 = vadd.f32 %v1018, %v1091
    %v1097 = vld [vmem:[%s4 + $0x2] sm:$0xf]
    %v1098 = vunpack.c.l.bf16 %v1097
    %v1100 = vunpack.c.l.s4 1985246804
    %v1101 = vunpack.c.0.s8 %v1100
    %v1102 = vlaneseq
    %v1103 = vshrl.u32 %v1102, 7
    %v1104 = vsub.s32 %v1101, %v1103
    %v1105 = vrot.slane %v1023, %v1104
    %v1106 = vrot.slane %v1032, 4
    %v1107 = vrot.slane %v1105, 6
    %v1108 = vsel %vm480, %v1106, %v1107
    %v1110 = vmul.f32 %v1098, %v1108
    %v1112 = vcombine.high %v1110, %v1110
    %v1114 = vpack.c.bf16 %v1110, %v1110
    %v1115 = vpack.c.bf16 %v1112, %v1112
    %1118 = vrot.lane.b32.xlu0 %v1114, 112
    %v1119 = vpop.permute.xlu0 %1118
    %1120 = vrot.lane.b32.xlu0 %v1115, 112
    %v1121 = vpop.permute.xlu0 %1120
    %v1122 = vsel %vm833, %v1119, %v1121
    %v1124 = vsel %vm93, %v1122, 0
    %v1127 = vsel %vm93, %v1121, 0
    %1129 = vmatprep.subr.bf16.mxu0 %v1127
    %1130 = vmatpush1.bf16.msra.mxu0 %v1124
    %1131 = vmatprep.subr.bf16.mxu0 0
    %1132 = vmatpush1.bf16.msra.mxu0 0
    %1133 = vmatprep.subr.bf16.mxu0 0
    %1134 = vmatpush1.bf16.msra.mxu0 0
    %1135 = vmatprep.subr.bf16.mxu0 0
    %1136 = vmatpush1.bf16.msra.mxu0 0
    %1137 = vmatprep.subr.bf16.mxu0 0
    %1138 = vmatpush1.bf16.msra.mxu0 0
    %1139 = vmatprep.subr.bf16.mxu0 0
    %1140 = vmatpush1.bf16.msra.mxu0 0
    %1141 = vmatprep.subr.bf16.mxu0 0
    %1142 = vmatpush1.bf16.msra.mxu0 0
    %1143 = vmatprep.subr.bf16.mxu0 0
    %1144 = vmatpush1.bf16.msra.mxu0 0
    %1145 = vmatprep.subr.bf16.mxu0 0
    %1146 = vmatpush1.bf16.msra.mxu0 0
    %1147 = vmatprep.subr.bf16.mxu0 0
    %1148 = vmatpush1.bf16.msra.mxu0 0
    %1149 = vmatprep.subr.bf16.mxu0 0
    %1150 = vmatpush1.bf16.msra.mxu0 0
    %1151 = vmatprep.subr.bf16.mxu0 0
    %1152 = vmatpush1.bf16.msra.mxu0 0
    %1153 = vmatprep.subr.bf16.mxu0 0
    %1154 = vmatpush1.bf16.msra.mxu0 0
    %1155 = vmatprep.subr.bf16.mxu0 0
    %1156 = vmatpush1.bf16.msra.mxu0 0
    %1157 = vmatprep.subr.bf16.mxu0 0
    %1158 = vmatpush1.bf16.msra.mxu0 0
    %1159 = vmatprep.subr.bf16.mxu0 0
    %1160 = vmatpush1.bf16.msra.mxu0 0
    %1161 = vmatprep.mubr.bf16.mxu0 0
    %1162 = vmatmul.mubr.bf16.gmra.mrb[0].mxu0 %v646
    %v1163 = vpop.f32.mrb[0].mxu0
    %v1164 = vadd.f32 0.0, %v1163
    %v1165 = vpop.f32.mrb[0].mxu0
    %v1166 = vadd.f32 0.0, %v1165
    %v1167 = vpop.f32.mrb[0].mxu0
    %v1168 = vpop.f32.mrb[0].mxu0
    %1169 = vdwg.mxu0
    %v1170 = vadd.f32 %v1095, %v1164
    %v1171 = vadd.f32 %v1096, %v1166
    %v1172 = vld [vmem:[%s5 + $0x2] sm:$0xf]
    %v1173 = vunpack.c.l.bf16 %v1172
    %1174 = vset.pattern.permute.xlu0 1
    %1175 = vperm.xlu0 %1174, %v314
    %v1176 = vpop.permute.xlu0 %1175
    %v1178 = vunpack.c.l.s4 839922192
    %v1179 = vunpack.c.0.s8 %v1178
    %v1180 = vlaneseq
    %v1181 = vshrl.u32 %v1180, 7
    %v1182 = vsub.s32 %v1179, %v1181
    %v1183 = vrot.slane %v1176, %v1182
    %v1184 = vrot.slane %v1107, 4
    %v1185 = vrot.slane %v1183, 6
    %v1186 = vsel %vm480, %v1184, %v1185
    %v1188 = vmul.f32 %v1173, %v1186
    %v1190 = vcombine.high %v1188, %v1188
    %v1192 = vpack.c.bf16 %v1188, %v1188
    %v1193 = vpack.c.bf16 %v1190, %v1190
    %1196 = vrot.lane.b32.xlu0 %v1192, 112
    %v1197 = vpop.permute.xlu0 %1196
    %1198 = vrot.lane.b32.xlu0 %v1193, 112
    %v1199 = vpop.permute.xlu0 %1198
    %v1200 = vsel %vm833, %v1197, %v1199
    %v1202 = vsel %vm93, %v1200, 0
    %v1205 = vsel %vm93, %v1199, 0
    %1207 = vmatprep.subr.bf16.mxu0 %v1205
    %1208 = vmatpush1.bf16.msra.mxu0 %v1202
    %1209 = vmatprep.subr.bf16.mxu0 0
    %1210 = vmatpush1.bf16.msra.mxu0 0
    %1211 = vmatprep.subr.bf16.mxu0 0
    %1212 = vmatpush1.bf16.msra.mxu0 0
    %1213 = vmatprep.subr.bf16.mxu0 0
    %1214 = vmatpush1.bf16.msra.mxu0 0
    %1215 = vmatprep.subr.bf16.mxu0 0
    %1216 = vmatpush1.bf16.msra.mxu0 0
    %1217 = vmatprep.subr.bf16.mxu0 0
    %1218 = vmatpush1.bf16.msra.mxu0 0
    %1219 = vmatprep.subr.bf16.mxu0 0
    %1220 = vmatpush1.bf16.msra.mxu0 0
    %1221 = vmatprep.subr.bf16.mxu0 0
    %1222 = vmatpush1.bf16.msra.mxu0 0
    %1223 = vmatprep.subr.bf16.mxu0 0
    %1224 = vmatpush1.bf16.msra.mxu0 0
    %1225 = vmatprep.subr.bf16.mxu0 0
    %1226 = vmatpush1.bf16.msra.mxu0 0
    %1227 = vmatprep.subr.bf16.mxu0 0
    %1228 = vmatpush1.bf16.msra.mxu0 0
    %1229 = vmatprep.subr.bf16.mxu0 0
    %1230 = vmatpush1.bf16.msra.mxu0 0
    %1231 = vmatprep.subr.bf16.mxu0 0
    %1232 = vmatpush1.bf16.msra.mxu0 0
    %1233 = vmatprep.subr.bf16.mxu0 0
    %1234 = vmatpush1.bf16.msra.mxu0 0
    %1235 = vmatprep.subr.bf16.mxu0 0
    %1236 = vmatpush1.bf16.msra.mxu0 0
    %1237 = vmatprep.subr.bf16.mxu0 0
    %1238 = vmatpush1.bf16.msra.mxu0 0
    %1239 = vmatprep.mubr.bf16.mxu0 0
    %1240 = vmatmul.mubr.bf16.gmra.mrb[0].mxu0 %v723
    %v1241 = vpop.f32.mrb[0].mxu0
    %v1242 = vadd.f32 0.0, %v1241
    %v1243 = vpop.f32.mrb[0].mxu0
    %v1244 = vadd.f32 0.0, %v1243
    %v1245 = vpop.f32.mrb[0].mxu0
    %v1246 = vpop.f32.mrb[0].mxu0
    %1247 = vdwg.mxu0
    %v1248 = vadd.f32 %v1170, %v1242
    %v1249 = vadd.f32 %v1171, %v1244
    %v1250 = vmul.f32 %v1248, 0.1
    %v1251 = vmul.f32 %v1249, 0.1
    %v1252 = vmax.f32 %v1248, %v1250
    %v1253 = vmax.f32 %v1249, %v1251
    %v1254 = vpack.c.bf16 %v1252, %v1252
    %v1255 = vpack.c.bf16 %v1253, %v1253
    %v1258 = vunpack.c.l.b16 %v1254
    %v1259 = vunpack.c.l.b16 %v1255
    %v1260 = vpack.c.b16 %v1259, %v1258
    %1261 = vrot.lane.b32.xlu0 %v1260, 16
    %v1262 = vpop.permute.xlu0 %1261
    %v1263 = vrot.slane %v1262, 4
    %vm1264 = vcmask 130048
    %v1265 = vsel %vm1264, %v1263, %v1262
    %vm1267 = vcmask 1043584
    %vm1268 = vcmask 261124
    %vm1269 = vmor %vm1268, %vm1267
    %1270 = vst.msk [vmem:[%s8 + $0x4] sm:$0xff] %vm1269, %v1265
    // Predicated region
    $region38: #{disentg_forward_pallas.14} parent=1 // pred_check
      _
    $region39: #{disentg_forward_pallas.14} parent=1 // pred_check_branch
      %1272 = sbr.rel (0) target = $region41
    $region40: #{disentg_forward_pallas.14} parent=1 // pred_region
      _
    $region41: #{disentg_forward_pallas.14} parent=1 // pred_fallthru
      _
    // Predicated region
    $region42: #{disentg_forward_pallas.14} parent=1 // pred_check
      _
    $region43: #{disentg_forward_pallas.14} parent=1 // pred_check_branch
      %1274 = sbr.rel (0) target = $region45
    $region44: #{disentg_forward_pallas.14} parent=1 // pred_region
      _
    $region45: #{disentg_forward_pallas.14} parent=1 // pred_fallthru
      _
    %1275 = vsyncpa [#allocation4], 1

</llo_original>
